<compile_context>
chip_gen: v7x
topology: tpu7x:2x2x1
jax: 0.10.0
libtpu: 0.0.40
codegen_flags: <defaults>
</compile_context>

<pallas_src>
import jax
import jax.numpy as jnp
import numpy as np
from jax import lax
from jax.experimental import pallas as pl
from jax.experimental.pallas import tpu as pltpu

BN_EPS = 1e-5


# ---------------------------------------------------------------------------
# Parameter preprocessing (wrapper side, plain JAX)
# ---------------------------------------------------------------------------
def _fold_bn(gamma, beta, mean, var):
    """Fold eval-mode BatchNorm into per-channel scale / bias (f32)."""
    scale = (gamma / jnp.sqrt(var + BN_EPS)).astype(jnp.float32)
    bias = (beta - mean * scale).astype(jnp.float32)
    return scale, bias


def _banded_weight(w, w_spatial):
    """(3,3,3,Cin,Cout) conv weight -> (3,3,(W+2)*Cin, W*Cout) banded matrices.

    For a fixed (kd, kh): row j = w_in*Cin + ci, column n = w*Cout + co holds
    w[kd, kh, w_in - w, ci, co] when 0 <= w_in - w < 3, else 0.  With this
    weight, the whole (kw, w, ci) part of the convolution becomes one matmul
    whose output is already lane-dense over (w, Cout).
    """
    kD, kH, kW, Cin, Cout = w.shape
    wp = w_spatial + kW - 1                      # padded width (pad=1 each side)
    a = jnp.arange(wp)[:, None, None]            # padded input position
    k = jnp.arange(kW)[None, :, None]            # kernel tap
    wo = jnp.arange(w_spatial)[None, None, :]    # output position
    ind = (a == wo + k).astype(w.dtype)          # (wp, kW, W)
    b = jnp.einsum('akw,dhkio->dhaiwo', ind, w)  # (3,3,wp,Cin,W,Cout)
    return b.reshape(kD, kH, wp * Cin, w_spatial * Cout)


# ---------------------------------------------------------------------------
# Fused Pallas kernel: [Conv3d(3x3x3, no bias) -> BN(eval) -> ReLU] x 2
# ---------------------------------------------------------------------------
def double_conv3d_bn_relu_pallas(x, params):
    """x: (N, D, H, W, Cin) float32 channels-last -> (N, D, H, W, Cout) f32."""
    N, D, H, W, C1 = x.shape
    Cm = params['w1'].shape[-1]
    Co = params['w2'].shape[-1]
    WP = W + 2
    K1, K2 = WP * C1, WP * Cm          # matmul contraction sizes per (kd,kh)
    N1, N2 = W * Cm, W * Co            # lane-dense output widths

    # bf16 activations / weights, f32 accumulation + epilogue.
    w1b = _banded_weight(params['w1'], W).astype(jnp.bfloat16)  # (3,3,K1,N1)
    w2b = _banded_weight(params['w2'], W).astype(jnp.bfloat16)  # (3,3,K2,N2)
    s1, t1 = _fold_bn(params['g1'], params['b1'], params['m1'], params['v1'])
    s2, t2 = _fold_bn(params['g2'], params['b2'], params['m2'], params['v2'])
    s1 = jnp.tile(s1, W)[None, :]      # (1, W*Cm): index n = w*Cm + c
    t1 = jnp.tile(t1, W)[None, :]
    s2 = jnp.tile(s2, W)[None, :]      # (1, W*Co)
    t2 = jnp.tile(t2, W)[None, :]

    # Lane-dense input slab (W*C1 = 256 lanes here), halved DMA via bf16.
    xf = x.astype(jnp.bfloat16).reshape(N, D, H, W * C1)

    def kernel(x_ref, w1_ref, s1_ref, t1_ref, w2_ref, s2_ref, t2_ref,
               o_ref, xpad, hpad):
        # ---- layer 1: zero-pad the input into VMEM scratch (no wrapper pad) --
        xpad[...] = jnp.zeros(xpad.shape, xpad.dtype)
        xpad[1:D + 1, 1:H + 1, C1:C1 + W * C1] = x_ref[0]

        # 9 fixed (kd, kh) taps -> 9 MXU matmuls batched over all D*H rows.
        acc = jnp.zeros((D * H, N1), jnp.float32)
        for kd in range(3):
            for kh in range(3):
                xs = xpad[kd:kd + D, kh:kh + H, :].reshape(D * H, K1)
                acc += jnp.dot(xs, w1_ref[kd, kh],
                               preferred_element_type=jnp.float32)
        h = jnp.maximum(acc * s1_ref[...] + t1_ref[...], 0.0)   # f32 epilogue

        # ---- layer 2: intermediate stays in VMEM (no HBM round trip) --------
        hpad[...] = jnp.zeros(hpad.shape, hpad.dtype)
        hpad[1:D + 1, 1:H + 1, Cm:Cm + W * Cm] = (
            h.reshape(D, H, W * Cm).astype(hpad.dtype))

        acc2 = jnp.zeros((D * H, N2), jnp.float32)
        for kd in range(3):
            for kh in range(3):
                xs = hpad[kd:kd + D, kh:kh + H, :].reshape(D * H, K2)
                acc2 += jnp.dot(xs, w2_ref[kd, kh],
                                preferred_element_type=jnp.float32)
        y = jnp.maximum(acc2 * s2_ref[...] + t2_ref[...], 0.0)

        # Lane-dense output store: last dim = W*Cout (128 here).
        o_ref[0] = y.reshape(D, H, N2)

    out = pl.pallas_call(
        kernel,
        out_shape=jax.ShapeDtypeStruct((N, D, H, N2), jnp.float32),
        grid_spec=pltpu.PrefetchScalarGridSpec(
            num_scalar_prefetch=0,
            grid=(N,),
            in_specs=[
                pl.BlockSpec((1, D, H, W * C1), lambda n: (n, 0, 0, 0)),
                pl.BlockSpec((3, 3, K1, N1), lambda n: (0, 0, 0, 0)),
                pl.BlockSpec((1, N1), lambda n: (0, 0)),
                pl.BlockSpec((1, N1), lambda n: (0, 0)),
                pl.BlockSpec((3, 3, K2, N2), lambda n: (0, 0, 0, 0)),
                pl.BlockSpec((1, N2), lambda n: (0, 0)),
                pl.BlockSpec((1, N2), lambda n: (0, 0)),
            ],
            out_specs=pl.BlockSpec((1, D, H, N2), lambda n: (n, 0, 0, 0)),
            scratch_shapes=[
                pltpu.VMEM((D + 2, H + 2, K1), jnp.bfloat16),  # padded input
                pltpu.VMEM((D + 2, H + 2, K2), jnp.bfloat16),  # padded hidden
            ],
        ),
        compiler_params=pltpu.CompilerParams(
            dimension_semantics=("parallel",),
            vmem_limit_bytes=32 * 1024 * 1024,
        ),
    )(xf, w1b, s1, t1, w2b, s2, t2)
    return out.reshape(N, D, H, W, Co)


# ---------------------------------------------------------------------------
# Reference (pure JAX) — mirrors the kernel's bf16-input / f32-accumulate policy
# ---------------------------------------------------------------------------
def double_conv3d_bn_relu_ref(x, params):
    def one(z, w, g, b, m, v):
        y = lax.conv_general_dilated(
            z.astype(jnp.bfloat16), w.astype(jnp.bfloat16),
            window_strides=(1, 1, 1), padding=[(1, 1)] * 3,
            dimension_numbers=('NDHWC', 'DHWIO', 'NDHWC'),
            preferred_element_type=jnp.float32)
        s = g / jnp.sqrt(v + BN_EPS)
        return jnp.maximum(y * s + (b - m * s), 0.0)

    h = one(x, params['w1'], params['g1'], params['b1'],
            params['m1'], params['v1'])
    return one(h, params['w2'], params['g2'], params['b2'],
               params['m2'], params['v2'])


# ---------------------------------------------------------------------------
# JAX glue: trilinear upsample (align_corners=True), crop/pad, concat
# ---------------------------------------------------------------------------
def _interp_axis_align_corners(x, axis, out_size):
    in_size = x.shape[axis]
    if out_size == in_size:
        return x
    pos = jnp.arange(out_size, dtype=jnp.float32) * (in_size - 1) / (out_size - 1)
    lo = jnp.floor(pos).astype(jnp.int32)
    hi = jnp.minimum(lo + 1, in_size - 1)
    frac = pos - lo.astype(jnp.float32)
    shp = [1] * x.ndim
    shp[axis] = out_size
    frac = frac.reshape(shp)
    xl = jnp.take(x, lo, axis=axis)
    xh = jnp.take(x, hi, axis=axis)
    return xl * (1.0 - frac) + xh * frac


def up3d_forward(x1_ncdhw, x2_ncdhw, params,
                 double_conv_fn=double_conv3d_bn_relu_pallas):
    # NCDHW -> NDHWC
    x1 = jnp.transpose(x1_ncdhw, (0, 2, 3, 4, 1)).astype(jnp.float32)
    x2 = jnp.transpose(x2_ncdhw, (0, 2, 3, 4, 1)).astype(jnp.float32)

    # nn.Upsample(scale_factor=(1,2,2), mode='trilinear', align_corners=True)
    x1u = _interp_axis_align_corners(x1, axis=2, out_size=x1.shape[2] * 2)    # H
    x1u = _interp_axis_align_corners(x1u, axis=3, out_size=x1u.shape[3] * 2)  # W
    # depth scale factor 1 with align_corners=True -> identity

    dZ = x2.shape[1] - x1u.shape[1]
    dY = x2.shape[2] - x1u.shape[2]
    dX = x2.shape[3] - x1u.shape[3]
    if dZ > 0 or dY > 0 or dX > 0:
        x2 = x2[:,
                dZ // 2: x2.shape[1] - (dZ - dZ // 2),
                dY // 2: x2.shape[2] - (dY - dY // 2),
                dX // 2: x2.shape[3] - (dX - dX // 2),
                :]
    if dZ < 0 or dY < 0 or dX < 0:
        aZ, aY, aX = abs(dZ), abs(dY), abs(dX)
        x1u = jnp.pad(x1u, ((0, 0),
                            (aZ // 2, aZ - aZ // 2),
                            (aY // 2, aY - aY // 2),
                            (aX // 2, aX - aX // 2),
                            (0, 0)))

    # torch.cat([x2, x1_up], dim=1)  -> channels-last concat with x2 first
    x = jnp.concatenate([x2, x1u], axis=-1)

    y = double_conv_fn(x, params)

    # NDHWC -> NCDHW
    return jnp.transpose(y, (0, 4, 1, 2, 3))


# ---------------------------------------------------------------------------
# Deterministic parameter initialization (bilinear branch of Up3D.__init__)
# ---------------------------------------------------------------------------
def init_params(key, in_channels_total, out_channels):
    mid = in_channels_total // 2
    k = jax.random.split(key, 10)
    return {
        'w1': 0.1 * jax.random.normal(k[0], (3, 3, 3, in_channels_total, mid),
                                      jnp.float32),
        'g1': 1.0 + 0.1 * jax.random.normal(k[1], (mid,), jnp.float32),
        'b1': 0.1 * jax.random.normal(k[2], (mid,), jnp.float32),
        'm1': 0.1 * jax.random.normal(k[3], (mid,), jnp.float32),
        'v1': 1.0 + 0.1 * jnp.abs(jax.random.normal(k[4], (mid,), jnp.float32)),
        'w2': 0.1 * jax.random.normal(k[5], (3, 3, 3, mid, out_channels),
                                      jnp.float32),
        'g2': 1.0 + 0.1 * jax.random.normal(k[6], (out_channels,), jnp.float32),
        'b2': 0.1 * jax.random.normal(k[7], (out_channels,), jnp.float32),
        'm2': 0.1 * jax.random.normal(k[8], (out_channels,), jnp.float32),
        'v2': 1.0 + 0.1 * jnp.abs(jax.random.normal(k[9], (out_channels,),
                                                    jnp.float32)),
    }


if __name__ == "__main__":
    key = jax.random.PRNGKey(0)
    kx1, kx2, kp = jax.random.split(key, 3)

    # Small shapes consistent with Up3D(bilinear=True):
    #   x1 (from below): (N, C1, D, H, W), x2 (skip): (N, C2, D, 2H, 2W)
    N, C1, C2, D, H, W = 2, 8, 8, 4, 8, 8
    out_channels = 8
    in_channels_total = C1 + C2

    x1 = jax.random.normal(kx1, (N, C1, D, H, W), jnp.float32)
    x2 = jax.random.normal(kx2, (N, C2, D, 2 * H, 2 * W), jnp.float32)
    params = init_params(kp, in_channels_total, out_channels)

    out = up3d_forward(x1, x2, params,
                       double_conv_fn=double_conv3d_bn_relu_pallas)
    out = jax.block_until_ready(out)

    ref = up3d_forward(x1, x2, params,
                       double_conv_fn=double_conv3d_bn_relu_ref)
    ref = jax.block_until_ready(ref)

    # The reference mirrors the kernel's bf16-input / f32-accumulate policy,
    # so the only differences are accumulation order (tiny).
    np.testing.assert_allclose(np.asarray(out), np.asarray(ref),
                               rtol=2e-2, atol=2e-2)
    assert out.shape == (N, out_channels, D, 2 * H, 2 * W)
    print("KERNEL_OK")
</pallas_src>

<mosaic_0001>
module attributes {stable_mosaic.version = 11 : i64} {
  func.func @kernel(%arg0: i32, %arg1: memref<1x4x16x256xbf16, #tpu.memory_space<vmem>>, %arg2: memref<3x3x288x128xbf16, #tpu.memory_space<vmem>>, %arg3: memref<1x128xf32, #tpu.memory_space<vmem>>, %arg4: memref<1x128xf32, #tpu.memory_space<vmem>>, %arg5: memref<3x3x144x128xbf16, #tpu.memory_space<vmem>>, %arg6: memref<1x128xf32, #tpu.memory_space<vmem>>, %arg7: memref<1x128xf32, #tpu.memory_space<vmem>>, %arg8: memref<1x4x16x128xf32, #tpu.memory_space<vmem>>, %arg9: memref<6x18x288xbf16, #tpu.memory_space<vmem>>, %arg10: memref<6x18x144xbf16, #tpu.memory_space<vmem>>) attributes {dimension_semantics = [#tpu.dimension_semantics<parallel>], iteration_bounds = array<i64: 2>, scalar_prefetch = 0 : i64, scratch_operands = 2 : i64, tpu.core_type = #tpu.core_type<tc>, window_params = [{transform_indices = @transform_0, window_bounds = array<i64: 1, 4, 16, 256>}, {pipeline_mode = #tpu.pipeline_mode<synchronous>, transform_indices = @transform_1, window_bounds = array<i64: 3, 3, 288, 128>}, {pipeline_mode = #tpu.pipeline_mode<synchronous>, transform_indices = @transform_2, window_bounds = array<i64: 1, 128>}, {pipeline_mode = #tpu.pipeline_mode<synchronous>, transform_indices = @transform_3, window_bounds = array<i64: 1, 128>}, {pipeline_mode = #tpu.pipeline_mode<synchronous>, transform_indices = @transform_4, window_bounds = array<i64: 3, 3, 144, 128>}, {pipeline_mode = #tpu.pipeline_mode<synchronous>, transform_indices = @transform_5, window_bounds = array<i64: 1, 128>}, {pipeline_mode = #tpu.pipeline_mode<synchronous>, transform_indices = @transform_6, window_bounds = array<i64: 1, 128>}, {transform_indices = @transform_7, window_bounds = array<i64: 1, 4, 16, 128>}]} {
    %cst = arith.constant 0.000000e+00 : bf16
    %0 = vector.broadcast %cst : bf16 to vector<6x18x288xbf16>
    %c0 = arith.constant 0 : index
    %c0_0 = arith.constant 0 : index
    %c0_1 = arith.constant 0 : index
    %1 = vector.load %arg9[%c0, %c0_0, %c0_1] : memref<6x18x288xbf16, #tpu.memory_space<vmem>>, vector<6x18x288xbf16>
    tpu.vector_store %arg9[%c0, %c0_0, %c0_1], %0 {strides = array<i32>} : memref<6x18x288xbf16, #tpu.memory_space<vmem>>, vector<6x18x288xbf16>,
    %c0_2 = arith.constant 0 : index
    %c0_3 = arith.constant 0 : index
    %c0_4 = arith.constant 0 : index
    %c0_5 = arith.constant 0 : index
    %2 = vector.load %arg1[%c0_2, %c0_3, %c0_4, %c0_5] : memref<1x4x16x256xbf16, #tpu.memory_space<vmem>>, vector<1x4x16x256xbf16>
    %3 = vector.shape_cast %2 : vector<1x4x16x256xbf16> to vector<4x16x256xbf16>
    %c1 = arith.constant 1 : index
    %c1_6 = arith.constant 1 : index
    %c16 = arith.constant 16 : index
    %4 = vector.load %arg9[%c1, %c1_6, %c16] : memref<6x18x288xbf16, #tpu.memory_space<vmem>>, vector<4x16x256xbf16>
    tpu.vector_store %arg9[%c1, %c1_6, %c16], %3 {strides = array<i32>} : memref<6x18x288xbf16, #tpu.memory_space<vmem>>, vector<4x16x256xbf16>,
    %cst_7 = arith.constant 0.000000e+00 : f32
    %5 = vector.broadcast %cst_7 : f32 to vector<64x128xf32>
    %c0_8 = arith.constant 0 : index
    %c0_9 = arith.constant 0 : index
    %c0_10 = arith.constant 0 : index
    %6 = vector.load %arg9[%c0_8, %c0_9, %c0_10] : memref<6x18x288xbf16, #tpu.memory_space<vmem>>, vector<4x16x288xbf16>
    %7 = vector.shape_cast %6 : vector<4x16x288xbf16> to vector<64x288xbf16>
    %c0_11 = arith.constant 0 : index
    %c0_12 = arith.constant 0 : index
    %c0_13 = arith.constant 0 : index
    %c0_14 = arith.constant 0 : index
    %8 = vector.load %arg2[%c0_11, %c0_12, %c0_13, %c0_14] : memref<3x3x288x128xbf16, #tpu.memory_space<vmem>>, vector<1x1x288x128xbf16>
    %9 = vector.shape_cast %8 : vector<1x1x288x128xbf16> to vector<288x128xbf16>
    %cst_15 = arith.constant dense<0.000000e+00> : vector<64x128xf32>
    %10 = tpu.matmul %7, %9, %cst_15 {dimension_numbers = #tpu.dot_dimension_numbers<[1], [0], [0], [1], [0, 0, 1, 1], [], []>} : vector<64x288xbf16>, vector<288x128xbf16>, vector<64x128xf32> -> vector<64x128xf32>
    %11 = arith.addf %5, %10 : vector<64x128xf32>
    %c0_16 = arith.constant 0 : index
    %c1_17 = arith.constant 1 : index
    %c0_18 = arith.constant 0 : index
    %12 = vector.load %arg9[%c0_16, %c1_17, %c0_18] : memref<6x18x288xbf16, #tpu.memory_space<vmem>>, vector<4x16x288xbf16>
    %13 = vector.shape_cast %12 : vector<4x16x288xbf16> to vector<64x288xbf16>
    %c0_19 = arith.constant 0 : index
    %c1_20 = arith.constant 1 : index
    %c0_21 = arith.constant 0 : index
    %c0_22 = arith.constant 0 : index
    %14 = vector.load %arg2[%c0_19, %c1_20, %c0_21, %c0_22] : memref<3x3x288x128xbf16, #tpu.memory_space<vmem>>, vector<1x1x288x128xbf16>
    %15 = vector.shape_cast %14 : vector<1x1x288x128xbf16> to vector<288x128xbf16>
    %cst_23 = arith.constant dense<0.000000e+00> : vector<64x128xf32>
    %16 = tpu.matmul %13, %15, %cst_23 {dimension_numbers = #tpu.dot_dimension_numbers<[1], [0], [0], [1], [0, 0, 1, 1], [], []>} : vector<64x288xbf16>, vector<288x128xbf16>, vector<64x128xf32> -> vector<64x128xf32>
    %17 = arith.addf %11, %16 : vector<64x128xf32>
    %c0_24 = arith.constant 0 : index
    %c2 = arith.constant 2 : index
    %c0_25 = arith.constant 0 : index
    %18 = vector.load %arg9[%c0_24, %c2, %c0_25] : memref<6x18x288xbf16, #tpu.memory_space<vmem>>, vector<4x16x288xbf16>
    %19 = vector.shape_cast %18 : vector<4x16x288xbf16> to vector<64x288xbf16>
    %c0_26 = arith.constant 0 : index
    %c2_27 = arith.constant 2 : index
    %c0_28 = arith.constant 0 : index
    %c0_29 = arith.constant 0 : index
    %20 = vector.load %arg2[%c0_26, %c2_27, %c0_28, %c0_29] : memref<3x3x288x128xbf16, #tpu.memory_space<vmem>>, vector<1x1x288x128xbf16>
    %21 = vector.shape_cast %20 : vector<1x1x288x128xbf16> to vector<288x128xbf16>
    %cst_30 = arith.constant dense<0.000000e+00> : vector<64x128xf32>
    %22 = tpu.matmul %19, %21, %cst_30 {dimension_numbers = #tpu.dot_dimension_numbers<[1], [0], [0], [1], [0, 0, 1, 1], [], []>} : vector<64x288xbf16>, vector<288x128xbf16>, vector<64x128xf32> -> vector<64x128xf32>
    %23 = arith.addf %17, %22 : vector<64x128xf32>
    %c1_31 = arith.constant 1 : index
    %c0_32 = arith.constant 0 : index
    %c0_33 = arith.constant 0 : index
    %24 = vector.load %arg9[%c1_31, %c0_32, %c0_33] : memref<6x18x288xbf16, #tpu.memory_space<vmem>>, vector<4x16x288xbf16>
    %25 = vector.shape_cast %24 : vector<4x16x288xbf16> to vector<64x288xbf16>
    %c1_34 = arith.constant 1 : index
    %c0_35 = arith.constant 0 : index
    %c0_36 = arith.constant 0 : index
    %c0_37 = arith.constant 0 : index
    %26 = vector.load %arg2[%c1_34, %c0_35, %c0_36, %c0_37] : memref<3x3x288x128xbf16, #tpu.memory_space<vmem>>, vector<1x1x288x128xbf16>
    %27 = vector.shape_cast %26 : vector<1x1x288x128xbf16> to vector<288x128xbf16>
    %cst_38 = arith.constant dense<0.000000e+00> : vector<64x128xf32>
    %28 = tpu.matmul %25, %27, %cst_38 {dimension_numbers = #tpu.dot_dimension_numbers<[1], [0], [0], [1], [0, 0, 1, 1], [], []>} : vector<64x288xbf16>, vector<288x128xbf16>, vector<64x128xf32> -> vector<64x128xf32>
    %29 = arith.addf %23, %28 : vector<64x128xf32>
    %c1_39 = arith.constant 1 : index
    %c1_40 = arith.constant 1 : index
    %c0_41 = arith.constant 0 : index
    %30 = vector.load %arg9[%c1_39, %c1_40, %c0_41] : memref<6x18x288xbf16, #tpu.memory_space<vmem>>, vector<4x16x288xbf16>
    %31 = vector.shape_cast %30 : vector<4x16x288xbf16> to vector<64x288xbf16>
    %c1_42 = arith.constant 1 : index
    %c1_43 = arith.constant 1 : index
    %c0_44 = arith.constant 0 : index
    %c0_45 = arith.constant 0 : index
    %32 = vector.load %arg2[%c1_42, %c1_43, %c0_44, %c0_45] : memref<3x3x288x128xbf16, #tpu.memory_space<vmem>>, vector<1x1x288x128xbf16>
    %33 = vector.shape_cast %32 : vector<1x1x288x128xbf16> to vector<288x128xbf16>
    %cst_46 = arith.constant dense<0.000000e+00> : vector<64x128xf32>
    %34 = tpu.matmul %31, %33, %cst_46 {dimension_numbers = #tpu.dot_dimension_numbers<[1], [0], [0], [1], [0, 0, 1, 1], [], []>} : vector<64x288xbf16>, vector<288x128xbf16>, vector<64x128xf32> -> vector<64x128xf32>
    %35 = arith.addf %29, %34 : vector<64x128xf32>
    %c1_47 = arith.constant 1 : index
    %c2_48 = arith.constant 2 : index
    %c0_49 = arith.constant 0 : index
    %36 = vector.load %arg9[%c1_47, %c2_48, %c0_49] : memref<6x18x288xbf16, #tpu.memory_space<vmem>>, vector<4x16x288xbf16>
    %37 = vector.shape_cast %36 : vector<4x16x288xbf16> to vector<64x288xbf16>
    %c1_50 = arith.constant 1 : index
    %c2_51 = arith.constant 2 : index
    %c0_52 = arith.constant 0 : index
    %c0_53 = arith.constant 0 : index
    %38 = vector.load %arg2[%c1_50, %c2_51, %c0_52, %c0_53] : memref<3x3x288x128xbf16, #tpu.memory_space<vmem>>, vector<1x1x288x128xbf16>
    %39 = vector.shape_cast %38 : vector<1x1x288x128xbf16> to vector<288x128xbf16>
    %cst_54 = arith.constant dense<0.000000e+00> : vector<64x128xf32>
    %40 = tpu.matmul %37, %39, %cst_54 {dimension_numbers = #tpu.dot_dimension_numbers<[1], [0], [0], [1], [0, 0, 1, 1], [], []>} : vector<64x288xbf16>, vector<288x128xbf16>, vector<64x128xf32> -> vector<64x128xf32>
    %41 = arith.addf %35, %40 : vector<64x128xf32>
    %c2_55 = arith.constant 2 : index
    %c0_56 = arith.constant 0 : index
    %c0_57 = arith.constant 0 : index
    %42 = vector.load %arg9[%c2_55, %c0_56, %c0_57] : memref<6x18x288xbf16, #tpu.memory_space<vmem>>, vector<4x16x288xbf16>
    %43 = vector.shape_cast %42 : vector<4x16x288xbf16> to vector<64x288xbf16>
    %c2_58 = arith.constant 2 : index
    %c0_59 = arith.constant 0 : index
    %c0_60 = arith.constant 0 : index
    %c0_61 = arith.constant 0 : index
    %44 = vector.load %arg2[%c2_58, %c0_59, %c0_60, %c0_61] : memref<3x3x288x128xbf16, #tpu.memory_space<vmem>>, vector<1x1x288x128xbf16>
    %45 = vector.shape_cast %44 : vector<1x1x288x128xbf16> to vector<288x128xbf16>
    %cst_62 = arith.constant dense<0.000000e+00> : vector<64x128xf32>
    %46 = tpu.matmul %43, %45, %cst_62 {dimension_numbers = #tpu.dot_dimension_numbers<[1], [0], [0], [1], [0, 0, 1, 1], [], []>} : vector<64x288xbf16>, vector<288x128xbf16>, vector<64x128xf32> -> vector<64x128xf32>
    %47 = arith.addf %41, %46 : vector<64x128xf32>
    %c2_63 = arith.constant 2 : index
    %c1_64 = arith.constant 1 : index
    %c0_65 = arith.constant 0 : index
    %48 = vector.load %arg9[%c2_63, %c1_64, %c0_65] : memref<6x18x288xbf16, #tpu.memory_space<vmem>>, vector<4x16x288xbf16>
    %49 = vector.shape_cast %48 : vector<4x16x288xbf16> to vector<64x288xbf16>
    %c2_66 = arith.constant 2 : index
    %c1_67 = arith.constant 1 : index
    %c0_68 = arith.constant 0 : index
    %c0_69 = arith.constant 0 : index
    %50 = vector.load %arg2[%c2_66, %c1_67, %c0_68, %c0_69] : memref<3x3x288x128xbf16, #tpu.memory_space<vmem>>, vector<1x1x288x128xbf16>
    %51 = vector.shape_cast %50 : vector<1x1x288x128xbf16> to vector<288x128xbf16>
    %cst_70 = arith.constant dense<0.000000e+00> : vector<64x128xf32>
    %52 = tpu.matmul %49, %51, %cst_70 {dimension_numbers = #tpu.dot_dimension_numbers<[1], [0], [0], [1], [0, 0, 1, 1], [], []>} : vector<64x288xbf16>, vector<288x128xbf16>, vector<64x128xf32> -> vector<64x128xf32>
    %53 = arith.addf %47, %52 : vector<64x128xf32>
    %c2_71 = arith.constant 2 : index
    %c2_72 = arith.constant 2 : index
    %c0_73 = arith.constant 0 : index
    %54 = vector.load %arg9[%c2_71, %c2_72, %c0_73] : memref<6x18x288xbf16, #tpu.memory_space<vmem>>, vector<4x16x288xbf16>
    %55 = vector.shape_cast %54 : vector<4x16x288xbf16> to vector<64x288xbf16>
    %c2_74 = arith.constant 2 : index
    %c2_75 = arith.constant 2 : index
    %c0_76 = arith.constant 0 : index
    %c0_77 = arith.constant 0 : index
    %56 = vector.load %arg2[%c2_74, %c2_75, %c0_76, %c0_77] : memref<3x3x288x128xbf16, #tpu.memory_space<vmem>>, vector<1x1x288x128xbf16>
    %57 = vector.shape_cast %56 : vector<1x1x288x128xbf16> to vector<288x128xbf16>
    %cst_78 = arith.constant dense<0.000000e+00> : vector<64x128xf32>
    %58 = tpu.matmul %55, %57, %cst_78 {dimension_numbers = #tpu.dot_dimension_numbers<[1], [0], [0], [1], [0, 0, 1, 1], [], []>} : vector<64x288xbf16>, vector<288x128xbf16>, vector<64x128xf32> -> vector<64x128xf32>
    %59 = arith.addf %53, %58 : vector<64x128xf32>
    %c0_79 = arith.constant 0 : index
    %c0_80 = arith.constant 0 : index
    %60 = vector.load %arg3[%c0_79, %c0_80] : memref<1x128xf32, #tpu.memory_space<vmem>>, vector<1x128xf32>
    %61 = vector.broadcast %60 : vector<1x128xf32> to vector<64x128xf32>
    %62 = arith.mulf %59, %61 : vector<64x128xf32>
    %c0_81 = arith.constant 0 : index
    %c0_82 = arith.constant 0 : index
    %63 = vector.load %arg4[%c0_81, %c0_82] : memref<1x128xf32, #tpu.memory_space<vmem>>, vector<1x128xf32>
    %64 = vector.broadcast %63 : vector<1x128xf32> to vector<64x128xf32>
    %65 = arith.addf %62, %64 : vector<64x128xf32>
    %cst_83 = arith.constant 0.000000e+00 : f32
    %66 = vector.broadcast %cst_83 : f32 to vector<64x128xf32>
    %67 = arith.maximumf %65, %66 : vector<64x128xf32>
    %cst_84 = arith.constant 0.000000e+00 : bf16
    %68 = vector.broadcast %cst_84 : bf16 to vector<6x18x144xbf16>
    %c0_85 = arith.constant 0 : index
    %c0_86 = arith.constant 0 : index
    %c0_87 = arith.constant 0 : index
    %69 = vector.load %arg10[%c0_85, %c0_86, %c0_87] : memref<6x18x144xbf16, #tpu.memory_space<vmem>>, vector<6x18x144xbf16>
    tpu.vector_store %arg10[%c0_85, %c0_86, %c0_87], %68 {strides = array<i32>} : memref<6x18x144xbf16, #tpu.memory_space<vmem>>, vector<6x18x144xbf16>,
    %70 = vector.shape_cast %67 : vector<64x128xf32> to vector<4x16x128xf32>
    %71 = arith.truncf %70 : vector<4x16x128xf32> to vector<4x16x128xbf16>
    %c1_88 = arith.constant 1 : index
    %c1_89 = arith.constant 1 : index
    %c8 = arith.constant 8 : index
    %72 = vector.load %arg10[%c1_88, %c1_89, %c8] : memref<6x18x144xbf16, #tpu.memory_space<vmem>>, vector<4x16x128xbf16>
    tpu.vector_store %arg10[%c1_88, %c1_89, %c8], %71 {strides = array<i32>} : memref<6x18x144xbf16, #tpu.memory_space<vmem>>, vector<4x16x128xbf16>,
    %cst_90 = arith.constant 0.000000e+00 : f32
    %73 = vector.broadcast %cst_90 : f32 to vector<64x128xf32>
    %c0_91 = arith.constant 0 : index
    %c0_92 = arith.constant 0 : index
    %c0_93 = arith.constant 0 : index
    %74 = vector.load %arg10[%c0_91, %c0_92, %c0_93] : memref<6x18x144xbf16, #tpu.memory_space<vmem>>, vector<4x16x144xbf16>
    %75 = vector.shape_cast %74 : vector<4x16x144xbf16> to vector<64x144xbf16>
    %c0_94 = arith.constant 0 : index
    %c0_95 = arith.constant 0 : index
    %c0_96 = arith.constant 0 : index
    %c0_97 = arith.constant 0 : index
    %76 = vector.load %arg5[%c0_94, %c0_95, %c0_96, %c0_97] : memref<3x3x144x128xbf16, #tpu.memory_space<vmem>>, vector<1x1x144x128xbf16>
    %77 = vector.shape_cast %76 : vector<1x1x144x128xbf16> to vector<144x128xbf16>
    %cst_98 = arith.constant dense<0.000000e+00> : vector<64x128xf32>
    %78 = tpu.matmul %75, %77, %cst_98 {dimension_numbers = #tpu.dot_dimension_numbers<[1], [0], [0], [1], [0, 0, 1, 1], [], []>} : vector<64x144xbf16>, vector<144x128xbf16>, vector<64x128xf32> -> vector<64x128xf32>
    %79 = arith.addf %73, %78 : vector<64x128xf32>
    %c0_99 = arith.constant 0 : index
    %c1_100 = arith.constant 1 : index
    %c0_101 = arith.constant 0 : index
    %80 = vector.load %arg10[%c0_99, %c1_100, %c0_101] : memref<6x18x144xbf16, #tpu.memory_space<vmem>>, vector<4x16x144xbf16>
    %81 = vector.shape_cast %80 : vector<4x16x144xbf16> to vector<64x144xbf16>
    %c0_102 = arith.constant 0 : index
    %c1_103 = arith.constant 1 : index
    %c0_104 = arith.constant 0 : index
    %c0_105 = arith.constant 0 : index
    %82 = vector.load %arg5[%c0_102, %c1_103, %c0_104, %c0_105] : memref<3x3x144x128xbf16, #tpu.memory_space<vmem>>, vector<1x1x144x128xbf16>
    %83 = vector.shape_cast %82 : vector<1x1x144x128xbf16> to vector<144x128xbf16>
    %cst_106 = arith.constant dense<0.000000e+00> : vector<64x128xf32>
    %84 = tpu.matmul %81, %83, %cst_106 {dimension_numbers = #tpu.dot_dimension_numbers<[1], [0], [0], [1], [0, 0, 1, 1], [], []>} : vector<64x144xbf16>, vector<144x128xbf16>, vector<64x128xf32> -> vector<64x128xf32>
    %85 = arith.addf %79, %84 : vector<64x128xf32>
    %c0_107 = arith.constant 0 : index
    %c2_108 = arith.constant 2 : index
    %c0_109 = arith.constant 0 : index
    %86 = vector.load %arg10[%c0_107, %c2_108, %c0_109] : memref<6x18x144xbf16, #tpu.memory_space<vmem>>, vector<4x16x144xbf16>
    %87 = vector.shape_cast %86 : vector<4x16x144xbf16> to vector<64x144xbf16>
    %c0_110 = arith.constant 0 : index
    %c2_111 = arith.constant 2 : index
    %c0_112 = arith.constant 0 : index
    %c0_113 = arith.constant 0 : index
    %88 = vector.load %arg5[%c0_110, %c2_111, %c0_112, %c0_113] : memref<3x3x144x128xbf16, #tpu.memory_space<vmem>>, vector<1x1x144x128xbf16>
    %89 = vector.shape_cast %88 : vector<1x1x144x128xbf16> to vector<144x128xbf16>
    %cst_114 = arith.constant dense<0.000000e+00> : vector<64x128xf32>
    %90 = tpu.matmul %87, %89, %cst_114 {dimension_numbers = #tpu.dot_dimension_numbers<[1], [0], [0], [1], [0, 0, 1, 1], [], []>} : vector<64x144xbf16>, vector<144x128xbf16>, vector<64x128xf32> -> vector<64x128xf32>
    %91 = arith.addf %85, %90 : vector<64x128xf32>
    %c1_115 = arith.constant 1 : index
    %c0_116 = arith.constant 0 : index
    %c0_117 = arith.constant 0 : index
    %92 = vector.load %arg10[%c1_115, %c0_116, %c0_117] : memref<6x18x144xbf16, #tpu.memory_space<vmem>>, vector<4x16x144xbf16>
    %93 = vector.shape_cast %92 : vector<4x16x144xbf16> to vector<64x144xbf16>
    %c1_118 = arith.constant 1 : index
    %c0_119 = arith.constant 0 : index
    %c0_120 = arith.constant 0 : index
    %c0_121 = arith.constant 0 : index
    %94 = vector.load %arg5[%c1_118, %c0_119, %c0_120, %c0_121] : memref<3x3x144x128xbf16, #tpu.memory_space<vmem>>, vector<1x1x144x128xbf16>
    %95 = vector.shape_cast %94 : vector<1x1x144x128xbf16> to vector<144x128xbf16>
    %cst_122 = arith.constant dense<0.000000e+00> : vector<64x128xf32>
    %96 = tpu.matmul %93, %95, %cst_122 {dimension_numbers = #tpu.dot_dimension_numbers<[1], [0], [0], [1], [0, 0, 1, 1], [], []>} : vector<64x144xbf16>, vector<144x128xbf16>, vector<64x128xf32> -> vector<64x128xf32>
    %97 = arith.addf %91, %96 : vector<64x128xf32>
    %c1_123 = arith.constant 1 : index
    %c1_124 = arith.constant 1 : index
    %c0_125 = arith.constant 0 : index
    %98 = vector.load %arg10[%c1_123, %c1_124, %c0_125] : memref<6x18x144xbf16, #tpu.memory_space<vmem>>, vector<4x16x144xbf16>
    %99 = vector.shape_cast %98 : vector<4x16x144xbf16> to vector<64x144xbf16>
    %c1_126 = arith.constant 1 : index
    %c1_127 = arith.constant 1 : index
    %c0_128 = arith.constant 0 : index
    %c0_129 = arith.constant 0 : index
    %100 = vector.load %arg5[%c1_126, %c1_127, %c0_128, %c0_129] : memref<3x3x144x128xbf16, #tpu.memory_space<vmem>>, vector<1x1x144x128xbf16>
    %101 = vector.shape_cast %100 : vector<1x1x144x128xbf16> to vector<144x128xbf16>
    %cst_130 = arith.constant dense<0.000000e+00> : vector<64x128xf32>
    %102 = tpu.matmul %99, %101, %cst_130 {dimension_numbers = #tpu.dot_dimension_numbers<[1], [0], [0], [1], [0, 0, 1, 1], [], []>} : vector<64x144xbf16>, vector<144x128xbf16>, vector<64x128xf32> -> vector<64x128xf32>
    %103 = arith.addf %97, %102 : vector<64x128xf32>
    %c1_131 = arith.constant 1 : index
    %c2_132 = arith.constant 2 : index
    %c0_133 = arith.constant 0 : index
    %104 = vector.load %arg10[%c1_131, %c2_132, %c0_133] : memref<6x18x144xbf16, #tpu.memory_space<vmem>>, vector<4x16x144xbf16>
    %105 = vector.shape_cast %104 : vector<4x16x144xbf16> to vector<64x144xbf16>
    %c1_134 = arith.constant 1 : index
    %c2_135 = arith.constant 2 : index
    %c0_136 = arith.constant 0 : index
    %c0_137 = arith.constant 0 : index
    %106 = vector.load %arg5[%c1_134, %c2_135, %c0_136, %c0_137] : memref<3x3x144x128xbf16, #tpu.memory_space<vmem>>, vector<1x1x144x128xbf16>
    %107 = vector.shape_cast %106 : vector<1x1x144x128xbf16> to vector<144x128xbf16>
    %cst_138 = arith.constant dense<0.000000e+00> : vector<64x128xf32>
    %108 = tpu.matmul %105, %107, %cst_138 {dimension_numbers = #tpu.dot_dimension_numbers<[1], [0], [0], [1], [0, 0, 1, 1], [], []>} : vector<64x144xbf16>, vector<144x128xbf16>, vector<64x128xf32> -> vector<64x128xf32>
    %109 = arith.addf %103, %108 : vector<64x128xf32>
    %c2_139 = arith.constant 2 : index
    %c0_140 = arith.constant 0 : index
    %c0_141 = arith.constant 0 : index
    %110 = vector.load %arg10[%c2_139, %c0_140, %c0_141] : memref<6x18x144xbf16, #tpu.memory_space<vmem>>, vector<4x16x144xbf16>
    %111 = vector.shape_cast %110 : vector<4x16x144xbf16> to vector<64x144xbf16>
    %c2_142 = arith.constant 2 : index
    %c0_143 = arith.constant 0 : index
    %c0_144 = arith.constant 0 : index
    %c0_145 = arith.constant 0 : index
    %112 = vector.load %arg5[%c2_142, %c0_143, %c0_144, %c0_145] : memref<3x3x144x128xbf16, #tpu.memory_space<vmem>>, vector<1x1x144x128xbf16>
    %113 = vector.shape_cast %112 : vector<1x1x144x128xbf16> to vector<144x128xbf16>
    %cst_146 = arith.constant dense<0.000000e+00> : vector<64x128xf32>
    %114 = tpu.matmul %111, %113, %cst_146 {dimension_numbers = #tpu.dot_dimension_numbers<[1], [0], [0], [1], [0, 0, 1, 1], [], []>} : vector<64x144xbf16>, vector<144x128xbf16>, vector<64x128xf32> -> vector<64x128xf32>
    %115 = arith.addf %109, %114 : vector<64x128xf32>
    %c2_147 = arith.constant 2 : index
    %c1_148 = arith.constant 1 : index
    %c0_149 = arith.constant 0 : index
    %116 = vector.load %arg10[%c2_147, %c1_148, %c0_149] : memref<6x18x144xbf16, #tpu.memory_space<vmem>>, vector<4x16x144xbf16>
    %117 = vector.shape_cast %116 : vector<4x16x144xbf16> to vector<64x144xbf16>
    %c2_150 = arith.constant 2 : index
    %c1_151 = arith.constant 1 : index
    %c0_152 = arith.constant 0 : index
    %c0_153 = arith.constant 0 : index
    %118 = vector.load %arg5[%c2_150, %c1_151, %c0_152, %c0_153] : memref<3x3x144x128xbf16, #tpu.memory_space<vmem>>, vector<1x1x144x128xbf16>
    %119 = vector.shape_cast %118 : vector<1x1x144x128xbf16> to vector<144x128xbf16>
    %cst_154 = arith.constant dense<0.000000e+00> : vector<64x128xf32>
    %120 = tpu.matmul %117, %119, %cst_154 {dimension_numbers = #tpu.dot_dimension_numbers<[1], [0], [0], [1], [0, 0, 1, 1], [], []>} : vector<64x144xbf16>, vector<144x128xbf16>, vector<64x128xf32> -> vector<64x128xf32>
    %121 = arith.addf %115, %120 : vector<64x128xf32>
    %c2_155 = arith.constant 2 : index
    %c2_156 = arith.constant 2 : index
    %c0_157 = arith.constant 0 : index
    %122 = vector.load %arg10[%c2_155, %c2_156, %c0_157] : memref<6x18x144xbf16, #tpu.memory_space<vmem>>, vector<4x16x144xbf16>
    %123 = vector.shape_cast %122 : vector<4x16x144xbf16> to vector<64x144xbf16>
    %c2_158 = arith.constant 2 : index
    %c2_159 = arith.constant 2 : index
    %c0_160 = arith.constant 0 : index
    %c0_161 = arith.constant 0 : index
    %124 = vector.load %arg5[%c2_158, %c2_159, %c0_160, %c0_161] : memref<3x3x144x128xbf16, #tpu.memory_space<vmem>>, vector<1x1x144x128xbf16>
    %125 = vector.shape_cast %124 : vector<1x1x144x128xbf16> to vector<144x128xbf16>
    %cst_162 = arith.constant dense<0.000000e+00> : vector<64x128xf32>
    %126 = tpu.matmul %123, %125, %cst_162 {dimension_numbers = #tpu.dot_dimension_numbers<[1], [0], [0], [1], [0, 0, 1, 1], [], []>} : vector<64x144xbf16>, vector<144x128xbf16>, vector<64x128xf32> -> vector<64x128xf32>
    %127 = arith.addf %121, %126 : vector<64x128xf32>
    %c0_163 = arith.constant 0 : index
    %c0_164 = arith.constant 0 : index
    %128 = vector.load %arg6[%c0_163, %c0_164] : memref<1x128xf32, #tpu.memory_space<vmem>>, vector<1x128xf32>
    %129 = vector.broadcast %128 : vector<1x128xf32> to vector<64x128xf32>
    %130 = arith.mulf %127, %129 : vector<64x128xf32>
    %c0_165 = arith.constant 0 : index
    %c0_166 = arith.constant 0 : index
    %131 = vector.load %arg7[%c0_165, %c0_166] : memref<1x128xf32, #tpu.memory_space<vmem>>, vector<1x128xf32>
    %132 = vector.broadcast %131 : vector<1x128xf32> to vector<64x128xf32>
    %133 = arith.addf %130, %132 : vector<64x128xf32>
    %cst_167 = arith.constant 0.000000e+00 : f32
    %134 = vector.broadcast %cst_167 : f32 to vector<64x128xf32>
    %135 = arith.maximumf %133, %134 : vector<64x128xf32>
    %136 = vector.shape_cast %135 : vector<64x128xf32> to vector<4x16x128xf32>
    %c0_168 = arith.constant 0 : index
    %c0_169 = arith.constant 0 : index
    %c0_170 = arith.constant 0 : index
    %c0_171 = arith.constant 0 : index
    %137 = vector.load %arg8[%c0_168, %c0_169, %c0_170, %c0_171] : memref<1x4x16x128xf32, #tpu.memory_space<vmem>>, vector<1x4x16x128xf32>
    %138 = vector.shape_cast %137 : vector<1x4x16x128xf32> to vector<4x16x128xf32>
    %139 = vector.shape_cast %136 : vector<4x16x128xf32> to vector<1x4x16x128xf32>
    tpu.vector_store %arg8[%c0_168, %c0_169, %c0_170, %c0_171], %139 {strides = array<i32>} : memref<1x4x16x128xf32, #tpu.memory_space<vmem>>, vector<1x4x16x128xf32>,
    return
  }
  func.func @transform_0(%arg0: i32) -> (i32, i32, i32, i32) {
    %c0_i32 = arith.constant 0 : i32
    %c0_i32_0 = arith.constant 0 : i32
    %c0_i32_1 = arith.constant 0 : i32
    %c0_i32_2 = arith.constant 0 : i32
    return %arg0, %c0_i32, %c0_i32_0, %c0_i32_1 : i32, i32, i32, i32
  }
  func.func @transform_1(%arg0: i32) -> (i32, i32, i32, i32) {
    %c0_i32 = arith.constant 0 : i32
    %c0_i32_0 = arith.constant 0 : i32
    %c0_i32_1 = arith.constant 0 : i32
    %c0_i32_2 = arith.constant 0 : i32
    %c0_i32_3 = arith.constant 0 : i32
    return %c0_i32, %c0_i32_0, %c0_i32_1, %c0_i32_2 : i32, i32, i32, i32
  }
  func.func @transform_2(%arg0: i32) -> (i32, i32) {
    %c0_i32 = arith.constant 0 : i32
    %c0_i32_0 = arith.constant 0 : i32
    %c0_i32_1 = arith.constant 0 : i32
    return %c0_i32, %c0_i32_0 : i32, i32
  }
  func.func @transform_3(%arg0: i32) -> (i32, i32) {
    %c0_i32 = arith.constant 0 : i32
    %c0_i32_0 = arith.constant 0 : i32
    %c0_i32_1 = arith.constant 0 : i32
    return %c0_i32, %c0_i32_0 : i32, i32
  }
  func.func @transform_4(%arg0: i32) -> (i32, i32, i32, i32) {
    %c0_i32 = arith.constant 0 : i32
    %c0_i32_0 = arith.constant 0 : i32
    %c0_i32_1 = arith.constant 0 : i32
    %c0_i32_2 = arith.constant 0 : i32
    %c0_i32_3 = arith.constant 0 : i32
    return %c0_i32, %c0_i32_0, %c0_i32_1, %c0_i32_2 : i32, i32, i32, i32
  }
  func.func @transform_5(%arg0: i32) -> (i32, i32) {
    %c0_i32 = arith.constant 0 : i32
    %c0_i32_0 = arith.constant 0 : i32
    %c0_i32_1 = arith.constant 0 : i32
    return %c0_i32, %c0_i32_0 : i32, i32
  }
  func.func @transform_6(%arg0: i32) -> (i32, i32) {
    %c0_i32 = arith.constant 0 : i32
    %c0_i32_0 = arith.constant 0 : i32
    %c0_i32_1 = arith.constant 0 : i32
    return %c0_i32, %c0_i32_0 : i32, i32
  }
  func.func @transform_7(%arg0: i32) -> (i32, i32, i32, i32) {
    %c0_i32 = arith.constant 0 : i32
    %c0_i32_0 = arith.constant 0 : i32
    %c0_i32_1 = arith.constant 0 : i32
    %c0_i32_2 = arith.constant 0 : i32
    return %arg0, %c0_i32, %c0_i32_0, %c0_i32_1 : i32, i32, i32, i32
  }
}

</mosaic_0001>

<llo_original>
// kernel: tpu_custom_call.1
$region0: #{tpu_custom_call.1}
  #allocation0 [shape = 'u32[]', space=smem, size = 0x4, offset = 0x4, fixed_abs, tag = 'smem constant byte address 0x4 - core index']
  #allocation1 [shape = 'u32[144,128]{1,0:T(1,128)}', space=vmem, size = 0x12000, scoped, tag = 'internal scratch']
  #allocation2 [shape = 'bf16[6,18,288]{2,1,0:T(8,128)(2,1)}', space=vmem, size = 0x1b000, scoped, tag = 'scratch operand']
  #allocation3 [shape = 'bf16[6,18,144]{2,1,0:T(8,128)(2,1)}', space=vmem, size = 0x12000, scoped, tag = 'scratch operand']
  %s0 = inlined_call_operand.hbm [shape: bf16[2,4,16,256], index: 0, kind: input, shape index: {}]
  %s1 = inlined_call_operand.hbm [shape: bf16[3,3,288,128], index: 1, kind: input, shape index: {}]
  %s2 = inlined_call_operand.vmem [shape: f32[1,128], index: 2, kind: input, shape index: {}]
  %s3 = inlined_call_operand.vmem [shape: f32[1,128], index: 3, kind: input, shape index: {}]
  %s4 = inlined_call_operand.hbm [shape: bf16[3,3,144,128], index: 4, kind: input, shape index: {}]
  %s5 = inlined_call_operand.vmem [shape: f32[1,128], index: 5, kind: input, shape index: {}]
  %s6 = inlined_call_operand.vmem [shape: f32[1,128], index: 6, kind: input, shape index: {}]
  %s7 = inlined_call_operand.hbm [shape: f32[2,4,16,128], index: 7, kind: output, shape index: {}]
  %s8 = sld [smem:[#allocation0]]
  $region73: #{tpu_custom_call.1} parent=0
    _
  %s10 = ssub.s32 1, %s8
  %s11 = scalar_select 0, %s10, %s8
  $region1: #{tpu_custom_call.1} parent=0
    #allocation4 [shape = 'u8[65536]{0}', space=vmem, size = 0x10000, scoped, tag = 'input window, operand 0']
    #allocation5 [shape = 's32[2]{0}', space=sflag, size = 0x8, scoped, tag = 'scoped memory for tpu_custom_call.1']
    #allocation6 [shape = 's32[2]{0}', space=sflag, size = 0x8, scoped, tag = 'scoped memory for tpu_custom_call.1']
    #allocation7 [shape = 'u8[663552]{0}', space=vmem, size = 0xa2000, scoped, tag = 'input window, operand 1, single buffered']
    #allocation8 [shape = 's32[1]{0}', space=sflag, size = 0x4, scoped, tag = 'scoped memory for tpu_custom_call.1']
    #allocation9 [shape = 'u8[331776]{0}', space=vmem, size = 0x51000, scoped, tag = 'input window, operand 4, single buffered']
    #allocation10 [shape = 'u8[65536]{0}', space=vmem, size = 0x10000, scoped, tag = 'output window, operand 0']
    %12 = vsyncpa [#allocation5], 0
    %s13 = scalar_lea.sflag [#allocation5], 1
    %14 = vsyncpa %s13, 0
    %15 = vsyncpa [#allocation8], 0
    %16 = vsyncpa [#allocation6], 0
    %s17 = scalar_lea.sflag [#allocation6], 1
    %18 = vsyncpa %s17, 0
    loop: start=0, step=1, limit=4
    $region2: #{tpu_custom_call.1} parent=1 // loop_pre_header
      _
    $region3: #{tpu_custom_call.1} parent=1 // loop_header
      %s20 = sphi 0, %s24
      %p21 = scmp.ge.s32.totalorder %s20, 4
      %s30 = sphi 0, %s32
      %s33 = sphi 0, %s30
      %s34 = sphi 0, %s33
      %s50 = sphi 0, %s34
      %s54 = sphi 0, %s54
      %s56 = sphi 0, %s54
      %s57 = sphi 0, %s56
      %s71 = sphi 0, %s57
      %s75 = sphi 0, %s75
      %s77 = sphi 0, %s75
      %s78 = sphi 0, %s77
      %s92 = sphi 0, %s78
      %s96 = sphi 0, %s96
      %s98 = sphi 0, %s96
      %s99 = sphi 0, %s98
      %s113 = sphi 0, %s99
      %s117 = sphi 0, %s117
      %s119 = sphi 0, %s117
      %s120 = sphi 0, %s119
      %s134 = sphi 0, %s120
      %s138 = sphi 0, %s138
      %s140 = sphi 0, %s138
      %s141 = sphi 0, %s140
      %s155 = sphi 0, %s141
      %s159 = sphi 0, %s159
      %s161 = sphi 0, %s159
      %s162 = sphi 0, %s161
      %s176 = sphi 0, %s162
      %s182 = sphi 0, %s184
      %s185 = sphi 0, %s182
      %s186 = sphi 0, %s185
      %s202 = sphi 0, %s186
    $region4: #{tpu_custom_call.1} parent=1 // loop_header_branch
      %23 = sbr.rel (%p21) target = $region8
    $region5: #{tpu_custom_call.1} parent=1 // loop_body
      %s25 = ssub.s32 %s20, 1
      %s26 = ssub.s32 %s20, 2
      %s27 = sadd.s32 %s20, 1
      %s28 = ssub.s32 %s20, %s27
      %p29 = scmp.eq.s32.totalorder %s28, 0
      %s31 = sadd.s32 %s30, 1
      %s32 = scalar_select %p29, %s30, %s31
      %p35 = pneg %p29
      %p36 = scmp.eq.s32.totalorder %s20, 1
      %p37 = por %p35, %p36
      %p38 = scmp.ne.s32.totalorder %s30, %s33
      %p39 = scmp.eq.s32.totalorder %s20, 0
      %p40 = por %p38, %p39
      %p41 = scmp.ne.s32.totalorder %s30, %s33
      %p42 = scmp.eq.s32.totalorder %s25, 1
      %p43 = por %p41, %p42
      %p44 = scmp.ne.s32.totalorder %s33, %s34
      %p45 = scmp.eq.s32.totalorder %s25, 0
      %p46 = por %p44, %p45
      %p47 = scmp.ne.s32.totalorder %s33, %s34
      %p48 = scmp.eq.s32.totalorder %s26, 1
      %p49 = por %p47, %p48
      %p51 = scmp.ne.s32.totalorder %s34, %s50
      %p52 = scmp.eq.s32.totalorder %s26, 0
      %p53 = por %p51, %p52
      %s55 = sadd.s32 %s54, 1
      %p58 = scmp.eq.s32.totalorder %s20, 1
      %p59 = scmp.ne.s32.totalorder %s54, %s56
      %p60 = scmp.eq.s32.totalorder %s20, 0
      %p61 = por %p59, %p60
      %p62 = scmp.ne.s32.totalorder %s54, %s56
      %p63 = scmp.eq.s32.totalorder %s25, 1
      %p64 = por %p62, %p63
      %p65 = scmp.ne.s32.totalorder %s56, %s57
      %p66 = scmp.eq.s32.totalorder %s25, 0
      %p67 = por %p65, %p66
      %p68 = scmp.ne.s32.totalorder %s56, %s57
      %p69 = scmp.eq.s32.totalorder %s26, 1
      %p70 = por %p68, %p69
      %p72 = scmp.ne.s32.totalorder %s57, %s71
      %p73 = scmp.eq.s32.totalorder %s26, 0
      %p74 = por %p72, %p73
      %s76 = sadd.s32 %s75, 1
      %p79 = scmp.eq.s32.totalorder %s20, 1
      %p80 = scmp.ne.s32.totalorder %s75, %s77
      %p81 = scmp.eq.s32.totalorder %s20, 0
      %p82 = por %p80, %p81
      %p83 = scmp.ne.s32.totalorder %s75, %s77
      %p84 = scmp.eq.s32.totalorder %s25, 1
      %p85 = por %p83, %p84
      %p86 = scmp.ne.s32.totalorder %s77, %s78
      %p87 = scmp.eq.s32.totalorder %s25, 0
      %p88 = por %p86, %p87
      %p89 = scmp.ne.s32.totalorder %s77, %s78
      %p90 = scmp.eq.s32.totalorder %s26, 1
      %p91 = por %p89, %p90
      %p93 = scmp.ne.s32.totalorder %s78, %s92
      %p94 = scmp.eq.s32.totalorder %s26, 0
      %p95 = por %p93, %p94
      %s97 = sadd.s32 %s96, 1
      %p100 = scmp.eq.s32.totalorder %s20, 1
      %p101 = scmp.ne.s32.totalorder %s96, %s98
      %p102 = scmp.eq.s32.totalorder %s20, 0
      %p103 = por %p101, %p102
      %p104 = scmp.ne.s32.totalorder %s96, %s98
      %p105 = scmp.eq.s32.totalorder %s25, 1
      %p106 = por %p104, %p105
      %p107 = scmp.ne.s32.totalorder %s98, %s99
      %p108 = scmp.eq.s32.totalorder %s25, 0
      %p109 = por %p107, %p108
      %p110 = scmp.ne.s32.totalorder %s98, %s99
      %p111 = scmp.eq.s32.totalorder %s26, 1
      %p112 = por %p110, %p111
      %p114 = scmp.ne.s32.totalorder %s99, %s113
      %p115 = scmp.eq.s32.totalorder %s26, 0
      %p116 = por %p114, %p115
      %s118 = sadd.s32 %s117, 1
      %p121 = scmp.eq.s32.totalorder %s20, 1
      %p122 = scmp.ne.s32.totalorder %s117, %s119
      %p123 = scmp.eq.s32.totalorder %s20, 0
      %p124 = por %p122, %p123
      %p125 = scmp.ne.s32.totalorder %s117, %s119
      %p126 = scmp.eq.s32.totalorder %s25, 1
      %p127 = por %p125, %p126
      %p128 = scmp.ne.s32.totalorder %s119, %s120
      %p129 = scmp.eq.s32.totalorder %s25, 0
      %p130 = por %p128, %p129
      %p131 = scmp.ne.s32.totalorder %s119, %s120
      %p132 = scmp.eq.s32.totalorder %s26, 1
      %p133 = por %p131, %p132
      %p135 = scmp.ne.s32.totalorder %s120, %s134
      %p136 = scmp.eq.s32.totalorder %s26, 0
      %p137 = por %p135, %p136
      %s139 = sadd.s32 %s138, 1
      %p142 = scmp.eq.s32.totalorder %s20, 1
      %p143 = scmp.ne.s32.totalorder %s138, %s140
      %p144 = scmp.eq.s32.totalorder %s20, 0
      %p145 = por %p143, %p144
      %p146 = scmp.ne.s32.totalorder %s138, %s140
      %p147 = scmp.eq.s32.totalorder %s25, 1
      %p148 = por %p146, %p147
      %p149 = scmp.ne.s32.totalorder %s140, %s141
      %p150 = scmp.eq.s32.totalorder %s25, 0
      %p151 = por %p149, %p150
      %p152 = scmp.ne.s32.totalorder %s140, %s141
      %p153 = scmp.eq.s32.totalorder %s26, 1
      %p154 = por %p152, %p153
      %p156 = scmp.ne.s32.totalorder %s141, %s155
      %p157 = scmp.eq.s32.totalorder %s26, 0
      %p158 = por %p156, %p157
      %s160 = sadd.s32 %s159, 1
      %p163 = scmp.eq.s32.totalorder %s20, 1
      %p164 = scmp.ne.s32.totalorder %s159, %s161
      %p165 = scmp.eq.s32.totalorder %s20, 0
      %p166 = por %p164, %p165
      %p167 = scmp.ne.s32.totalorder %s159, %s161
      %p168 = scmp.eq.s32.totalorder %s25, 1
      %p169 = por %p167, %p168
      %p170 = scmp.ne.s32.totalorder %s161, %s162
      %p171 = scmp.eq.s32.totalorder %s25, 0
      %p172 = por %p170, %p171
      %p173 = scmp.ne.s32.totalorder %s161, %s162
      %p174 = scmp.eq.s32.totalorder %s26, 1
      %p175 = por %p173, %p174
      %p177 = scmp.ne.s32.totalorder %s162, %s176
      %p178 = scmp.eq.s32.totalorder %s26, 0
      %p179 = por %p177, %p178
      %s180 = ssub.s32 %s20, %s27
      %p181 = scmp.eq.s32.totalorder %s180, 0
      %s183 = sadd.s32 %s182, 1
      %s184 = scalar_select %p181, %s182, %s183
      %p187 = pneg %p181
      %p188 = scmp.eq.s32.totalorder %s20, 1
      %p189 = por %p187, %p188
      %p190 = scmp.ne.s32.totalorder %s182, %s185
      %p191 = scmp.eq.s32.totalorder %s20, 0
      %p192 = por %p190, %p191
      %p193 = scmp.ne.s32.totalorder %s182, %s185
      %p194 = scmp.eq.s32.totalorder %s25, 1
      %p195 = por %p193, %p194
      %p196 = scmp.ne.s32.totalorder %s185, %s186
      %p197 = scmp.eq.s32.totalorder %s25, 0
      %p198 = por %p196, %p197
      %p199 = scmp.ne.s32.totalorder %s185, %s186
      %p200 = scmp.eq.s32.totalorder %s26, 1
      %p201 = por %p199, %p200
      %p203 = scmp.ne.s32.totalorder %s186, %s202
      %p204 = scmp.eq.s32.totalorder %s26, 0
      %p205 = por %p203, %p204
      %p206 = scmp.le.s32.totalorder 1, %s20
      %p207 = scmp.lt.s32.totalorder %s20, 3
      %p208 = pnand %p206, %p207
      %p209 = pneg %p208
      // Predicated region
      $region9: #{tpu_custom_call.1} parent=5 // pred_check
        _
      $region10: #{tpu_custom_call.1} parent=5 // pred_check_branch
        %211 = sbr.rel (%p208) target = $region12
      $region11: #{tpu_custom_call.1} parent=5 // pred_region
        %s212 = ssub.s32 %s20, 1
        // Predicated region
        $region13: #{tpu_custom_call.1} parent=11 // pred_check
          %p213 = pneg %p67
        $region14: #{tpu_custom_call.1} parent=11 // pred_check_branch
          %215 = sbr.rel (%p213) target = $region16
        $region15: #{tpu_custom_call.1} parent=11 // pred_region
          %s217 = ssub.s32 20736, 20736
          %218 = vsyncadd [#allocation8], %s217
          %s219 = sshll.u32 [#allocation7], 4
          %s220 = int_to_ptr.vmem [resolvable:$true] %s219
          %225 = dma.hbm_to_vmem [thread:$0]  %s1, 20736, %s220, [#allocation8], 64, 64, 4
        $region16: #{tpu_custom_call.1} parent=11 // pred_fallthru
          _
        // Predicated region
        $region17: #{tpu_custom_call.1} parent=11 // pred_check
          %p226 = pneg %p88
        $region18: #{tpu_custom_call.1} parent=11 // pred_check_branch
          %228 = sbr.rel (%p226) target = $region20
        $region19: #{tpu_custom_call.1} parent=11 // pred_region
          _
        $region20: #{tpu_custom_call.1} parent=11 // pred_fallthru
          _
        // Predicated region
        $region21: #{tpu_custom_call.1} parent=11 // pred_check
          %p229 = pneg %p109
        $region22: #{tpu_custom_call.1} parent=11 // pred_check_branch
          %231 = sbr.rel (%p229) target = $region24
        $region23: #{tpu_custom_call.1} parent=11 // pred_region
          _
        $region24: #{tpu_custom_call.1} parent=11 // pred_fallthru
          _
        // Predicated region
        $region25: #{tpu_custom_call.1} parent=11 // pred_check
          %p232 = pneg %p130
        $region26: #{tpu_custom_call.1} parent=11 // pred_check_branch
          %234 = sbr.rel (%p232) target = $region28
        $region27: #{tpu_custom_call.1} parent=11 // pred_region
          %s236 = ssub.s32 10368, 10368
          %237 = vsyncadd [#allocation8], %s236
          %s238 = sshll.u32 [#allocation9], 4
          %s239 = int_to_ptr.vmem [resolvable:$true] %s238
          %244 = dma.hbm_to_vmem [thread:$0]  %s4, 10368, %s239, [#allocation8], 64, 64, 4
        $region28: #{tpu_custom_call.1} parent=11 // pred_fallthru
          _
        // Predicated region
        $region29: #{tpu_custom_call.1} parent=11 // pred_check
          %p245 = pneg %p151
        $region30: #{tpu_custom_call.1} parent=11 // pred_check_branch
          %247 = sbr.rel (%p245) target = $region32
        $region31: #{tpu_custom_call.1} parent=11 // pred_region
          _
        $region32: #{tpu_custom_call.1} parent=11 // pred_fallthru
          _
        // Predicated region
        $region33: #{tpu_custom_call.1} parent=11 // pred_check
          %p248 = pneg %p172
        $region34: #{tpu_custom_call.1} parent=11 // pred_check_branch
          %250 = sbr.rel (%p248) target = $region36
        $region35: #{tpu_custom_call.1} parent=11 // pred_region
          _
        $region36: #{tpu_custom_call.1} parent=11 // pred_fallthru
          _
      $region12: #{tpu_custom_call.1} parent=5 // pred_fallthru
        _
      %p251 = scmp.lt.s32.totalorder %s20, 2
      // Predicated region
      $region37: #{tpu_custom_call.1} parent=5 // pred_check
        %p252 = pneg %p251
      $region38: #{tpu_custom_call.1} parent=5 // pred_check_branch
        %254 = sbr.rel (%p252) target = $region40
      $region39: #{tpu_custom_call.1} parent=5 // pred_region
        // Predicated region
        $region41: #{tpu_custom_call.1} parent=39 // pred_check
          %p255 = pneg %p40
        $region42: #{tpu_custom_call.1} parent=39 // pred_check_branch
          %257 = sbr.rel (%p255) target = $region44
        $region43: #{tpu_custom_call.1} parent=39 // pred_region
          %s258 = sand.u32 %s30, 1
          %s259 = scalar_lea.sflag [#allocation5], %s258
          %s260 = sand.u32 %s30, 1
          %s261 = smul.addr %s260, 64
          %s262 = scalar_lea.vmem [#allocation4], %s261
          %s264 = ssub.s32 1024, 1024
          %265 = vsyncadd %s259, %s264
          %s266 = smul.addr %s20, 16
          %s267 = smul.addr %s266, 64
          %s268 = scalar_lea.hbm %s0, %s267
          %s269 = sshll.u32 %s262, 4
          %s270 = int_to_ptr.vmem [resolvable:$true] %s269
          %275 = dma.hbm_to_vmem [thread:$0]  %s268, 1024, %s270, %s259, 128, 128, 8
        $region44: #{tpu_custom_call.1} parent=39 // pred_fallthru
          _
      $region40: #{tpu_custom_call.1} parent=5 // pred_fallthru
        _
      %p276 = scmp.le.s32.totalorder 1, %s20
      %p277 = scmp.lt.s32.totalorder %s20, 3
      %p278 = pnand %p276, %p277
      %p279 = pneg %p278
      // Predicated region
      $region45: #{tpu_custom_call.1} parent=5 // pred_check
        _
      $region46: #{tpu_custom_call.1} parent=5 // pred_check_branch
        %281 = sbr.rel (%p278) target = $region48
      $region47: #{tpu_custom_call.1} parent=5 // pred_region
        %s282 = ssub.s32 %s20, 1
        %s283 = sand.u32 %s33, 1
        %s284 = scalar_lea.sflag [#allocation5], %s283
        %s285 = sand.u32 %s33, 1
        %s286 = smul.addr %s285, 64
        %s287 = scalar_lea.vmem [#allocation4], %s286
        // Predicated region
        $region49: #{tpu_custom_call.1} parent=47 // pred_check
          %p288 = pneg %p46
        $region50: #{tpu_custom_call.1} parent=47 // pred_check_branch
          %290 = sbr.rel (%p288) target = $region52
        $region51: #{tpu_custom_call.1} parent=47 // pred_region
          %291 = dma.done %s284, 1024
        $region52: #{tpu_custom_call.1} parent=47 // pred_fallthru
          _
        // Predicated region
        $region53: #{tpu_custom_call.1} parent=47 // pred_check
          %p292 = pneg %p67
        $region54: #{tpu_custom_call.1} parent=47 // pred_check_branch
          %294 = sbr.rel (%p292) target = $region56
        $region55: #{tpu_custom_call.1} parent=47 // pred_region
          %295 = dma.done [#allocation8], 20736
        $region56: #{tpu_custom_call.1} parent=47 // pred_fallthru
          _
        // Predicated region
        $region57: #{tpu_custom_call.1} parent=47 // pred_check
          %p296 = pneg %p130
        $region58: #{tpu_custom_call.1} parent=47 // pred_check_branch
          %298 = sbr.rel (%p296) target = $region60
        $region59: #{tpu_custom_call.1} parent=47 // pred_region
          %299 = dma.done [#allocation8], 10368
        $region60: #{tpu_custom_call.1} parent=47 // pred_fallthru
          _
        %s300 = sand.u32 %s33, 1
        %s301 = scalar_lea.sflag [#allocation5], %s300
        %s302 = sand.u32 %s33, 1
        %s303 = smul.addr %s302, 64
        %s304 = scalar_lea.vmem [#allocation4], %s303
        %p305 = pneg %p46
        %p306 = pneg %p43
        %p307 = pneg %p67
        %p308 = pneg %p64
        %p309 = pneg %p88
        %p310 = pneg %p85
        %p311 = pneg %p109
        %p312 = pneg %p106
        %p313 = pneg %p130
        %p314 = pneg %p127
        %p315 = pneg %p151
        %p316 = pneg %p148
        %p317 = pneg %p172
        %p318 = pneg %p169
        %p319 = pneg %p198
        %p320 = pneg %p195
        %s321 = sand.u32 %s185, 1
        %s322 = scalar_lea.sflag [#allocation6], %s321
        %s323 = sand.u32 %s185, 1
        %s324 = smul.addr %s323, 64
        %s325 = scalar_lea.vmem [#allocation10], %s324
        %327 = vst [vmem:[#allocation2] sm:$0xff] 0
        %vm328 = vcmask 257024
        %329 = vst.msk [vmem:[#allocation2 + $0x8] sm:$0xf] %vm328, 0
        %330 = vst [vmem:[#allocation2 + $0xc] sm:$0xff] 0
        %331 = vst.msk [vmem:[#allocation2 + $0x14] sm:$0xf] %vm328, 0
        %332 = vst [vmem:[#allocation2 + $0x18] sm:$0x11] 0
        %vm333 = vcmask 253952
        %334 = vst.msk [vmem:[#allocation2 + $0x20] sm:$0x1] %vm333, 0
        %335 = vst [vmem:[#allocation2 + $0x24] sm:$0xff] 0
        %336 = vst.msk [vmem:[#allocation2 + $0x2c] sm:$0xf] %vm328, 0
        %337 = vst [vmem:[#allocation2 + $0x30] sm:$0xff] 0
        %338 = vst.msk [vmem:[#allocation2 + $0x38] sm:$0xf] %vm328, 0
        %339 = vst [vmem:[#allocation2 + $0x3c] sm:$0x11] 0
        %340 = vst.msk [vmem:[#allocation2 + $0x44] sm:$0x1] %vm333, 0
        %341 = vst [vmem:[#allocation2 + $0x48] sm:$0xff] 0
        %342 = vst.msk [vmem:[#allocation2 + $0x50] sm:$0xf] %vm328, 0
        %343 = vst [vmem:[#allocation2 + $0x54] sm:$0xff] 0
        %344 = vst.msk [vmem:[#allocation2 + $0x5c] sm:$0xf] %vm328, 0
        %345 = vst [vmem:[#allocation2 + $0x60] sm:$0x11] 0
        %346 = vst.msk [vmem:[#allocation2 + $0x68] sm:$0x1] %vm333, 0
        %347 = vst [vmem:[#allocation2 + $0x6c] sm:$0xff] 0
        %348 = vst.msk [vmem:[#allocation2 + $0x74] sm:$0xf] %vm328, 0
        %349 = vst [vmem:[#allocation2 + $0x78] sm:$0xff] 0
        %350 = vst.msk [vmem:[#allocation2 + $0x80] sm:$0xf] %vm328, 0
        %351 = vst [vmem:[#allocation2 + $0x84] sm:$0x11] 0
        %352 = vst.msk [vmem:[#allocation2 + $0x8c] sm:$0x1] %vm333, 0
        %353 = vst [vmem:[#allocation2 + $0x90] sm:$0xff] 0
        %354 = vst.msk [vmem:[#allocation2 + $0x98] sm:$0xf] %vm328, 0
        %355 = vst [vmem:[#allocation2 + $0x9c] sm:$0xff] 0
        %356 = vst.msk [vmem:[#allocation2 + $0xa4] sm:$0xf] %vm328, 0
        %357 = vst [vmem:[#allocation2 + $0xa8] sm:$0x11] 0
        %358 = vst.msk [vmem:[#allocation2 + $0xb0] sm:$0x1] %vm333, 0
        %359 = vst [vmem:[#allocation2 + $0xb4] sm:$0xff] 0
        %360 = vst.msk [vmem:[#allocation2 + $0xbc] sm:$0xf] %vm328, 0
        %361 = vst [vmem:[#allocation2 + $0xc0] sm:$0xff] 0
        %362 = vst.msk [vmem:[#allocation2 + $0xc8] sm:$0xf] %vm328, 0
        %363 = vst [vmem:[#allocation2 + $0xcc] sm:$0x11] 0
        %364 = vst.msk [vmem:[#allocation2 + $0xd4] sm:$0x1] %vm333, 0
        %v365 = vld [vmem:[%s287] sm:$0xff]
        %v366 = vld [vmem:[%s287 + $0x8] sm:$0xff]
        %v367 = vld [vmem:[%s287 + $0x10] sm:$0xff]
        %v368 = vld [vmem:[%s287 + $0x18] sm:$0xff]
        %v369 = vld [vmem:[%s287 + $0x20] sm:$0xff]
        %v370 = vld [vmem:[%s287 + $0x28] sm:$0xff]
        %v371 = vld [vmem:[%s287 + $0x30] sm:$0xff]
        %v372 = vld [vmem:[%s287 + $0x38] sm:$0xff]
        %vm373 = vsmask.f32 256
        %vm374 = vsmask.f32 4368
        %vm375 = vmor %vm373, %vm374
        %v377 = vshrl.u32 %v365, 16
        %v379 = vrot.slane %v377, 7
        %v380 = vshll.u32 %v365, 16
        %v382 = vor.u32 %v379, %v380
        %v383 = vrot.slane %v379, 4
        %v385 = vshrl.u32 %v366, 16
        %v387 = vrot.slane %v385, 7
        %v388 = vshll.u32 %v366, 16
        %v390 = vor.u32 %v387, %v388
        %v391 = vsel %vm375, %v383, %v390
        %v392 = vrot.slane %v387, 4
        %v394 = vshrl.u32 %v367, 16
        %v396 = vrot.slane %v394, 7
        %v397 = vshll.u32 %v367, 16
        %v399 = vor.u32 %v396, %v397
        %v400 = vrot.slane %v396, 4
        %v402 = vshrl.u32 %v368, 16
        %v404 = vrot.slane %v402, 7
        %v405 = vshll.u32 %v368, 16
        %v407 = vor.u32 %v404, %v405
        %v408 = vsel %vm375, %v400, %v407
        %v409 = vrot.slane %v404, 4
        %v411 = vshrl.u32 %v369, 16
        %v413 = vrot.slane %v411, 7
        %v414 = vshll.u32 %v369, 16
        %v416 = vor.u32 %v413, %v414
        %v417 = vrot.slane %v413, 4
        %v419 = vshrl.u32 %v370, 16
        %v421 = vrot.slane %v419, 7
        %v422 = vshll.u32 %v370, 16
        %v424 = vor.u32 %v421, %v422
        %v425 = vsel %vm375, %v417, %v424
        %v426 = vrot.slane %v421, 4
        %v428 = vshrl.u32 %v371, 16
        %v430 = vrot.slane %v428, 7
        %v431 = vshll.u32 %v371, 16
        %v433 = vor.u32 %v430, %v431
        %v434 = vrot.slane %v430, 4
        %v436 = vshrl.u32 %v372, 16
        %v438 = vrot.slane %v436, 7
        %v439 = vshll.u32 %v372, 16
        %v441 = vor.u32 %v438, %v439
        %v442 = vsel %vm375, %v434, %v441
        %v443 = vrot.slane %v438, 4
        %444 = vrot.lane.b32.xlu0 %v382, 16
        %v445 = vpop.permute.xlu0 %444
        %446 = vrot.lane.b32.xlu0 %v391, 16
        %v447 = vpop.permute.xlu0 %446
        %448 = vrot.lane.b32.xlu0 %v392, 16
        %v449 = vpop.permute.xlu0 %448
        %450 = vrot.lane.b32.xlu0 %v399, 16
        %v451 = vpop.permute.xlu0 %450
        %452 = vrot.lane.b32.xlu0 %v408, 16
        %v453 = vpop.permute.xlu0 %452
        %454 = vrot.lane.b32.xlu0 %v409, 16
        %v455 = vpop.permute.xlu0 %454
        %456 = vrot.lane.b32.xlu0 %v416, 16
        %v457 = vpop.permute.xlu0 %456
        %458 = vrot.lane.b32.xlu0 %v425, 16
        %v459 = vpop.permute.xlu0 %458
        %460 = vrot.lane.b32.xlu0 %v426, 16
        %v461 = vpop.permute.xlu0 %460
        %462 = vrot.lane.b32.xlu0 %v433, 16
        %v463 = vpop.permute.xlu0 %462
        %464 = vrot.lane.b32.xlu0 %v442, 16
        %v465 = vpop.permute.xlu0 %464
        %466 = vrot.lane.b32.xlu0 %v443, 16
        %v467 = vpop.permute.xlu0 %466
        %v468 = vrot.slane %v445, 4
        %v469 = vrot.slane %v447, 4
        %v470 = vrot.slane %v449, 4
        %v471 = vrot.slane %v451, 4
        %v472 = vrot.slane %v453, 4
        %v473 = vrot.slane %v455, 4
        %v474 = vrot.slane %v457, 4
        %v475 = vrot.slane %v459, 4
        %v476 = vrot.slane %v461, 4
        %v477 = vrot.slane %v463, 4
        %v478 = vrot.slane %v465, 4
        %v479 = vrot.slane %v467, 4
        %vm480 = vcmask 130048
        %v481 = vsel %vm480, %v468, %v445
        %v482 = vsel %vm480, %v469, %v447
        %v483 = vsel %vm480, %v470, %v449
        %v484 = vsel %vm480, %v471, %v451
        %v485 = vsel %vm480, %v472, %v453
        %v486 = vsel %vm480, %v473, %v455
        %v487 = vsel %vm480, %v474, %v457
        %v488 = vsel %vm480, %v475, %v459
        %v489 = vsel %vm480, %v476, %v461
        %v490 = vsel %vm480, %v477, %v463
        %v491 = vsel %vm480, %v478, %v465
        %v492 = vsel %vm480, %v479, %v467
        %s517 = scalar_lea.vmem [#allocation2], 36
        %vm518 = vcmask 1043584
        %vm519 = vsmask.f32 7938
        %vm520 = vmand %vm518, %vm519
        %vm521 = vcmask 1047556
        %vm522 = vsmask.f32 7954
        %vm523 = vmand %vm521, %vm522
        %vm524 = vmor %vm523, %vm520
        %v525 = vld [vmem:[%s517] sm:$0xff]
        %v526 = vsel %vm524, %v481, %v525
        %527 = vst [vmem:[%s517] sm:$0xff] %v526
        %vm528 = vcmask 125952
        %vm529 = vmand %vm528, %vm519
        %v530 = vld [vmem:[%s517 + $0x8] sm:$0xf]
        %v531 = vsel %vm529, %v468, %v530
        %532 = vst [vmem:[%s517 + $0x8] sm:$0xf] %v531
        %vm533 = vcmask 1043584
        %vm534 = vcmask 1047556
        %vm535 = vmor %vm534, %vm533
        %536 = vst.msk [vmem:[%s517 + $0xc] sm:$0xff] %vm535, %v482
        %vm537 = vcmask 125952
        %538 = vst.msk [vmem:[%s517 + $0x14] sm:$0xf] %vm537, %v469
        %vm539 = vcmask 1040512
        %vm540 = vmand %vm539, %vm373
        %vm541 = vcmask 1044484
        %vm542 = vsmask.f32 4352
        %vm543 = vmand %vm541, %vm542
        %vm544 = vmor %vm543, %vm540
        %v545 = vld [vmem:[%s517 + $0x18] sm:$0x11]
        %v546 = vsel %vm544, %v483, %v545
        %547 = vst [vmem:[%s517 + $0x18] sm:$0x11] %v546
        %vm548 = vcmask 122880
        %vm549 = vmand %vm548, %vm373
        %v550 = vld [vmem:[%s517 + $0x20] sm:$0x1]
        %v551 = vsel %vm549, %v470, %v550
        %552 = vst [vmem:[%s517 + $0x20] sm:$0x1] %v551
        %v553 = vld [vmem:[%s517 + $0x24] sm:$0xff]
        %v554 = vsel %vm524, %v484, %v553
        %555 = vst [vmem:[%s517 + $0x24] sm:$0xff] %v554
        %v556 = vld [vmem:[%s517 + $0x2c] sm:$0xf]
        %v557 = vsel %vm529, %v471, %v556
        %558 = vst [vmem:[%s517 + $0x2c] sm:$0xf] %v557
        %559 = vst.msk [vmem:[%s517 + $0x30] sm:$0xff] %vm535, %v485
        %560 = vst.msk [vmem:[%s517 + $0x38] sm:$0xf] %vm537, %v472
        %v561 = vld [vmem:[%s517 + $0x3c] sm:$0x11]
        %v562 = vsel %vm544, %v486, %v561
        %563 = vst [vmem:[%s517 + $0x3c] sm:$0x11] %v562
        %v564 = vld [vmem:[%s517 + $0x44] sm:$0x1]
        %v565 = vsel %vm549, %v473, %v564
        %566 = vst [vmem:[%s517 + $0x44] sm:$0x1] %v565
        %v567 = vld [vmem:[%s517 + $0x48] sm:$0xff]
        %v568 = vsel %vm524, %v487, %v567
        %569 = vst [vmem:[%s517 + $0x48] sm:$0xff] %v568
        %v570 = vld [vmem:[%s517 + $0x50] sm:$0xf]
        %v571 = vsel %vm529, %v474, %v570
        %572 = vst [vmem:[%s517 + $0x50] sm:$0xf] %v571
        %573 = vst.msk [vmem:[%s517 + $0x54] sm:$0xff] %vm535, %v488
        %574 = vst.msk [vmem:[%s517 + $0x5c] sm:$0xf] %vm537, %v475
        %v575 = vld [vmem:[%s517 + $0x60] sm:$0x11]
        %v576 = vsel %vm544, %v489, %v575
        %577 = vst [vmem:[%s517 + $0x60] sm:$0x11] %v576
        %v578 = vld [vmem:[%s517 + $0x68] sm:$0x1]
        %v579 = vsel %vm549, %v476, %v578
        %580 = vst [vmem:[%s517 + $0x68] sm:$0x1] %v579
        %v581 = vld [vmem:[%s517 + $0x6c] sm:$0xff]
        %v582 = vsel %vm524, %v490, %v581
        %583 = vst [vmem:[%s517 + $0x6c] sm:$0xff] %v582
        %v584 = vld [vmem:[%s517 + $0x74] sm:$0xf]
        %v585 = vsel %vm529, %v477, %v584
        %586 = vst [vmem:[%s517 + $0x74] sm:$0xf] %v585
        %587 = vst.msk [vmem:[%s517 + $0x78] sm:$0xff] %vm535, %v491
        %588 = vst.msk [vmem:[%s517 + $0x80] sm:$0xf] %vm537, %v478
        %v589 = vld [vmem:[%s517 + $0x84] sm:$0x11]
        %v590 = vsel %vm544, %v492, %v589
        %591 = vst [vmem:[%s517 + $0x84] sm:$0x11] %v590
        %v592 = vld [vmem:[%s517 + $0x8c] sm:$0x1]
        %v593 = vsel %vm549, %v479, %v592
        %594 = vst [vmem:[%s517 + $0x8c] sm:$0x1] %v593
        %v595 = vld [vmem:[#allocation2] sm:$0xff]
        %v596 = vld [vmem:[#allocation2 + $0x8] sm:$0xf]
        %v597 = vld [vmem:[#allocation2 + $0xc] sm:$0xff]
        %v598 = vld [vmem:[#allocation2 + $0x14] sm:$0xf]
        %v599 = vld [vmem:[#allocation2 + $0x24] sm:$0xff]
        %v600 = vld [vmem:[#allocation2 + $0x2c] sm:$0xf]
        %v601 = vld [vmem:[#allocation2 + $0x30] sm:$0xff]
        %v602 = vld [vmem:[#allocation2 + $0x38] sm:$0xf]
        %v603 = vld [vmem:[#allocation2 + $0x48] sm:$0xff]
        %v604 = vld [vmem:[#allocation2 + $0x50] sm:$0xf]
        %v605 = vld [vmem:[#allocation2 + $0x54] sm:$0xff]
        %v606 = vld [vmem:[#allocation2 + $0x5c] sm:$0xf]
        %v607 = vld [vmem:[#allocation2 + $0x6c] sm:$0xff]
        %v608 = vld [vmem:[#allocation2 + $0x74] sm:$0xf]
        %v609 = vld [vmem:[#allocation2 + $0x78] sm:$0xff]
        %v610 = vld [vmem:[#allocation2 + $0x80] sm:$0xf]
        %v611 = vld [vmem:[#allocation7] sm:$0xf]
        %v612 = vld [vmem:[#allocation7 + $0x4] sm:$0xf]
        %v613 = vld [vmem:[#allocation7 + $0x8] sm:$0xf]
        %v614 = vld [vmem:[#allocation7 + $0xc] sm:$0xf]
        %v615 = vld [vmem:[#allocation7 + $0x10] sm:$0xf]
        %v616 = vld [vmem:[#allocation7 + $0x14] sm:$0xf]
        %v617 = vld [vmem:[#allocation7 + $0x18] sm:$0xf]
        %v618 = vld [vmem:[#allocation7 + $0x1c] sm:$0xf]
        %v619 = vld [vmem:[#allocation7 + $0x20] sm:$0xf]
        %v620 = vld [vmem:[#allocation7 + $0x24] sm:$0xf]
        %v621 = vld [vmem:[#allocation7 + $0x28] sm:$0xf]
        %v622 = vld [vmem:[#allocation7 + $0x2c] sm:$0xf]
        %v623 = vld [vmem:[#allocation7 + $0x30] sm:$0xf]
        %v624 = vld [vmem:[#allocation7 + $0x34] sm:$0xf]
        %v625 = vld [vmem:[#allocation7 + $0x38] sm:$0xf]
        %v626 = vld [vmem:[#allocation7 + $0x3c] sm:$0xf]
        %v627 = vld [vmem:[#allocation7 + $0x40] sm:$0xf]
        %v628 = vld [vmem:[#allocation7 + $0x44] sm:$0xf]
        %v629 = vld [vmem:[#allocation7 + $0x48] sm:$0xf]
        %v630 = vld [vmem:[#allocation7 + $0x4c] sm:$0xf]
        %v631 = vld [vmem:[#allocation7 + $0x50] sm:$0xf]
        %v632 = vld [vmem:[#allocation7 + $0x54] sm:$0xf]
        %v633 = vld [vmem:[#allocation7 + $0x58] sm:$0xf]
        %v634 = vld [vmem:[#allocation7 + $0x5c] sm:$0xf]
        %v635 = vld [vmem:[#allocation7 + $0x60] sm:$0xf]
        %v636 = vld [vmem:[#allocation7 + $0x64] sm:$0xf]
        %v637 = vld [vmem:[#allocation7 + $0x68] sm:$0xf]
        %v638 = vld [vmem:[#allocation7 + $0x6c] sm:$0xf]
        %v639 = vld [vmem:[#allocation7 + $0x70] sm:$0xf]
        %v640 = vld [vmem:[#allocation7 + $0x74] sm:$0xf]
        %v641 = vld [vmem:[#allocation7 + $0x78] sm:$0xf]
        %v642 = vld [vmem:[#allocation7 + $0x7c] sm:$0xf]
        %v643 = vld [vmem:[#allocation7 + $0x80] sm:$0xf]
        %v644 = vld [vmem:[#allocation7 + $0x84] sm:$0xf]
        %v645 = vld [vmem:[#allocation7 + $0x88] sm:$0xf]
        %v646 = vld [vmem:[#allocation7 + $0x8c] sm:$0xf]
        %v647 = vld [vmem:[#allocation2 + $0x18] sm:$0x11]
        %v648 = vld [vmem:[#allocation2 + $0x20] sm:$0x1]
        %v649 = vld [vmem:[#allocation2 + $0x3c] sm:$0x11]
        %v650 = vld [vmem:[#allocation2 + $0x44] sm:$0x1]
        %v651 = vld [vmem:[#allocation2 + $0x60] sm:$0x11]
        %v652 = vld [vmem:[#allocation2 + $0x68] sm:$0x1]
        %v653 = vld [vmem:[#allocation2 + $0x84] sm:$0x11]
        %v654 = vld [vmem:[#allocation2 + $0x8c] sm:$0x1]
        %vm655 = vsmask.f32 3328
        %vm656 = vsmask.f32 7440
        %vm657 = vmor %vm655, %vm656
        %v659 = vshrl.u32 %v595, 16
        %v661 = vrot.slane %v659, 4
        %v662 = vshll.u32 %v595, 16
        %v664 = vrot.slane %v662, 5
        %v665 = vor.u32 %v661, %v664
        %v666 = vrot.slane %v665, 4
        %v668 = vshll.u32 %v597, 16
        %v670 = vrot.slane %v668, 5
        %v671 = vsel %vm657, %v666, %v670
        %v673 = vshrl.u32 %v596, 16
        %v675 = vrot.slane %v673, 4
        %v676 = vshll.u32 %v596, 16
        %v678 = vrot.slane %v676, 5
        %v679 = vor.u32 %v675, %v678
        %v680 = vrot.slane %v679, 4
        %v682 = vshll.u32 %v598, 16
        %v684 = vrot.slane %v682, 5
        %v685 = vsel %vm657, %v680, %v684
        %v686 = vshrl.u32 %v597, 16
        %v688 = vrot.slane %v686, 4
        %v689 = vor.u32 %v688, %v670
        %v690 = vrot.slane %v689, 4
        %v692 = vshll.u32 %v647, 16
        %v694 = vrot.slane %v692, 5
        %v695 = vsel %vm657, %v690, %v694
        %v696 = vshrl.u32 %v598, 16
        %v698 = vrot.slane %v696, 4
        %v699 = vor.u32 %v698, %v684
        %v700 = vrot.slane %v699, 4
        %v702 = vshll.u32 %v648, 16
        %v704 = vrot.slane %v702, 5
        %v705 = vsel %vm657, %v700, %v704
        %v707 = vshrl.u32 %v599, 16
        %v709 = vrot.slane %v707, 4
        %v710 = vshll.u32 %v599, 16
        %v712 = vrot.slane %v710, 5
        %v713 = vor.u32 %v709, %v712
        %v714 = vrot.slane %v713, 4
        %v716 = vshll.u32 %v601, 16
        %v718 = vrot.slane %v716, 5
        %v719 = vsel %vm657, %v714, %v718
        %v721 = vshrl.u32 %v600, 16
        %v723 = vrot.slane %v721, 4
        %v724 = vshll.u32 %v600, 16
        %v726 = vrot.slane %v724, 5
        %v727 = vor.u32 %v723, %v726
        %v728 = vrot.slane %v727, 4
        %v730 = vshll.u32 %v602, 16
        %v732 = vrot.slane %v730, 5
        %v733 = vsel %vm657, %v728, %v732
        %v734 = vshrl.u32 %v601, 16
        %v736 = vrot.slane %v734, 4
        %v737 = vor.u32 %v736, %v718
        %v738 = vrot.slane %v737, 4
        %v740 = vshll.u32 %v649, 16
        %v742 = vrot.slane %v740, 5
        %v743 = vsel %vm657, %v738, %v742
        %v744 = vshrl.u32 %v602, 16
        %v746 = vrot.slane %v744, 4
        %v747 = vor.u32 %v746, %v732
        %v748 = vrot.slane %v747, 4
        %v750 = vshll.u32 %v650, 16
        %v752 = vrot.slane %v750, 5
        %v753 = vsel %vm657, %v748, %v752
        %v755 = vshrl.u32 %v603, 16
        %v757 = vrot.slane %v755, 4
        %v758 = vshll.u32 %v603, 16
        %v760 = vrot.slane %v758, 5
        %v761 = vor.u32 %v757, %v760
        %v762 = vrot.slane %v761, 4
        %v764 = vshll.u32 %v605, 16
        %v766 = vrot.slane %v764, 5
        %v767 = vsel %vm657, %v762, %v766
        %v769 = vshrl.u32 %v604, 16
        %v771 = vrot.slane %v769, 4
        %v772 = vshll.u32 %v604, 16
        %v774 = vrot.slane %v772, 5
        %v775 = vor.u32 %v771, %v774
        %v776 = vrot.slane %v775, 4
        %v778 = vshll.u32 %v606, 16
        %v780 = vrot.slane %v778, 5
        %v781 = vsel %vm657, %v776, %v780
        %v782 = vshrl.u32 %v605, 16
        %v784 = vrot.slane %v782, 4
        %v785 = vor.u32 %v784, %v766
        %v786 = vrot.slane %v785, 4
        %v788 = vshll.u32 %v651, 16
        %v790 = vrot.slane %v788, 5
        %v791 = vsel %vm657, %v786, %v790
        %v792 = vshrl.u32 %v606, 16
        %v794 = vrot.slane %v792, 4
        %v795 = vor.u32 %v794, %v780
        %v796 = vrot.slane %v795, 4
        %v798 = vshll.u32 %v652, 16
        %v800 = vrot.slane %v798, 5
        %v801 = vsel %vm657, %v796, %v800
        %v803 = vshrl.u32 %v607, 16
        %v805 = vrot.slane %v803, 4
        %v806 = vshll.u32 %v607, 16
        %v808 = vrot.slane %v806, 5
        %v809 = vor.u32 %v805, %v808
        %v810 = vrot.slane %v809, 4
        %v812 = vshll.u32 %v609, 16
        %v814 = vrot.slane %v812, 5
        %v815 = vsel %vm657, %v810, %v814
        %v817 = vshrl.u32 %v608, 16
        %v819 = vrot.slane %v817, 4
        %v820 = vshll.u32 %v608, 16
        %v822 = vrot.slane %v820, 5
        %v823 = vor.u32 %v819, %v822
        %v824 = vrot.slane %v823, 4
        %v826 = vshll.u32 %v610, 16
        %v828 = vrot.slane %v826, 5
        %v829 = vsel %vm657, %v824, %v828
        %v830 = vshrl.u32 %v609, 16
        %v832 = vrot.slane %v830, 4
        %v833 = vor.u32 %v832, %v814
        %v834 = vrot.slane %v833, 4
        %v836 = vshll.u32 %v653, 16
        %v838 = vrot.slane %v836, 5
        %v839 = vsel %vm657, %v834, %v838
        %v840 = vshrl.u32 %v610, 16
        %v842 = vrot.slane %v840, 4
        %v843 = vor.u32 %v842, %v828
        %v844 = vrot.slane %v843, 4
        %v846 = vshll.u32 %v654, 16
        %v848 = vrot.slane %v846, 5
        %v849 = vsel %vm657, %v844, %v848
        %s850 = scalar_lea.vmem [#allocation7], 144
        %v851 = vld [vmem:[%s850] sm:$0xf]
        %v852 = vld [vmem:[%s850 + $0x4] sm:$0xf]
        %v853 = vld [vmem:[%s850 + $0x8] sm:$0xf]
        %v854 = vld [vmem:[%s850 + $0xc] sm:$0xf]
        %v855 = vld [vmem:[%s850 + $0x10] sm:$0xf]
        %v856 = vld [vmem:[%s850 + $0x14] sm:$0xf]
        %v857 = vld [vmem:[%s850 + $0x18] sm:$0xf]
        %v858 = vld [vmem:[%s850 + $0x1c] sm:$0xf]
        %v859 = vld [vmem:[%s850 + $0x20] sm:$0xf]
        %v860 = vld [vmem:[%s850 + $0x24] sm:$0xf]
        %v861 = vld [vmem:[%s850 + $0x28] sm:$0xf]
        %v862 = vld [vmem:[%s850 + $0x2c] sm:$0xf]
        %v863 = vld [vmem:[%s850 + $0x30] sm:$0xf]
        %v864 = vld [vmem:[%s850 + $0x34] sm:$0xf]
        %v865 = vld [vmem:[%s850 + $0x38] sm:$0xf]
        %v866 = vld [vmem:[%s850 + $0x3c] sm:$0xf]
        %v867 = vld [vmem:[%s850 + $0x40] sm:$0xf]
        %v868 = vld [vmem:[%s850 + $0x44] sm:$0xf]
        %v869 = vld [vmem:[%s850 + $0x48] sm:$0xf]
        %v870 = vld [vmem:[%s850 + $0x4c] sm:$0xf]
        %v871 = vld [vmem:[%s850 + $0x50] sm:$0xf]
        %v872 = vld [vmem:[%s850 + $0x54] sm:$0xf]
        %v873 = vld [vmem:[%s850 + $0x58] sm:$0xf]
        %v874 = vld [vmem:[%s850 + $0x5c] sm:$0xf]
        %v875 = vld [vmem:[%s850 + $0x60] sm:$0xf]
        %v876 = vld [vmem:[%s850 + $0x64] sm:$0xf]
        %v877 = vld [vmem:[%s850 + $0x68] sm:$0xf]
        %v878 = vld [vmem:[%s850 + $0x6c] sm:$0xf]
        %v879 = vld [vmem:[%s850 + $0x70] sm:$0xf]
        %v880 = vld [vmem:[%s850 + $0x74] sm:$0xf]
        %v881 = vld [vmem:[%s850 + $0x78] sm:$0xf]
        %v882 = vld [vmem:[%s850 + $0x7c] sm:$0xf]
        %v883 = vld [vmem:[%s850 + $0x80] sm:$0xf]
        %v884 = vld [vmem:[%s850 + $0x84] sm:$0xf]
        %v885 = vld [vmem:[%s850 + $0x88] sm:$0xf]
        %v886 = vld [vmem:[%s850 + $0x8c] sm:$0xf]
        %v887 = vunpack.c.l.b16 %v671
        %v888 = vunpack.c.h.b16 %v671
        %v889 = vunpack.c.l.b16 %v685
        %v890 = vunpack.c.l.b16 %v695
        %v891 = vunpack.c.h.b16 %v695
        %v892 = vunpack.c.l.b16 %v705
        %v893 = vunpack.c.l.b16 %v719
        %v894 = vunpack.c.h.b16 %v719
        %v895 = vunpack.c.l.b16 %v733
        %v896 = vunpack.c.l.b16 %v743
        %v897 = vunpack.c.h.b16 %v743
        %v898 = vunpack.c.l.b16 %v753
        %v899 = vunpack.c.l.b16 %v767
        %v900 = vunpack.c.h.b16 %v767
        %v901 = vunpack.c.l.b16 %v781
        %v902 = vunpack.c.l.b16 %v791
        %v903 = vunpack.c.h.b16 %v791
        %v904 = vunpack.c.l.b16 %v801
        %v905 = vunpack.c.l.b16 %v815
        %v906 = vunpack.c.h.b16 %v815
        %v907 = vunpack.c.l.b16 %v829
        %v908 = vunpack.c.l.b16 %v839
        %v909 = vunpack.c.h.b16 %v839
        %v910 = vunpack.c.l.b16 %v849
        %v911 = vpack.c.b16 %v890, %v887
        %v912 = vpack.c.b16 %v891, %v888
        %v913 = vpack.c.b16 %v892, %v889
        %v914 = vpack.c.b16 %v896, %v893
        %v915 = vpack.c.b16 %v897, %v894
        %v916 = vpack.c.b16 %v898, %v895
        %v917 = vpack.c.b16 %v902, %v899
        %v918 = vpack.c.b16 %v903, %v900
        %v919 = vpack.c.b16 %v904, %v901
        %v920 = vpack.c.b16 %v908, %v905
        %v921 = vpack.c.b16 %v909, %v906
        %v922 = vpack.c.b16 %v910, %v907
        %v967 = vunpack.c.l.b16 %v851
        %v968 = vunpack.c.l.b16 %v852
        %v969 = vunpack.c.l.b16 %v853
        %v970 = vunpack.c.l.b16 %v854
        %v971 = vunpack.c.l.b16 %v855
        %v972 = vunpack.c.l.b16 %v856
        %v973 = vunpack.c.l.b16 %v857
        %v974 = vunpack.c.l.b16 %v858
        %v975 = vunpack.c.l.b16 %v859
        %v976 = vunpack.c.l.b16 %v860
        %v977 = vunpack.c.l.b16 %v861
        %v978 = vunpack.c.l.b16 %v862
        %v979 = vunpack.c.l.b16 %v863
        %v980 = vunpack.c.l.b16 %v864
        %v981 = vunpack.c.l.b16 %v865
        %v982 = vunpack.c.l.b16 %v866
        %v983 = vunpack.c.l.b16 %v867
        %v984 = vunpack.c.l.b16 %v868
        %v985 = vunpack.c.l.b16 %v869
        %v986 = vunpack.c.l.b16 %v870
        %v987 = vunpack.c.l.b16 %v871
        %v988 = vunpack.c.l.b16 %v872
        %v989 = vunpack.c.l.b16 %v873
        %v990 = vunpack.c.l.b16 %v874
        %v991 = vunpack.c.l.b16 %v875
        %v992 = vunpack.c.l.b16 %v876
        %v993 = vunpack.c.l.b16 %v877
        %v994 = vunpack.c.l.b16 %v878
        %v995 = vunpack.c.l.b16 %v879
        %v996 = vunpack.c.l.b16 %v880
        %v997 = vunpack.c.l.b16 %v881
        %v998 = vunpack.c.l.b16 %v882
        %v999 = vunpack.c.l.b16 %v883
        %v1000 = vunpack.c.l.b16 %v884
        %v1001 = vunpack.c.l.b16 %v885
        %v1002 = vunpack.c.l.b16 %v886
        %v1003 = vpack.c.b16 %v968, %v967
        %v1004 = vpack.c.b16 %v970, %v969
        %v1005 = vpack.c.b16 %v972, %v971
        %v1006 = vpack.c.b16 %v974, %v973
        %v1007 = vpack.c.b16 %v976, %v975
        %v1008 = vpack.c.b16 %v978, %v977
        %v1009 = vpack.c.b16 %v980, %v979
        %v1010 = vpack.c.b16 %v982, %v981
        %v1011 = vpack.c.b16 %v984, %v983
        %v1012 = vpack.c.b16 %v986, %v985
        %v1013 = vpack.c.b16 %v988, %v987
        %v1014 = vpack.c.b16 %v990, %v989
        %v1015 = vpack.c.b16 %v992, %v991
        %v1016 = vpack.c.b16 %v994, %v993
        %v1017 = vpack.c.b16 %v996, %v995
        %v1018 = vpack.c.b16 %v998, %v997
        %v1019 = vpack.c.b16 %v1000, %v999
        %v1020 = vpack.c.b16 %v1002, %v1001
        %vm1039 = vcmask 261120
        %v1041 = vsel %vm1039, %v913, 0
        %v1044 = vsel %vm1039, %v916, 0
        %v1047 = vsel %vm1039, %v919, 0
        %v1050 = vsel %vm1039, %v922, 0
        %1052 = vmatprep.subr.bf16.mxu0 0
        %1053 = vmatpush1.bf16.msra.mxu0 %v1003
        %1054 = vmatprep.subr.bf16.mxu0 0
        %1055 = vmatpush1.bf16.msra.mxu0 %v1004
        %1056 = vmatprep.subr.bf16.mxu0 0
        %1057 = vmatpush1.bf16.msra.mxu0 %v1005
        %1058 = vmatprep.subr.bf16.mxu0 0
        %1059 = vmatpush1.bf16.msra.mxu0 %v1006
        %1060 = vmatprep.subr.bf16.mxu0 0
        %1061 = vmatpush1.bf16.msra.mxu0 %v1007
        %1062 = vmatprep.subr.bf16.mxu0 0
        %1063 = vmatpush1.bf16.msra.mxu0 %v1008
        %1064 = vmatprep.subr.bf16.mxu0 0
        %1065 = vmatpush1.bf16.msra.mxu0 %v1009
        %1066 = vmatprep.subr.bf16.mxu0 0
        %1067 = vmatpush1.bf16.msra.mxu0 %v1010
        %1068 = vmatprep.subr.bf16.mxu0 0
        %1069 = vmatpush1.bf16.msra.mxu0 %v1011
        %1070 = vmatprep.subr.bf16.mxu0 0
        %1071 = vmatpush1.bf16.msra.mxu0 %v1012
        %1072 = vmatprep.subr.bf16.mxu0 0
        %1073 = vmatpush1.bf16.msra.mxu0 %v1013
        %1074 = vmatprep.subr.bf16.mxu0 0
        %1075 = vmatpush1.bf16.msra.mxu0 %v1014
        %1076 = vmatprep.subr.bf16.mxu0 0
        %1077 = vmatpush1.bf16.msra.mxu0 %v1015
        %1078 = vmatprep.subr.bf16.mxu0 0
        %1079 = vmatpush1.bf16.msra.mxu0 %v1016
        %1080 = vmatprep.subr.bf16.mxu0 0
        %1081 = vmatpush1.bf16.msra.mxu0 %v1017
        %1082 = vmatprep.subr.bf16.mxu0 0
        %1083 = vmatpush1.bf16.msra.mxu0 %v1018
        %1084 = vmatprep.mubr.bf16.mxu0 %v912
        %1085 = vmatmul.mubr.bf16.gmra.mrb[0].mxu0 %v911
        %v1086 = vpop.f32.mrb[0].mxu0
        %v1087 = vadd.f32 0.0, %v1086
        %v1088 = vpop.f32.mrb[0].mxu0
        %v1089 = vpop.f32.mrb[0].mxu0
        %v1090 = vadd.f32 0.0, %v1089
        %v1091 = vpop.f32.mrb[0].mxu0
        %1092 = vmatprep.mubr.bf16.mxu0 %v915
        %1093 = vmatmul.mubr.bf16.gmra.mrb[0].mxu0 %v914
        %v1094 = vpop.f32.mrb[0].mxu0
        %v1095 = vadd.f32 0.0, %v1094
        %v1096 = vpop.f32.mrb[0].mxu0
        %v1097 = vpop.f32.mrb[0].mxu0
        %v1098 = vadd.f32 0.0, %v1097
        %v1099 = vpop.f32.mrb[0].mxu0
        %1100 = vmatprep.mubr.bf16.mxu0 %v918
        %1101 = vmatmul.mubr.bf16.gmra.mrb[0].mxu0 %v917
        %v1102 = vpop.f32.mrb[0].mxu0
        %v1103 = vadd.f32 0.0, %v1102
        %v1104 = vpop.f32.mrb[0].mxu0
        %v1105 = vpop.f32.mrb[0].mxu0
        %v1106 = vadd.f32 0.0, %v1105
        %v1107 = vpop.f32.mrb[0].mxu0
        %1108 = vmatprep.mubr.bf16.mxu0 %v921
        %1109 = vmatmul.mubr.bf16.gmra.mrb[0].mxu0 %v920
        %v1110 = vpop.f32.mrb[0].mxu0
        %v1111 = vadd.f32 0.0, %v1110
        %v1112 = vpop.f32.mrb[0].mxu0
        %v1113 = vpop.f32.mrb[0].mxu0
        %v1114 = vadd.f32 0.0, %v1113
        %v1115 = vpop.f32.mrb[0].mxu0
        %1116 = vdwg.mxu0
        %1117 = vmatprep.subr.bf16.mxu0 0
        %1118 = vmatpush1.bf16.msra.mxu0 %v1019
        %1119 = vmatprep.subr.bf16.mxu0 0
        %1120 = vmatpush1.bf16.msra.mxu0 %v1020
        %1121 = vmatprep.subr.bf16.mxu0 0
        %1122 = vmatpush1.bf16.msra.mxu0 0
        %1123 = vmatprep.subr.bf16.mxu0 0
        %1124 = vmatpush1.bf16.msra.mxu0 0
        %1125 = vmatprep.subr.bf16.mxu0 0
        %1126 = vmatpush1.bf16.msra.mxu0 0
        %1127 = vmatprep.subr.bf16.mxu0 0
        %1128 = vmatpush1.bf16.msra.mxu0 0
        %1129 = vmatprep.subr.bf16.mxu0 0
        %1130 = vmatpush1.bf16.msra.mxu0 0
        %1131 = vmatprep.subr.bf16.mxu0 0
        %1132 = vmatpush1.bf16.msra.mxu0 0
        %1133 = vmatprep.subr.bf16.mxu0 0
        %1134 = vmatpush1.bf16.msra.mxu0 0
        %1135 = vmatprep.subr.bf16.mxu0 0
        %1136 = vmatpush1.bf16.msra.mxu0 0
        %1137 = vmatprep.subr.bf16.mxu0 0
        %1138 = vmatpush1.bf16.msra.mxu0 0
        %1139 = vmatprep.subr.bf16.mxu0 0
        %1140 = vmatpush1.bf16.msra.mxu0 0
        %1141 = vmatprep.subr.bf16.mxu0 0
        %1142 = vmatpush1.bf16.msra.mxu0 0
        %1143 = vmatprep.subr.bf16.mxu0 0
        %1144 = vmatpush1.bf16.msra.mxu0 0
        %1145 = vmatprep.subr.bf16.mxu0 0
        %1146 = vmatpush1.bf16.msra.mxu0 0
        %1147 = vmatprep.subr.bf16.mxu0 0
        %1148 = vmatpush1.bf16.msra.mxu0 0
        %1149 = vmatprep.mubr.bf16.mxu0 0
        %1150 = vmatmul.mubr.bf16.gmra.mrb[0].mxu0 %v1041
        %v1151 = vpop.f32.mrb[0].mxu0
        %v1152 = vadd.f32 %v1087, %v1151
        %v1153 = vpop.f32.mrb[0].mxu0
        %v1154 = vpop.f32.mrb[0].mxu0
        %v1155 = vadd.f32 %v1090, %v1154
        %v1156 = vpop.f32.mrb[0].mxu0
        %1157 = vmatprep.mubr.bf16.mxu0 0
        %1158 = vmatmul.mubr.bf16.gmra.mrb[0].mxu0 %v1044
        %v1159 = vpop.f32.mrb[0].mxu0
        %v1160 = vadd.f32 %v1095, %v1159
        %v1161 = vpop.f32.mrb[0].mxu0
        %v1162 = vpop.f32.mrb[0].mxu0
        %v1163 = vadd.f32 %v1098, %v1162
        %v1164 = vpop.f32.mrb[0].mxu0
        %1165 = vmatprep.mubr.bf16.mxu0 0
        %1166 = vmatmul.mubr.bf16.gmra.mrb[0].mxu0 %v1047
        %v1167 = vpop.f32.mrb[0].mxu0
        %v1168 = vadd.f32 %v1103, %v1167
        %v1169 = vpop.f32.mrb[0].mxu0
        %v1170 = vpop.f32.mrb[0].mxu0
        %v1171 = vadd.f32 %v1106, %v1170
        %v1172 = vpop.f32.mrb[0].mxu0
        %1173 = vmatprep.mubr.bf16.mxu0 0
        %1174 = vmatmul.mubr.bf16.gmra.mrb[0].mxu0 %v1050
        %v1175 = vpop.f32.mrb[0].mxu0
        %v1176 = vadd.f32 %v1111, %v1175
        %v1177 = vpop.f32.mrb[0].mxu0
        %v1178 = vpop.f32.mrb[0].mxu0
        %v1179 = vadd.f32 %v1114, %v1178
        %v1180 = vpop.f32.mrb[0].mxu0
        %1181 = vdwg.mxu0
        %v1198 = vunpack.c.l.b16 %v595
        %v1199 = vunpack.c.h.b16 %v595
        %v1200 = vunpack.c.l.b16 %v596
        %v1201 = vunpack.c.l.b16 %v597
        %v1202 = vunpack.c.h.b16 %v597
        %v1203 = vunpack.c.l.b16 %v598
        %v1204 = vunpack.c.l.b16 %v599
        %v1205 = vunpack.c.h.b16 %v599
        %v1206 = vunpack.c.l.b16 %v600
        %v1207 = vunpack.c.l.b16 %v601
        %v1208 = vunpack.c.h.b16 %v601
        %v1209 = vunpack.c.l.b16 %v602
        %v1210 = vunpack.c.l.b16 %v603
        %v1211 = vunpack.c.h.b16 %v603
        %v1212 = vunpack.c.l.b16 %v604
        %v1213 = vunpack.c.l.b16 %v605
        %v1214 = vunpack.c.h.b16 %v605
        %v1215 = vunpack.c.l.b16 %v606
        %v1216 = vunpack.c.l.b16 %v607
        %v1217 = vunpack.c.h.b16 %v607
        %v1218 = vunpack.c.l.b16 %v608
        %v1219 = vunpack.c.l.b16 %v609
        %v1220 = vunpack.c.h.b16 %v609
        %v1221 = vunpack.c.l.b16 %v610
        %v1222 = vpack.c.b16 %v1201, %v1198
        %v1223 = vpack.c.b16 %v1202, %v1199
        %v1224 = vpack.c.b16 %v1203, %v1200
        %v1225 = vpack.c.b16 %v1207, %v1204
        %v1226 = vpack.c.b16 %v1208, %v1205
        %v1227 = vpack.c.b16 %v1209, %v1206
        %v1228 = vpack.c.b16 %v1213, %v1210
        %v1229 = vpack.c.b16 %v1214, %v1211
        %v1230 = vpack.c.b16 %v1215, %v1212
        %v1231 = vpack.c.b16 %v1219, %v1216
        %v1232 = vpack.c.b16 %v1220, %v1217
        %v1233 = vpack.c.b16 %v1221, %v1218
        %v1278 = vunpack.c.l.b16 %v611
        %v1279 = vunpack.c.l.b16 %v612
        %v1280 = vunpack.c.l.b16 %v613
        %v1281 = vunpack.c.l.b16 %v614
        %v1282 = vunpack.c.l.b16 %v615
        %v1283 = vunpack.c.l.b16 %v616
        %v1284 = vunpack.c.l.b16 %v617
        %v1285 = vunpack.c.l.b16 %v618
        %v1286 = vunpack.c.l.b16 %v619
        %v1287 = vunpack.c.l.b16 %v620
        %v1288 = vunpack.c.l.b16 %v621
        %v1289 = vunpack.c.l.b16 %v622
        %v1290 = vunpack.c.l.b16 %v623
        %v1291 = vunpack.c.l.b16 %v624
        %v1292 = vunpack.c.l.b16 %v625
        %v1293 = vunpack.c.l.b16 %v626
        %v1294 = vunpack.c.l.b16 %v627
        %v1295 = vunpack.c.l.b16 %v628
        %v1296 = vunpack.c.l.b16 %v629
        %v1297 = vunpack.c.l.b16 %v630
        %v1298 = vunpack.c.l.b16 %v631
        %v1299 = vunpack.c.l.b16 %v632
        %v1300 = vunpack.c.l.b16 %v633
        %v1301 = vunpack.c.l.b16 %v634
        %v1302 = vunpack.c.l.b16 %v635
        %v1303 = vunpack.c.l.b16 %v636
        %v1304 = vunpack.c.l.b16 %v637
        %v1305 = vunpack.c.l.b16 %v638
        %v1306 = vunpack.c.l.b16 %v639
        %v1307 = vunpack.c.l.b16 %v640
        %v1308 = vunpack.c.l.b16 %v641
        %v1309 = vunpack.c.l.b16 %v642
        %v1310 = vunpack.c.l.b16 %v643
        %v1311 = vunpack.c.l.b16 %v644
        %v1312 = vunpack.c.l.b16 %v645
        %v1313 = vunpack.c.l.b16 %v646
        %v1314 = vpack.c.b16 %v1279, %v1278
        %v1315 = vpack.c.b16 %v1281, %v1280
        %v1316 = vpack.c.b16 %v1283, %v1282
        %v1317 = vpack.c.b16 %v1285, %v1284
        %v1318 = vpack.c.b16 %v1287, %v1286
        %v1319 = vpack.c.b16 %v1289, %v1288
        %v1320 = vpack.c.b16 %v1291, %v1290
        %v1321 = vpack.c.b16 %v1293, %v1292
        %v1322 = vpack.c.b16 %v1295, %v1294
        %v1323 = vpack.c.b16 %v1297, %v1296
        %v1324 = vpack.c.b16 %v1299, %v1298
        %v1325 = vpack.c.b16 %v1301, %v1300
        %v1326 = vpack.c.b16 %v1303, %v1302
        %v1327 = vpack.c.b16 %v1305, %v1304
        %v1328 = vpack.c.b16 %v1307, %v1306
        %v1329 = vpack.c.b16 %v1309, %v1308
        %v1330 = vpack.c.b16 %v1311, %v1310
        %v1331 = vpack.c.b16 %v1313, %v1312
        %v1351 = vsel %vm1039, %v1224, 0
        %v1354 = vsel %vm1039, %v1227, 0
        %v1357 = vsel %vm1039, %v1230, 0
        %v1360 = vsel %vm1039, %v1233, 0
        %1362 = vmatprep.subr.bf16.mxu0 0
        %1363 = vmatpush1.bf16.msra.mxu0 %v1314
        %1364 = vmatprep.subr.bf16.mxu0 0
        %1365 = vmatpush1.bf16.msra.mxu0 %v1315
        %1366 = vmatprep.subr.bf16.mxu0 0
        %1367 = vmatpush1.bf16.msra.mxu0 %v1316
        %1368 = vmatprep.subr.bf16.mxu0 0
        %1369 = vmatpush1.bf16.msra.mxu0 %v1317
        %1370 = vmatprep.subr.bf16.mxu0 0
        %1371 = vmatpush1.bf16.msra.mxu0 %v1318
        %1372 = vmatprep.subr.bf16.mxu0 0
        %1373 = vmatpush1.bf16.msra.mxu0 %v1319
        %1374 = vmatprep.subr.bf16.mxu0 0
        %1375 = vmatpush1.bf16.msra.mxu0 %v1320
        %1376 = vmatprep.subr.bf16.mxu0 0
        %1377 = vmatpush1.bf16.msra.mxu0 %v1321
        %1378 = vmatprep.subr.bf16.mxu0 0
        %1379 = vmatpush1.bf16.msra.mxu0 %v1322
        %1380 = vmatprep.subr.bf16.mxu0 0
        %1381 = vmatpush1.bf16.msra.mxu0 %v1323
        %1382 = vmatprep.subr.bf16.mxu0 0
        %1383 = vmatpush1.bf16.msra.mxu0 %v1324
        %1384 = vmatprep.subr.bf16.mxu0 0
        %1385 = vmatpush1.bf16.msra.mxu0 %v1325
        %1386 = vmatprep.subr.bf16.mxu0 0
        %1387 = vmatpush1.bf16.msra.mxu0 %v1326
        %1388 = vmatprep.subr.bf16.mxu0 0
        %1389 = vmatpush1.bf16.msra.mxu0 %v1327
        %1390 = vmatprep.subr.bf16.mxu0 0
        %1391 = vmatpush1.bf16.msra.mxu0 %v1328
        %1392 = vmatprep.subr.bf16.mxu0 0
        %1393 = vmatpush1.bf16.msra.mxu0 %v1329
        %1394 = vmatprep.mubr.bf16.mxu0 %v1223
        %1395 = vmatmul.mubr.bf16.gmra.mrb[0].mxu0 %v1222
        %v1396 = vpop.f32.mrb[0].mxu0
        %v1397 = vadd.f32 %v1152, %v1396
        %v1398 = vpop.f32.mrb[0].mxu0
        %v1399 = vpop.f32.mrb[0].mxu0
        %v1400 = vadd.f32 %v1155, %v1399
        %v1401 = vpop.f32.mrb[0].mxu0
        %1402 = vmatprep.mubr.bf16.mxu0 %v1226
        %1403 = vmatmul.mubr.bf16.gmra.mrb[0].mxu0 %v1225
        %v1404 = vpop.f32.mrb[0].mxu0
        %v1405 = vadd.f32 %v1160, %v1404
        %v1406 = vpop.f32.mrb[0].mxu0
        %v1407 = vpop.f32.mrb[0].mxu0
        %v1408 = vadd.f32 %v1163, %v1407
        %v1409 = vpop.f32.mrb[0].mxu0
        %1410 = vmatprep.mubr.bf16.mxu0 %v1229
        %1411 = vmatmul.mubr.bf16.gmra.mrb[0].mxu0 %v1228
        %v1412 = vpop.f32.mrb[0].mxu0
        %v1413 = vadd.f32 %v1168, %v1412
        %v1414 = vpop.f32.mrb[0].mxu0
        %v1415 = vpop.f32.mrb[0].mxu0
        %v1416 = vadd.f32 %v1171, %v1415
        %v1417 = vpop.f32.mrb[0].mxu0
        %1418 = vmatprep.mubr.bf16.mxu0 %v1232
        %1419 = vmatmul.mubr.bf16.gmra.mrb[0].mxu0 %v1231
        %v1420 = vpop.f32.mrb[0].mxu0
        %v1421 = vadd.f32 %v1176, %v1420
        %v1422 = vpop.f32.mrb[0].mxu0
        %v1423 = vpop.f32.mrb[0].mxu0
        %v1424 = vadd.f32 %v1179, %v1423
        %v1425 = vpop.f32.mrb[0].mxu0
        %1426 = vdwg.mxu0
        %1427 = vmatprep.subr.bf16.mxu0 0
        %1428 = vmatpush1.bf16.msra.mxu0 %v1330
        %1429 = vmatprep.subr.bf16.mxu0 0
        %1430 = vmatpush1.bf16.msra.mxu0 %v1331
        %1431 = vmatprep.subr.bf16.mxu0 0
        %1432 = vmatpush1.bf16.msra.mxu0 0
        %1433 = vmatprep.subr.bf16.mxu0 0
        %1434 = vmatpush1.bf16.msra.mxu0 0
        %1435 = vmatprep.subr.bf16.mxu0 0
        %1436 = vmatpush1.bf16.msra.mxu0 0
        %1437 = vmatprep.subr.bf16.mxu0 0
        %1438 = vmatpush1.bf16.msra.mxu0 0
        %1439 = vmatprep.subr.bf16.mxu0 0
        %1440 = vmatpush1.bf16.msra.mxu0 0
        %1441 = vmatprep.subr.bf16.mxu0 0
        %1442 = vmatpush1.bf16.msra.mxu0 0
        %1443 = vmatprep.subr.bf16.mxu0 0
        %1444 = vmatpush1.bf16.msra.mxu0 0
        %1445 = vmatprep.subr.bf16.mxu0 0
        %1446 = vmatpush1.bf16.msra.mxu0 0
        %1447 = vmatprep.subr.bf16.mxu0 0
        %1448 = vmatpush1.bf16.msra.mxu0 0
        %1449 = vmatprep.subr.bf16.mxu0 0
        %1450 = vmatpush1.bf16.msra.mxu0 0
        %1451 = vmatprep.subr.bf16.mxu0 0
        %1452 = vmatpush1.bf16.msra.mxu0 0
        %1453 = vmatprep.subr.bf16.mxu0 0
        %1454 = vmatpush1.bf16.msra.mxu0 0
        %1455 = vmatprep.subr.bf16.mxu0 0
        %1456 = vmatpush1.bf16.msra.mxu0 0
        %1457 = vmatprep.subr.bf16.mxu0 0
        %1458 = vmatpush1.bf16.msra.mxu0 0
        %1459 = vmatprep.mubr.bf16.mxu0 0
        %1460 = vmatmul.mubr.bf16.gmra.mrb[0].mxu0 %v1351
        %v1461 = vpop.f32.mrb[0].mxu0
        %v1462 = vadd.f32 %v1397, %v1461
        %v1463 = vpop.f32.mrb[0].mxu0
        %v1464 = vpop.f32.mrb[0].mxu0
        %v1465 = vadd.f32 %v1400, %v1464
        %v1466 = vpop.f32.mrb[0].mxu0
        %1467 = vmatprep.mubr.bf16.mxu0 0
        %1468 = vmatmul.mubr.bf16.gmra.mrb[0].mxu0 %v1354
        %v1469 = vpop.f32.mrb[0].mxu0
        %v1470 = vadd.f32 %v1405, %v1469
        %v1471 = vpop.f32.mrb[0].mxu0
        %v1472 = vpop.f32.mrb[0].mxu0
        %v1473 = vadd.f32 %v1408, %v1472
        %v1474 = vpop.f32.mrb[0].mxu0
        %1475 = vmatprep.mubr.bf16.mxu0 0
        %1476 = vmatmul.mubr.bf16.gmra.mrb[0].mxu0 %v1357
        %v1477 = vpop.f32.mrb[0].mxu0
        %v1478 = vadd.f32 %v1413, %v1477
        %v1479 = vpop.f32.mrb[0].mxu0
        %v1480 = vpop.f32.mrb[0].mxu0
        %v1481 = vadd.f32 %v1416, %v1480
        %v1482 = vpop.f32.mrb[0].mxu0
        %1483 = vmatprep.mubr.bf16.mxu0 0
        %1484 = vmatmul.mubr.bf16.gmra.mrb[0].mxu0 %v1360
        %v1485 = vpop.f32.mrb[0].mxu0
        %v1486 = vadd.f32 %v1421, %v1485
        %v1487 = vpop.f32.mrb[0].mxu0
        %v1488 = vpop.f32.mrb[0].mxu0
        %v1489 = vadd.f32 %v1424, %v1488
        %v1490 = vpop.f32.mrb[0].mxu0
        %1491 = vdwg.mxu0
        %v1492 = vld [vmem:[#allocation2] sm:$0xee]
        %v1493 = vld [vmem:[#allocation2 + $0x8] sm:$0xe]
        %v1494 = vld [vmem:[#allocation2 + $0x24] sm:$0xee]
        %v1495 = vld [vmem:[#allocation2 + $0x2c] sm:$0xe]
        %v1496 = vld [vmem:[#allocation2 + $0x48] sm:$0xee]
        %v1497 = vld [vmem:[#allocation2 + $0x50] sm:$0xe]
        %v1498 = vld [vmem:[#allocation2 + $0x6c] sm:$0xee]
        %v1499 = vld [vmem:[#allocation2 + $0x74] sm:$0xe]
        %vm1516 = vcmask 1042432
        %vm1517 = vcmask 1046532
        %vm1518 = vmor %vm1516, %vm1517
        %v1519 = vrot.slane %v1492, 5
        %v1520 = vrot.slane %v1519, 4
        %v1521 = vrot.slane %v597, 5
        %v1522 = vsel %vm1518, %v1520, %v1521
        %v1523 = vrot.slane %v1493, 5
        %v1524 = vrot.slane %v1523, 4
        %v1525 = vrot.slane %v598, 5
        %v1526 = vsel %vm1518, %v1524, %v1525
        %v1527 = vrot.slane %v1521, 4
        %v1528 = vrot.slane %v647, 5
        %v1529 = vsel %vm1518, %v1527, %v1528
        %v1530 = vrot.slane %v1525, 4
        %v1531 = vrot.slane %v648, 5
        %v1532 = vsel %vm1518, %v1530, %v1531
        %v1533 = vrot.slane %v1494, 5
        %v1534 = vrot.slane %v1533, 4
        %v1535 = vrot.slane %v601, 5
        %v1536 = vsel %vm1518, %v1534, %v1535
        %v1537 = vrot.slane %v1495, 5
        %v1538 = vrot.slane %v1537, 4
        %v1539 = vrot.slane %v602, 5
        %v1540 = vsel %vm1518, %v1538, %v1539
        %v1541 = vrot.slane %v1535, 4
        %v1542 = vrot.slane %v649, 5
        %v1543 = vsel %vm1518, %v1541, %v1542
        %v1544 = vrot.slane %v1539, 4
        %v1545 = vrot.slane %v650, 5
        %v1546 = vsel %vm1518, %v1544, %v1545
        %v1547 = vrot.slane %v1496, 5
        %v1548 = vrot.slane %v1547, 4
        %v1549 = vrot.slane %v605, 5
        %v1550 = vsel %vm1518, %v1548, %v1549
        %v1551 = vrot.slane %v1497, 5
        %v1552 = vrot.slane %v1551, 4
        %v1553 = vrot.slane %v606, 5
        %v1554 = vsel %vm1518, %v1552, %v1553
        %v1555 = vrot.slane %v1549, 4
        %v1556 = vrot.slane %v651, 5
        %v1557 = vsel %vm1518, %v1555, %v1556
        %v1558 = vrot.slane %v1553, 4
        %v1559 = vrot.slane %v652, 5
        %v1560 = vsel %vm1518, %v1558, %v1559
        %v1561 = vrot.slane %v1498, 5
        %v1562 = vrot.slane %v1561, 4
        %v1563 = vrot.slane %v609, 5
        %v1564 = vsel %vm1518, %v1562, %v1563
        %v1565 = vrot.slane %v1499, 5
        %v1566 = vrot.slane %v1565, 4
        %v1567 = vrot.slane %v610, 5
        %v1568 = vsel %vm1518, %v1566, %v1567
        %v1569 = vrot.slane %v1563, 4
        %v1570 = vrot.slane %v653, 5
        %v1571 = vsel %vm1518, %v1569, %v1570
        %v1572 = vrot.slane %v1567, 4
        %v1573 = vrot.slane %v654, 5
        %v1574 = vsel %vm1518, %v1572, %v1573
        %s1575 = scalar_lea.vmem [#allocation7], 288
        %v1576 = vld [vmem:[%s1575] sm:$0xf]
        %v1577 = vld [vmem:[%s1575 + $0x4] sm:$0xf]
        %v1578 = vld [vmem:[%s1575 + $0x8] sm:$0xf]
        %v1579 = vld [vmem:[%s1575 + $0xc] sm:$0xf]
        %v1580 = vld [vmem:[%s1575 + $0x10] sm:$0xf]
        %v1581 = vld [vmem:[%s1575 + $0x14] sm:$0xf]
        %v1582 = vld [vmem:[%s1575 + $0x18] sm:$0xf]
        %v1583 = vld [vmem:[%s1575 + $0x1c] sm:$0xf]
        %v1584 = vld [vmem:[%s1575 + $0x20] sm:$0xf]
        %v1585 = vld [vmem:[%s1575 + $0x24] sm:$0xf]
        %v1586 = vld [vmem:[%s1575 + $0x28] sm:$0xf]
        %v1587 = vld [vmem:[%s1575 + $0x2c] sm:$0xf]
        %v1588 = vld [vmem:[%s1575 + $0x30] sm:$0xf]
        %v1589 = vld [vmem:[%s1575 + $0x34] sm:$0xf]
        %v1590 = vld [vmem:[%s1575 + $0x38] sm:$0xf]
        %v1591 = vld [vmem:[%s1575 + $0x3c] sm:$0xf]
        %v1592 = vld [vmem:[%s1575 + $0x40] sm:$0xf]
        %v1593 = vld [vmem:[%s1575 + $0x44] sm:$0xf]
        %v1594 = vld [vmem:[%s1575 + $0x48] sm:$0xf]
        %v1595 = vld [vmem:[%s1575 + $0x4c] sm:$0xf]
        %v1596 = vld [vmem:[%s1575 + $0x50] sm:$0xf]
        %v1597 = vld [vmem:[%s1575 + $0x54] sm:$0xf]
        %v1598 = vld [vmem:[%s1575 + $0x58] sm:$0xf]
        %v1599 = vld [vmem:[%s1575 + $0x5c] sm:$0xf]
        %v1600 = vld [vmem:[%s1575 + $0x60] sm:$0xf]
        %v1601 = vld [vmem:[%s1575 + $0x64] sm:$0xf]
        %v1602 = vld [vmem:[%s1575 + $0x68] sm:$0xf]
        %v1603 = vld [vmem:[%s1575 + $0x6c] sm:$0xf]
        %v1604 = vld [vmem:[%s1575 + $0x70] sm:$0xf]
        %v1605 = vld [vmem:[%s1575 + $0x74] sm:$0xf]
        %v1606 = vld [vmem:[%s1575 + $0x78] sm:$0xf]
        %v1607 = vld [vmem:[%s1575 + $0x7c] sm:$0xf]
        %v1608 = vld [vmem:[%s1575 + $0x80] sm:$0xf]
        %v1609 = vld [vmem:[%s1575 + $0x84] sm:$0xf]
        %v1610 = vld [vmem:[%s1575 + $0x88] sm:$0xf]
        %v1611 = vld [vmem:[%s1575 + $0x8c] sm:$0xf]
        %v1612 = vunpack.c.l.b16 %v1522
        %v1613 = vunpack.c.h.b16 %v1522
        %v1614 = vunpack.c.l.b16 %v1526
        %v1615 = vunpack.c.l.b16 %v1529
        %v1616 = vunpack.c.h.b16 %v1529
        %v1617 = vunpack.c.l.b16 %v1532
        %v1618 = vunpack.c.l.b16 %v1536
        %v1619 = vunpack.c.h.b16 %v1536
        %v1620 = vunpack.c.l.b16 %v1540
        %v1621 = vunpack.c.l.b16 %v1543
        %v1622 = vunpack.c.h.b16 %v1543
        %v1623 = vunpack.c.l.b16 %v1546
        %v1624 = vunpack.c.l.b16 %v1550
        %v1625 = vunpack.c.h.b16 %v1550
        %v1626 = vunpack.c.l.b16 %v1554
        %v1627 = vunpack.c.l.b16 %v1557
        %v1628 = vunpack.c.h.b16 %v1557
        %v1629 = vunpack.c.l.b16 %v1560
        %v1630 = vunpack.c.l.b16 %v1564
        %v1631 = vunpack.c.h.b16 %v1564
        %v1632 = vunpack.c.l.b16 %v1568
        %v1633 = vunpack.c.l.b16 %v1571
        %v1634 = vunpack.c.h.b16 %v1571
        %v1635 = vunpack.c.l.b16 %v1574
        %v1636 = vpack.c.b16 %v1615, %v1612
        %v1637 = vpack.c.b16 %v1616, %v1613
        %v1638 = vpack.c.b16 %v1617, %v1614
        %v1639 = vpack.c.b16 %v1621, %v1618
        %v1640 = vpack.c.b16 %v1622, %v1619
        %v1641 = vpack.c.b16 %v1623, %v1620
        %v1642 = vpack.c.b16 %v1627, %v1624
        %v1643 = vpack.c.b16 %v1628, %v1625
        %v1644 = vpack.c.b16 %v1629, %v1626
        %v1645 = vpack.c.b16 %v1633, %v1630
        %v1646 = vpack.c.b16 %v1634, %v1631
        %v1647 = vpack.c.b16 %v1635, %v1632
        %v1692 = vunpack.c.l.b16 %v1576
        %v1693 = vunpack.c.l.b16 %v1577
        %v1694 = vunpack.c.l.b16 %v1578
        %v1695 = vunpack.c.l.b16 %v1579
        %v1696 = vunpack.c.l.b16 %v1580
        %v1697 = vunpack.c.l.b16 %v1581
        %v1698 = vunpack.c.l.b16 %v1582
        %v1699 = vunpack.c.l.b16 %v1583
        %v1700 = vunpack.c.l.b16 %v1584
        %v1701 = vunpack.c.l.b16 %v1585
        %v1702 = vunpack.c.l.b16 %v1586
        %v1703 = vunpack.c.l.b16 %v1587
        %v1704 = vunpack.c.l.b16 %v1588
        %v1705 = vunpack.c.l.b16 %v1589
        %v1706 = vunpack.c.l.b16 %v1590
        %v1707 = vunpack.c.l.b16 %v1591
        %v1708 = vunpack.c.l.b16 %v1592
        %v1709 = vunpack.c.l.b16 %v1593
        %v1710 = vunpack.c.l.b16 %v1594
        %v1711 = vunpack.c.l.b16 %v1595
        %v1712 = vunpack.c.l.b16 %v1596
        %v1713 = vunpack.c.l.b16 %v1597
        %v1714 = vunpack.c.l.b16 %v1598
        %v1715 = vunpack.c.l.b16 %v1599
        %v1716 = vunpack.c.l.b16 %v1600
        %v1717 = vunpack.c.l.b16 %v1601
        %v1718 = vunpack.c.l.b16 %v1602
        %v1719 = vunpack.c.l.b16 %v1603
        %v1720 = vunpack.c.l.b16 %v1604
        %v1721 = vunpack.c.l.b16 %v1605
        %v1722 = vunpack.c.l.b16 %v1606
        %v1723 = vunpack.c.l.b16 %v1607
        %v1724 = vunpack.c.l.b16 %v1608
        %v1725 = vunpack.c.l.b16 %v1609
        %v1726 = vunpack.c.l.b16 %v1610
        %v1727 = vunpack.c.l.b16 %v1611
        %v1728 = vpack.c.b16 %v1693, %v1692
        %v1729 = vpack.c.b16 %v1695, %v1694
        %v1730 = vpack.c.b16 %v1697, %v1696
        %v1731 = vpack.c.b16 %v1699, %v1698
        %v1732 = vpack.c.b16 %v1701, %v1700
        %v1733 = vpack.c.b16 %v1703, %v1702
        %v1734 = vpack.c.b16 %v1705, %v1704
        %v1735 = vpack.c.b16 %v1707, %v1706
        %v1736 = vpack.c.b16 %v1709, %v1708
        %v1737 = vpack.c.b16 %v1711, %v1710
        %v1738 = vpack.c.b16 %v1713, %v1712
        %v1739 = vpack.c.b16 %v1715, %v1714
        %v1740 = vpack.c.b16 %v1717, %v1716
        %v1741 = vpack.c.b16 %v1719, %v1718
        %v1742 = vpack.c.b16 %v1721, %v1720
        %v1743 = vpack.c.b16 %v1723, %v1722
        %v1744 = vpack.c.b16 %v1725, %v1724
        %v1745 = vpack.c.b16 %v1727, %v1726
        %v1765 = vsel %vm1039, %v1638, 0
        %v1768 = vsel %vm1039, %v1641, 0
        %v1771 = vsel %vm1039, %v1644, 0
        %v1774 = vsel %vm1039, %v1647, 0
        %1776 = vmatprep.subr.bf16.mxu0 0
        %1777 = vmatpush1.bf16.msra.mxu0 %v1728
        %1778 = vmatprep.subr.bf16.mxu0 0
        %1779 = vmatpush1.bf16.msra.mxu0 %v1729
        %1780 = vmatprep.subr.bf16.mxu0 0
        %1781 = vmatpush1.bf16.msra.mxu0 %v1730
        %1782 = vmatprep.subr.bf16.mxu0 0
        %1783 = vmatpush1.bf16.msra.mxu0 %v1731
        %1784 = vmatprep.subr.bf16.mxu0 0
        %1785 = vmatpush1.bf16.msra.mxu0 %v1732
        %1786 = vmatprep.subr.bf16.mxu0 0
        %1787 = vmatpush1.bf16.msra.mxu0 %v1733
        %1788 = vmatprep.subr.bf16.mxu0 0
        %1789 = vmatpush1.bf16.msra.mxu0 %v1734
        %1790 = vmatprep.subr.bf16.mxu0 0
        %1791 = vmatpush1.bf16.msra.mxu0 %v1735
        %1792 = vmatprep.subr.bf16.mxu0 0
        %1793 = vmatpush1.bf16.msra.mxu0 %v1736
        %1794 = vmatprep.subr.bf16.mxu0 0
        %1795 = vmatpush1.bf16.msra.mxu0 %v1737
        %1796 = vmatprep.subr.bf16.mxu0 0
        %1797 = vmatpush1.bf16.msra.mxu0 %v1738
        %1798 = vmatprep.subr.bf16.mxu0 0
        %1799 = vmatpush1.bf16.msra.mxu0 %v1739
        %1800 = vmatprep.subr.bf16.mxu0 0
        %1801 = vmatpush1.bf16.msra.mxu0 %v1740
        %1802 = vmatprep.subr.bf16.mxu0 0
        %1803 = vmatpush1.bf16.msra.mxu0 %v1741
        %1804 = vmatprep.subr.bf16.mxu0 0
        %1805 = vmatpush1.bf16.msra.mxu0 %v1742
        %1806 = vmatprep.subr.bf16.mxu0 0
        %1807 = vmatpush1.bf16.msra.mxu0 %v1743
        %1808 = vmatprep.mubr.bf16.mxu0 %v1637
        %1809 = vmatmul.mubr.bf16.gmra.mrb[0].mxu0 %v1636
        %v1810 = vpop.f32.mrb[0].mxu0
        %v1811 = vadd.f32 0.0, %v1810
        %v1812 = vpop.f32.mrb[0].mxu0
        %v1813 = vpop.f32.mrb[0].mxu0
        %v1814 = vadd.f32 0.0, %v1813
        %v1815 = vpop.f32.mrb[0].mxu0
        %1816 = vmatprep.mubr.bf16.mxu0 %v1640
        %1817 = vmatmul.mubr.bf16.gmra.mrb[0].mxu0 %v1639
        %v1818 = vpop.f32.mrb[0].mxu0
        %v1819 = vadd.f32 0.0, %v1818
        %v1820 = vpop.f32.mrb[0].mxu0
        %v1821 = vpop.f32.mrb[0].mxu0
        %v1822 = vadd.f32 0.0, %v1821
        %v1823 = vpop.f32.mrb[0].mxu0
        %1824 = vmatprep.mubr.bf16.mxu0 %v1643
        %1825 = vmatmul.mubr.bf16.gmra.mrb[0].mxu0 %v1642
        %v1826 = vpop.f32.mrb[0].mxu0
        %v1827 = vadd.f32 0.0, %v1826
        %v1828 = vpop.f32.mrb[0].mxu0
        %v1829 = vpop.f32.mrb[0].mxu0
        %v1830 = vadd.f32 0.0, %v1829
        %v1831 = vpop.f32.mrb[0].mxu0
        %1832 = vmatprep.mubr.bf16.mxu0 %v1646
        %1833 = vmatmul.mubr.bf16.gmra.mrb[0].mxu0 %v1645
        %v1834 = vpop.f32.mrb[0].mxu0
        %v1835 = vadd.f32 0.0, %v1834
        %v1836 = vpop.f32.mrb[0].mxu0
        %v1837 = vpop.f32.mrb[0].mxu0
        %v1838 = vadd.f32 0.0, %v1837
        %v1839 = vpop.f32.mrb[0].mxu0
        %1840 = vdwg.mxu0
        %1841 = vmatprep.subr.bf16.mxu0 0
        %1842 = vmatpush1.bf16.msra.mxu0 %v1744
        %1843 = vmatprep.subr.bf16.mxu0 0
        %1844 = vmatpush1.bf16.msra.mxu0 %v1745
        %1845 = vmatprep.subr.bf16.mxu0 0
        %1846 = vmatpush1.bf16.msra.mxu0 0
        %1847 = vmatprep.subr.bf16.mxu0 0
        %1848 = vmatpush1.bf16.msra.mxu0 0
        %1849 = vmatprep.subr.bf16.mxu0 0
        %1850 = vmatpush1.bf16.msra.mxu0 0
        %1851 = vmatprep.subr.bf16.mxu0 0
        %1852 = vmatpush1.bf16.msra.mxu0 0
        %1853 = vmatprep.subr.bf16.mxu0 0
        %1854 = vmatpush1.bf16.msra.mxu0 0
        %1855 = vmatprep.subr.bf16.mxu0 0
        %1856 = vmatpush1.bf16.msra.mxu0 0
        %1857 = vmatprep.subr.bf16.mxu0 0
        %1858 = vmatpush1.bf16.msra.mxu0 0
        %1859 = vmatprep.subr.bf16.mxu0 0
        %1860 = vmatpush1.bf16.msra.mxu0 0
        %1861 = vmatprep.subr.bf16.mxu0 0
        %1862 = vmatpush1.bf16.msra.mxu0 0
        %1863 = vmatprep.subr.bf16.mxu0 0
        %1864 = vmatpush1.bf16.msra.mxu0 0
        %1865 = vmatprep.subr.bf16.mxu0 0
        %1866 = vmatpush1.bf16.msra.mxu0 0
        %1867 = vmatprep.subr.bf16.mxu0 0
        %1868 = vmatpush1.bf16.msra.mxu0 0
        %1869 = vmatprep.subr.bf16.mxu0 0
        %1870 = vmatpush1.bf16.msra.mxu0 0
        %1871 = vmatprep.subr.bf16.mxu0 0
        %1872 = vmatpush1.bf16.msra.mxu0 0
        %1873 = vmatprep.mubr.bf16.mxu0 0
        %1874 = vmatmul.mubr.bf16.gmra.mrb[0].mxu0 %v1765
        %v1875 = vpop.f32.mrb[0].mxu0
        %v1876 = vadd.f32 %v1811, %v1875
        %v1877 = vpop.f32.mrb[0].mxu0
        %v1878 = vpop.f32.mrb[0].mxu0
        %v1879 = vadd.f32 %v1814, %v1878
        %v1880 = vpop.f32.mrb[0].mxu0
        %1881 = vmatprep.mubr.bf16.mxu0 0
        %1882 = vmatmul.mubr.bf16.gmra.mrb[0].mxu0 %v1768
        %v1883 = vpop.f32.mrb[0].mxu0
        %v1884 = vadd.f32 %v1819, %v1883
        %v1885 = vpop.f32.mrb[0].mxu0
        %v1886 = vpop.f32.mrb[0].mxu0
        %v1887 = vadd.f32 %v1822, %v1886
        %v1888 = vpop.f32.mrb[0].mxu0
        %1889 = vmatprep.mubr.bf16.mxu0 0
        %1890 = vmatmul.mubr.bf16.gmra.mrb[0].mxu0 %v1771
        %v1891 = vpop.f32.mrb[0].mxu0
        %v1892 = vadd.f32 %v1827, %v1891
        %v1893 = vpop.f32.mrb[0].mxu0
        %v1894 = vpop.f32.mrb[0].mxu0
        %v1895 = vadd.f32 %v1830, %v1894
        %v1896 = vpop.f32.mrb[0].mxu0
        %1897 = vmatprep.mubr.bf16.mxu0 0
        %1898 = vmatmul.mubr.bf16.gmra.mrb[0].mxu0 %v1774
        %v1899 = vpop.f32.mrb[0].mxu0
        %v1900 = vadd.f32 %v1835, %v1899
        %v1901 = vpop.f32.mrb[0].mxu0
        %v1902 = vpop.f32.mrb[0].mxu0
        %v1903 = vadd.f32 %v1838, %v1902
        %v1904 = vpop.f32.mrb[0].mxu0
        %1905 = vdwg.mxu0
        %v1906 = vadd.f32 %v1462, %v1876
        %v1907 = vadd.f32 %v1465, %v1879
        %v1908 = vadd.f32 %v1470, %v1884
        %v1909 = vadd.f32 %v1473, %v1887
        %v1910 = vadd.f32 %v1478, %v1892
        %v1911 = vadd.f32 %v1481, %v1895
        %v1912 = vadd.f32 %v1486, %v1900
        %v1913 = vadd.f32 %v1489, %v1903
        %v1914 = vld [vmem:[%s517] sm:$0xff]
        %v1915 = vld [vmem:[%s517 + $0x8] sm:$0xf]
        %v1916 = vld [vmem:[%s517 + $0xc] sm:$0xff]
        %v1917 = vld [vmem:[%s517 + $0x14] sm:$0xf]
        %v1918 = vld [vmem:[%s517 + $0x24] sm:$0xff]
        %v1919 = vld [vmem:[%s517 + $0x2c] sm:$0xf]
        %v1920 = vld [vmem:[%s517 + $0x30] sm:$0xff]
        %v1921 = vld [vmem:[%s517 + $0x38] sm:$0xf]
        %v1922 = vld [vmem:[%s517 + $0x48] sm:$0xff]
        %v1923 = vld [vmem:[%s517 + $0x50] sm:$0xf]
        %v1924 = vld [vmem:[%s517 + $0x54] sm:$0xff]
        %v1925 = vld [vmem:[%s517 + $0x5c] sm:$0xf]
        %v1926 = vld [vmem:[%s517 + $0x6c] sm:$0xff]
        %v1927 = vld [vmem:[%s517 + $0x74] sm:$0xf]
        %v1928 = vld [vmem:[%s517 + $0x78] sm:$0xff]
        %v1929 = vld [vmem:[%s517 + $0x80] sm:$0xf]
        %s1930 = scalar_lea.vmem [#allocation7], 432
        %v1931 = vld [vmem:[%s1930] sm:$0xf]
        %v1932 = vld [vmem:[%s1930 + $0x4] sm:$0xf]
        %v1933 = vld [vmem:[%s1930 + $0x8] sm:$0xf]
        %v1934 = vld [vmem:[%s1930 + $0xc] sm:$0xf]
        %v1935 = vld [vmem:[%s1930 + $0x10] sm:$0xf]
        %v1936 = vld [vmem:[%s1930 + $0x14] sm:$0xf]
        %v1937 = vld [vmem:[%s1930 + $0x18] sm:$0xf]
        %v1938 = vld [vmem:[%s1930 + $0x1c] sm:$0xf]
        %v1939 = vld [vmem:[%s1930 + $0x20] sm:$0xf]
        %v1940 = vld [vmem:[%s1930 + $0x24] sm:$0xf]
        %v1941 = vld [vmem:[%s1930 + $0x28] sm:$0xf]
        %v1942 = vld [vmem:[%s1930 + $0x2c] sm:$0xf]
        %v1943 = vld [vmem:[%s1930 + $0x30] sm:$0xf]
        %v1944 = vld [vmem:[%s1930 + $0x34] sm:$0xf]
        %v1945 = vld [vmem:[%s1930 + $0x38] sm:$0xf]
        %v1946 = vld [vmem:[%s1930 + $0x3c] sm:$0xf]
        %v1947 = vld [vmem:[%s1930 + $0x40] sm:$0xf]
        %v1948 = vld [vmem:[%s1930 + $0x44] sm:$0xf]
        %v1949 = vld [vmem:[%s1930 + $0x48] sm:$0xf]
        %v1950 = vld [vmem:[%s1930 + $0x4c] sm:$0xf]
        %v1951 = vld [vmem:[%s1930 + $0x50] sm:$0xf]
        %v1952 = vld [vmem:[%s1930 + $0x54] sm:$0xf]
        %v1953 = vld [vmem:[%s1930 + $0x58] sm:$0xf]
        %v1954 = vld [vmem:[%s1930 + $0x5c] sm:$0xf]
        %v1955 = vld [vmem:[%s1930 + $0x60] sm:$0xf]
        %v1956 = vld [vmem:[%s1930 + $0x64] sm:$0xf]
        %v1957 = vld [vmem:[%s1930 + $0x68] sm:$0xf]
        %v1958 = vld [vmem:[%s1930 + $0x6c] sm:$0xf]
        %v1959 = vld [vmem:[%s1930 + $0x70] sm:$0xf]
        %v1960 = vld [vmem:[%s1930 + $0x74] sm:$0xf]
        %v1961 = vld [vmem:[%s1930 + $0x78] sm:$0xf]
        %v1962 = vld [vmem:[%s1930 + $0x7c] sm:$0xf]
        %v1963 = vld [vmem:[%s1930 + $0x80] sm:$0xf]
        %v1964 = vld [vmem:[%s1930 + $0x84] sm:$0xf]
        %v1965 = vld [vmem:[%s1930 + $0x88] sm:$0xf]
        %v1966 = vld [vmem:[%s1930 + $0x8c] sm:$0xf]
        %v1983 = vunpack.c.l.b16 %v1914
        %v1984 = vunpack.c.h.b16 %v1914
        %v1985 = vunpack.c.l.b16 %v1915
        %v1986 = vunpack.c.l.b16 %v1916
        %v1987 = vunpack.c.h.b16 %v1916
        %v1988 = vunpack.c.l.b16 %v1917
        %v1989 = vunpack.c.l.b16 %v1918
        %v1990 = vunpack.c.h.b16 %v1918
        %v1991 = vunpack.c.l.b16 %v1919
        %v1992 = vunpack.c.l.b16 %v1920
        %v1993 = vunpack.c.h.b16 %v1920
        %v1994 = vunpack.c.l.b16 %v1921
        %v1995 = vunpack.c.l.b16 %v1922
        %v1996 = vunpack.c.h.b16 %v1922
        %v1997 = vunpack.c.l.b16 %v1923
        %v1998 = vunpack.c.l.b16 %v1924
        %v1999 = vunpack.c.h.b16 %v1924
        %v2000 = vunpack.c.l.b16 %v1925
        %v2001 = vunpack.c.l.b16 %v1926
        %v2002 = vunpack.c.h.b16 %v1926
        %v2003 = vunpack.c.l.b16 %v1927
        %v2004 = vunpack.c.l.b16 %v1928
        %v2005 = vunpack.c.h.b16 %v1928
        %v2006 = vunpack.c.l.b16 %v1929
        %v2007 = vpack.c.b16 %v1986, %v1983
        %v2008 = vpack.c.b16 %v1987, %v1984
        %v2009 = vpack.c.b16 %v1988, %v1985
        %v2010 = vpack.c.b16 %v1992, %v1989
        %v2011 = vpack.c.b16 %v1993, %v1990
        %v2012 = vpack.c.b16 %v1994, %v1991
        %v2013 = vpack.c.b16 %v1998, %v1995
        %v2014 = vpack.c.b16 %v1999, %v1996
        %v2015 = vpack.c.b16 %v2000, %v1997
        %v2016 = vpack.c.b16 %v2004, %v2001
        %v2017 = vpack.c.b16 %v2005, %v2002
        %v2018 = vpack.c.b16 %v2006, %v2003
        %v2063 = vunpack.c.l.b16 %v1931
        %v2064 = vunpack.c.l.b16 %v1932
        %v2065 = vunpack.c.l.b16 %v1933
        %v2066 = vunpack.c.l.b16 %v1934
        %v2067 = vunpack.c.l.b16 %v1935
        %v2068 = vunpack.c.l.b16 %v1936
        %v2069 = vunpack.c.l.b16 %v1937
        %v2070 = vunpack.c.l.b16 %v1938
        %v2071 = vunpack.c.l.b16 %v1939
        %v2072 = vunpack.c.l.b16 %v1940
        %v2073 = vunpack.c.l.b16 %v1941
        %v2074 = vunpack.c.l.b16 %v1942
        %v2075 = vunpack.c.l.b16 %v1943
        %v2076 = vunpack.c.l.b16 %v1944
        %v2077 = vunpack.c.l.b16 %v1945
        %v2078 = vunpack.c.l.b16 %v1946
        %v2079 = vunpack.c.l.b16 %v1947
        %v2080 = vunpack.c.l.b16 %v1948
        %v2081 = vunpack.c.l.b16 %v1949
        %v2082 = vunpack.c.l.b16 %v1950
        %v2083 = vunpack.c.l.b16 %v1951
        %v2084 = vunpack.c.l.b16 %v1952
        %v2085 = vunpack.c.l.b16 %v1953
        %v2086 = vunpack.c.l.b16 %v1954
        %v2087 = vunpack.c.l.b16 %v1955
        %v2088 = vunpack.c.l.b16 %v1956
        %v2089 = vunpack.c.l.b16 %v1957
        %v2090 = vunpack.c.l.b16 %v1958
        %v2091 = vunpack.c.l.b16 %v1959
        %v2092 = vunpack.c.l.b16 %v1960
        %v2093 = vunpack.c.l.b16 %v1961
        %v2094 = vunpack.c.l.b16 %v1962
        %v2095 = vunpack.c.l.b16 %v1963
        %v2096 = vunpack.c.l.b16 %v1964
        %v2097 = vunpack.c.l.b16 %v1965
        %v2098 = vunpack.c.l.b16 %v1966
        %v2099 = vpack.c.b16 %v2064, %v2063
        %v2100 = vpack.c.b16 %v2066, %v2065
        %v2101 = vpack.c.b16 %v2068, %v2067
        %v2102 = vpack.c.b16 %v2070, %v2069
        %v2103 = vpack.c.b16 %v2072, %v2071
        %v2104 = vpack.c.b16 %v2074, %v2073
        %v2105 = vpack.c.b16 %v2076, %v2075
        %v2106 = vpack.c.b16 %v2078, %v2077
        %v2107 = vpack.c.b16 %v2080, %v2079
        %v2108 = vpack.c.b16 %v2082, %v2081
        %v2109 = vpack.c.b16 %v2084, %v2083
        %v2110 = vpack.c.b16 %v2086, %v2085
        %v2111 = vpack.c.b16 %v2088, %v2087
        %v2112 = vpack.c.b16 %v2090, %v2089
        %v2113 = vpack.c.b16 %v2092, %v2091
        %v2114 = vpack.c.b16 %v2094, %v2093
        %v2115 = vpack.c.b16 %v2096, %v2095
        %v2116 = vpack.c.b16 %v2098, %v2097
        %v2136 = vsel %vm1039, %v2009, 0
        %v2139 = vsel %vm1039, %v2012, 0
        %v2142 = vsel %vm1039, %v2015, 0
        %v2145 = vsel %vm1039, %v2018, 0
        %2147 = vmatprep.subr.bf16.mxu0 0
        %2148 = vmatpush1.bf16.msra.mxu0 %v2099
        %2149 = vmatprep.subr.bf16.mxu0 0
        %2150 = vmatpush1.bf16.msra.mxu0 %v2100
        %2151 = vmatprep.subr.bf16.mxu0 0
        %2152 = vmatpush1.bf16.msra.mxu0 %v2101
        %2153 = vmatprep.subr.bf16.mxu0 0
        %2154 = vmatpush1.bf16.msra.mxu0 %v2102
        %2155 = vmatprep.subr.bf16.mxu0 0
        %2156 = vmatpush1.bf16.msra.mxu0 %v2103
        %2157 = vmatprep.subr.bf16.mxu0 0
        %2158 = vmatpush1.bf16.msra.mxu0 %v2104
        %2159 = vmatprep.subr.bf16.mxu0 0
        %2160 = vmatpush1.bf16.msra.mxu0 %v2105
        %2161 = vmatprep.subr.bf16.mxu0 0
        %2162 = vmatpush1.bf16.msra.mxu0 %v2106
        %2163 = vmatprep.subr.bf16.mxu0 0
        %2164 = vmatpush1.bf16.msra.mxu0 %v2107
        %2165 = vmatprep.subr.bf16.mxu0 0
        %2166 = vmatpush1.bf16.msra.mxu0 %v2108
        %2167 = vmatprep.subr.bf16.mxu0 0
        %2168 = vmatpush1.bf16.msra.mxu0 %v2109
        %2169 = vmatprep.subr.bf16.mxu0 0
        %2170 = vmatpush1.bf16.msra.mxu0 %v2110
        %2171 = vmatprep.subr.bf16.mxu0 0
        %2172 = vmatpush1.bf16.msra.mxu0 %v2111
        %2173 = vmatprep.subr.bf16.mxu0 0
        %2174 = vmatpush1.bf16.msra.mxu0 %v2112
        %2175 = vmatprep.subr.bf16.mxu0 0
        %2176 = vmatpush1.bf16.msra.mxu0 %v2113
        %2177 = vmatprep.subr.bf16.mxu0 0
        %2178 = vmatpush1.bf16.msra.mxu0 %v2114
        %2179 = vmatprep.mubr.bf16.mxu0 %v2008
        %2180 = vmatmul.mubr.bf16.gmra.mrb[0].mxu0 %v2007
        %v2181 = vpop.f32.mrb[0].mxu0
        %v2182 = vadd.f32 0.0, %v2181
        %v2183 = vpop.f32.mrb[0].mxu0
        %v2184 = vpop.f32.mrb[0].mxu0
        %v2185 = vadd.f32 0.0, %v2184
        %v2186 = vpop.f32.mrb[0].mxu0
        %2187 = vmatprep.mubr.bf16.mxu0 %v2011
        %2188 = vmatmul.mubr.bf16.gmra.mrb[0].mxu0 %v2010
        %v2189 = vpop.f32.mrb[0].mxu0
        %v2190 = vadd.f32 0.0, %v2189
        %v2191 = vpop.f32.mrb[0].mxu0
        %v2192 = vpop.f32.mrb[0].mxu0
        %v2193 = vadd.f32 0.0, %v2192
        %v2194 = vpop.f32.mrb[0].mxu0
        %2195 = vmatprep.mubr.bf16.mxu0 %v2014
        %2196 = vmatmul.mubr.bf16.gmra.mrb[0].mxu0 %v2013
        %v2197 = vpop.f32.mrb[0].mxu0
        %v2198 = vadd.f32 0.0, %v2197
        %v2199 = vpop.f32.mrb[0].mxu0
        %v2200 = vpop.f32.mrb[0].mxu0
        %v2201 = vadd.f32 0.0, %v2200
        %v2202 = vpop.f32.mrb[0].mxu0
        %2203 = vmatprep.mubr.bf16.mxu0 %v2017
        %2204 = vmatmul.mubr.bf16.gmra.mrb[0].mxu0 %v2016
        %v2205 = vpop.f32.mrb[0].mxu0
        %v2206 = vadd.f32 0.0, %v2205
        %v2207 = vpop.f32.mrb[0].mxu0
        %v2208 = vpop.f32.mrb[0].mxu0
        %v2209 = vadd.f32 0.0, %v2208
        %v2210 = vpop.f32.mrb[0].mxu0
        %2211 = vdwg.mxu0
        %2212 = vmatprep.subr.bf16.mxu0 0
        %2213 = vmatpush1.bf16.msra.mxu0 %v2115
        %2214 = vmatprep.subr.bf16.mxu0 0
        %2215 = vmatpush1.bf16.msra.mxu0 %v2116
        %2216 = vmatprep.subr.bf16.mxu0 0
        %2217 = vmatpush1.bf16.msra.mxu0 0
        %2218 = vmatprep.subr.bf16.mxu0 0
        %2219 = vmatpush1.bf16.msra.mxu0 0
        %2220 = vmatprep.subr.bf16.mxu0 0
        %2221 = vmatpush1.bf16.msra.mxu0 0
        %2222 = vmatprep.subr.bf16.mxu0 0
        %2223 = vmatpush1.bf16.msra.mxu0 0
        %2224 = vmatprep.subr.bf16.mxu0 0
        %2225 = vmatpush1.bf16.msra.mxu0 0
        %2226 = vmatprep.subr.bf16.mxu0 0
        %2227 = vmatpush1.bf16.msra.mxu0 0
        %2228 = vmatprep.subr.bf16.mxu0 0
        %2229 = vmatpush1.bf16.msra.mxu0 0
        %2230 = vmatprep.subr.bf16.mxu0 0
        %2231 = vmatpush1.bf16.msra.mxu0 0
        %2232 = vmatprep.subr.bf16.mxu0 0
        %2233 = vmatpush1.bf16.msra.mxu0 0
        %2234 = vmatprep.subr.bf16.mxu0 0
        %2235 = vmatpush1.bf16.msra.mxu0 0
        %2236 = vmatprep.subr.bf16.mxu0 0
        %2237 = vmatpush1.bf16.msra.mxu0 0
        %2238 = vmatprep.subr.bf16.mxu0 0
        %2239 = vmatpush1.bf16.msra.mxu0 0
        %2240 = vmatprep.subr.bf16.mxu0 0
        %2241 = vmatpush1.bf16.msra.mxu0 0
        %2242 = vmatprep.subr.bf16.mxu0 0
        %2243 = vmatpush1.bf16.msra.mxu0 0
        %2244 = vmatprep.mubr.bf16.mxu0 0
        %2245 = vmatmul.mubr.bf16.gmra.mrb[0].mxu0 %v2136
        %v2246 = vpop.f32.mrb[0].mxu0
        %v2247 = vadd.f32 %v2182, %v2246
        %v2248 = vpop.f32.mrb[0].mxu0
        %v2249 = vpop.f32.mrb[0].mxu0
        %v2250 = vadd.f32 %v2185, %v2249
        %v2251 = vpop.f32.mrb[0].mxu0
        %2252 = vmatprep.mubr.bf16.mxu0 0
        %2253 = vmatmul.mubr.bf16.gmra.mrb[0].mxu0 %v2139
        %v2254 = vpop.f32.mrb[0].mxu0
        %v2255 = vadd.f32 %v2190, %v2254
        %v2256 = vpop.f32.mrb[0].mxu0
        %v2257 = vpop.f32.mrb[0].mxu0
        %v2258 = vadd.f32 %v2193, %v2257
        %v2259 = vpop.f32.mrb[0].mxu0
        %2260 = vmatprep.mubr.bf16.mxu0 0
        %2261 = vmatmul.mubr.bf16.gmra.mrb[0].mxu0 %v2142
        %v2262 = vpop.f32.mrb[0].mxu0
        %v2263 = vadd.f32 %v2198, %v2262
        %v2264 = vpop.f32.mrb[0].mxu0
        %v2265 = vpop.f32.mrb[0].mxu0
        %v2266 = vadd.f32 %v2201, %v2265
        %v2267 = vpop.f32.mrb[0].mxu0
        %2268 = vmatprep.mubr.bf16.mxu0 0
        %2269 = vmatmul.mubr.bf16.gmra.mrb[0].mxu0 %v2145
        %v2270 = vpop.f32.mrb[0].mxu0
        %v2271 = vadd.f32 %v2206, %v2270
        %v2272 = vpop.f32.mrb[0].mxu0
        %v2273 = vpop.f32.mrb[0].mxu0
        %v2274 = vadd.f32 %v2209, %v2273
        %v2275 = vpop.f32.mrb[0].mxu0
        %2276 = vdwg.mxu0
        %v2277 = vadd.f32 %v1906, %v2247
        %v2278 = vadd.f32 %v1907, %v2250
        %v2279 = vadd.f32 %v1908, %v2255
        %v2280 = vadd.f32 %v1909, %v2258
        %v2281 = vadd.f32 %v1910, %v2263
        %v2282 = vadd.f32 %v1911, %v2266
        %v2283 = vadd.f32 %v1912, %v2271
        %v2284 = vadd.f32 %v1913, %v2274
        %v2285 = vld [vmem:[%s517] sm:$0xff]
        %v2286 = vld [vmem:[%s517 + $0x8] sm:$0xf]
        %v2287 = vld [vmem:[%s517 + $0xc] sm:$0xff]
        %v2288 = vld [vmem:[%s517 + $0x14] sm:$0xf]
        %v2289 = vld [vmem:[%s517 + $0x18] sm:$0x11]
        %v2290 = vld [vmem:[%s517 + $0x20] sm:$0x1]
        %v2291 = vld [vmem:[%s517 + $0x24] sm:$0xff]
        %v2292 = vld [vmem:[%s517 + $0x2c] sm:$0xf]
        %v2293 = vld [vmem:[%s517 + $0x30] sm:$0xff]
        %v2294 = vld [vmem:[%s517 + $0x38] sm:$0xf]
        %v2295 = vld [vmem:[%s517 + $0x3c] sm:$0x11]
        %v2296 = vld [vmem:[%s517 + $0x44] sm:$0x1]
        %v2297 = vld [vmem:[%s517 + $0x48] sm:$0xff]
        %v2298 = vld [vmem:[%s517 + $0x50] sm:$0xf]
        %v2299 = vld [vmem:[%s517 + $0x54] sm:$0xff]
        %v2300 = vld [vmem:[%s517 + $0x5c] sm:$0xf]
        %v2301 = vld [vmem:[%s517 + $0x60] sm:$0x11]
        %v2302 = vld [vmem:[%s517 + $0x68] sm:$0x1]
        %v2303 = vld [vmem:[%s517 + $0x6c] sm:$0xff]
        %v2304 = vld [vmem:[%s517 + $0x74] sm:$0xf]
        %v2305 = vld [vmem:[%s517 + $0x78] sm:$0xff]
        %v2306 = vld [vmem:[%s517 + $0x80] sm:$0xf]
        %v2307 = vld [vmem:[%s517 + $0x84] sm:$0x11]
        %v2308 = vld [vmem:[%s517 + $0x8c] sm:$0x1]
        %v2310 = vshrl.u32 %v2285, 16
        %v2312 = vrot.slane %v2310, 4
        %v2313 = vshll.u32 %v2285, 16
        %v2315 = vrot.slane %v2313, 5
        %v2316 = vor.u32 %v2312, %v2315
        %v2317 = vrot.slane %v2316, 4
        %v2319 = vshll.u32 %v2287, 16
        %v2321 = vrot.slane %v2319, 5
        %v2322 = vsel %vm657, %v2317, %v2321
        %v2324 = vshrl.u32 %v2286, 16
        %v2326 = vrot.slane %v2324, 4
        %v2327 = vshll.u32 %v2286, 16
        %v2329 = vrot.slane %v2327, 5
        %v2330 = vor.u32 %v2326, %v2329
        %v2331 = vrot.slane %v2330, 4
        %v2333 = vshll.u32 %v2288, 16
        %v2335 = vrot.slane %v2333, 5
        %v2336 = vsel %vm657, %v2331, %v2335
        %v2337 = vshrl.u32 %v2287, 16
        %v2339 = vrot.slane %v2337, 4
        %v2340 = vor.u32 %v2339, %v2321
        %v2341 = vrot.slane %v2340, 4
        %v2343 = vshll.u32 %v2289, 16
        %v2345 = vrot.slane %v2343, 5
        %v2346 = vsel %vm657, %v2341, %v2345
        %v2347 = vshrl.u32 %v2288, 16
        %v2349 = vrot.slane %v2347, 4
        %v2350 = vor.u32 %v2349, %v2335
        %v2351 = vrot.slane %v2350, 4
        %v2353 = vshll.u32 %v2290, 16
        %v2355 = vrot.slane %v2353, 5
        %v2356 = vsel %vm657, %v2351, %v2355
        %v2358 = vshrl.u32 %v2291, 16
        %v2360 = vrot.slane %v2358, 4
        %v2361 = vshll.u32 %v2291, 16
        %v2363 = vrot.slane %v2361, 5
        %v2364 = vor.u32 %v2360, %v2363
        %v2365 = vrot.slane %v2364, 4
        %v2367 = vshll.u32 %v2293, 16
        %v2369 = vrot.slane %v2367, 5
        %v2370 = vsel %vm657, %v2365, %v2369
        %v2372 = vshrl.u32 %v2292, 16
        %v2374 = vrot.slane %v2372, 4
        %v2375 = vshll.u32 %v2292, 16
        %v2377 = vrot.slane %v2375, 5
        %v2378 = vor.u32 %v2374, %v2377
        %v2379 = vrot.slane %v2378, 4
        %v2381 = vshll.u32 %v2294, 16
        %v2383 = vrot.slane %v2381, 5
        %v2384 = vsel %vm657, %v2379, %v2383
        %v2385 = vshrl.u32 %v2293, 16
        %v2387 = vrot.slane %v2385, 4
        %v2388 = vor.u32 %v2387, %v2369
        %v2389 = vrot.slane %v2388, 4
        %v2391 = vshll.u32 %v2295, 16
        %v2393 = vrot.slane %v2391, 5
        %v2394 = vsel %vm657, %v2389, %v2393
        %v2395 = vshrl.u32 %v2294, 16
        %v2397 = vrot.slane %v2395, 4
        %v2398 = vor.u32 %v2397, %v2383
        %v2399 = vrot.slane %v2398, 4
        %v2401 = vshll.u32 %v2296, 16
        %v2403 = vrot.slane %v2401, 5
        %v2404 = vsel %vm657, %v2399, %v2403
        %v2406 = vshrl.u32 %v2297, 16
        %v2408 = vrot.slane %v2406, 4
        %v2409 = vshll.u32 %v2297, 16
        %v2411 = vrot.slane %v2409, 5
        %v2412 = vor.u32 %v2408, %v2411
        %v2413 = vrot.slane %v2412, 4
        %v2415 = vshll.u32 %v2299, 16
        %v2417 = vrot.slane %v2415, 5
        %v2418 = vsel %vm657, %v2413, %v2417
        %v2420 = vshrl.u32 %v2298, 16
        %v2422 = vrot.slane %v2420, 4
        %v2423 = vshll.u32 %v2298, 16
        %v2425 = vrot.slane %v2423, 5
        %v2426 = vor.u32 %v2422, %v2425
        %v2427 = vrot.slane %v2426, 4
        %v2429 = vshll.u32 %v2300, 16
        %v2431 = vrot.slane %v2429, 5
        %v2432 = vsel %vm657, %v2427, %v2431
        %v2433 = vshrl.u32 %v2299, 16
        %v2435 = vrot.slane %v2433, 4
        %v2436 = vor.u32 %v2435, %v2417
        %v2437 = vrot.slane %v2436, 4
        %v2439 = vshll.u32 %v2301, 16
        %v2441 = vrot.slane %v2439, 5
        %v2442 = vsel %vm657, %v2437, %v2441
        %v2443 = vshrl.u32 %v2300, 16
        %v2445 = vrot.slane %v2443, 4
        %v2446 = vor.u32 %v2445, %v2431
        %v2447 = vrot.slane %v2446, 4
        %v2449 = vshll.u32 %v2302, 16
        %v2451 = vrot.slane %v2449, 5
        %v2452 = vsel %vm657, %v2447, %v2451
        %v2454 = vshrl.u32 %v2303, 16
        %v2456 = vrot.slane %v2454, 4
        %v2457 = vshll.u32 %v2303, 16
        %v2459 = vrot.slane %v2457, 5
        %v2460 = vor.u32 %v2456, %v2459
        %v2461 = vrot.slane %v2460, 4
        %v2463 = vshll.u32 %v2305, 16
        %v2465 = vrot.slane %v2463, 5
        %v2466 = vsel %vm657, %v2461, %v2465
        %v2468 = vshrl.u32 %v2304, 16
        %v2470 = vrot.slane %v2468, 4
        %v2471 = vshll.u32 %v2304, 16
        %v2473 = vrot.slane %v2471, 5
        %v2474 = vor.u32 %v2470, %v2473
        %v2475 = vrot.slane %v2474, 4
        %v2477 = vshll.u32 %v2306, 16
        %v2479 = vrot.slane %v2477, 5
        %v2480 = vsel %vm657, %v2475, %v2479
        %v2481 = vshrl.u32 %v2305, 16
        %v2483 = vrot.slane %v2481, 4
        %v2484 = vor.u32 %v2483, %v2465
        %v2485 = vrot.slane %v2484, 4
        %v2487 = vshll.u32 %v2307, 16
        %v2489 = vrot.slane %v2487, 5
        %v2490 = vsel %vm657, %v2485, %v2489
        %v2491 = vshrl.u32 %v2306, 16
        %v2493 = vrot.slane %v2491, 4
        %v2494 = vor.u32 %v2493, %v2479
        %v2495 = vrot.slane %v2494, 4
        %v2497 = vshll.u32 %v2308, 16
        %v2499 = vrot.slane %v2497, 5
        %v2500 = vsel %vm657, %v2495, %v2499
        %s2501 = scalar_lea.vmem [#allocation7], 576
        %v2502 = vld [vmem:[%s2501] sm:$0xf]
        %v2503 = vld [vmem:[%s2501 + $0x4] sm:$0xf]
        %v2504 = vld [vmem:[%s2501 + $0x8] sm:$0xf]
        %v2505 = vld [vmem:[%s2501 + $0xc] sm:$0xf]
        %v2506 = vld [vmem:[%s2501 + $0x10] sm:$0xf]
        %v2507 = vld [vmem:[%s2501 + $0x14] sm:$0xf]
        %v2508 = vld [vmem:[%s2501 + $0x18] sm:$0xf]
        %v2509 = vld [vmem:[%s2501 + $0x1c] sm:$0xf]
        %v2510 = vld [vmem:[%s2501 + $0x20] sm:$0xf]
        %v2511 = vld [vmem:[%s2501 + $0x24] sm:$0xf]
        %v2512 = vld [vmem:[%s2501 + $0x28] sm:$0xf]
        %v2513 = vld [vmem:[%s2501 + $0x2c] sm:$0xf]
        %v2514 = vld [vmem:[%s2501 + $0x30] sm:$0xf]
        %v2515 = vld [vmem:[%s2501 + $0x34] sm:$0xf]
        %v2516 = vld [vmem:[%s2501 + $0x38] sm:$0xf]
        %v2517 = vld [vmem:[%s2501 + $0x3c] sm:$0xf]
        %v2518 = vld [vmem:[%s2501 + $0x40] sm:$0xf]
        %v2519 = vld [vmem:[%s2501 + $0x44] sm:$0xf]
        %v2520 = vld [vmem:[%s2501 + $0x48] sm:$0xf]
        %v2521 = vld [vmem:[%s2501 + $0x4c] sm:$0xf]
        %v2522 = vld [vmem:[%s2501 + $0x50] sm:$0xf]
        %v2523 = vld [vmem:[%s2501 + $0x54] sm:$0xf]
        %v2524 = vld [vmem:[%s2501 + $0x58] sm:$0xf]
        %v2525 = vld [vmem:[%s2501 + $0x5c] sm:$0xf]
        %v2526 = vld [vmem:[%s2501 + $0x60] sm:$0xf]
        %v2527 = vld [vmem:[%s2501 + $0x64] sm:$0xf]
        %v2528 = vld [vmem:[%s2501 + $0x68] sm:$0xf]
        %v2529 = vld [vmem:[%s2501 + $0x6c] sm:$0xf]
        %v2530 = vld [vmem:[%s2501 + $0x70] sm:$0xf]
        %v2531 = vld [vmem:[%s2501 + $0x74] sm:$0xf]
        %v2532 = vld [vmem:[%s2501 + $0x78] sm:$0xf]
        %v2533 = vld [vmem:[%s2501 + $0x7c] sm:$0xf]
        %v2534 = vld [vmem:[%s2501 + $0x80] sm:$0xf]
        %v2535 = vld [vmem:[%s2501 + $0x84] sm:$0xf]
        %v2536 = vld [vmem:[%s2501 + $0x88] sm:$0xf]
        %v2537 = vld [vmem:[%s2501 + $0x8c] sm:$0xf]
        %v2538 = vunpack.c.l.b16 %v2322
        %v2539 = vunpack.c.h.b16 %v2322
        %v2540 = vunpack.c.l.b16 %v2336
        %v2541 = vunpack.c.l.b16 %v2346
        %v2542 = vunpack.c.h.b16 %v2346
        %v2543 = vunpack.c.l.b16 %v2356
        %v2544 = vunpack.c.l.b16 %v2370
        %v2545 = vunpack.c.h.b16 %v2370
        %v2546 = vunpack.c.l.b16 %v2384
        %v2547 = vunpack.c.l.b16 %v2394
        %v2548 = vunpack.c.h.b16 %v2394
        %v2549 = vunpack.c.l.b16 %v2404
        %v2550 = vunpack.c.l.b16 %v2418
        %v2551 = vunpack.c.h.b16 %v2418
        %v2552 = vunpack.c.l.b16 %v2432
        %v2553 = vunpack.c.l.b16 %v2442
        %v2554 = vunpack.c.h.b16 %v2442
        %v2555 = vunpack.c.l.b16 %v2452
        %v2556 = vunpack.c.l.b16 %v2466
        %v2557 = vunpack.c.h.b16 %v2466
        %v2558 = vunpack.c.l.b16 %v2480
        %v2559 = vunpack.c.l.b16 %v2490
        %v2560 = vunpack.c.h.b16 %v2490
        %v2561 = vunpack.c.l.b16 %v2500
        %v2562 = vpack.c.b16 %v2541, %v2538
        %v2563 = vpack.c.b16 %v2542, %v2539
        %v2564 = vpack.c.b16 %v2543, %v2540
        %v2565 = vpack.c.b16 %v2547, %v2544
        %v2566 = vpack.c.b16 %v2548, %v2545
        %v2567 = vpack.c.b16 %v2549, %v2546
        %v2568 = vpack.c.b16 %v2553, %v2550
        %v2569 = vpack.c.b16 %v2554, %v2551
        %v2570 = vpack.c.b16 %v2555, %v2552
        %v2571 = vpack.c.b16 %v2559, %v2556
        %v2572 = vpack.c.b16 %v2560, %v2557
        %v2573 = vpack.c.b16 %v2561, %v2558
        %v2618 = vunpack.c.l.b16 %v2502
        %v2619 = vunpack.c.l.b16 %v2503
        %v2620 = vunpack.c.l.b16 %v2504
        %v2621 = vunpack.c.l.b16 %v2505
        %v2622 = vunpack.c.l.b16 %v2506
        %v2623 = vunpack.c.l.b16 %v2507
        %v2624 = vunpack.c.l.b16 %v2508
        %v2625 = vunpack.c.l.b16 %v2509
        %v2626 = vunpack.c.l.b16 %v2510
        %v2627 = vunpack.c.l.b16 %v2511
        %v2628 = vunpack.c.l.b16 %v2512
        %v2629 = vunpack.c.l.b16 %v2513
        %v2630 = vunpack.c.l.b16 %v2514
        %v2631 = vunpack.c.l.b16 %v2515
        %v2632 = vunpack.c.l.b16 %v2516
        %v2633 = vunpack.c.l.b16 %v2517
        %v2634 = vunpack.c.l.b16 %v2518
        %v2635 = vunpack.c.l.b16 %v2519
        %v2636 = vunpack.c.l.b16 %v2520
        %v2637 = vunpack.c.l.b16 %v2521
        %v2638 = vunpack.c.l.b16 %v2522
        %v2639 = vunpack.c.l.b16 %v2523
        %v2640 = vunpack.c.l.b16 %v2524
        %v2641 = vunpack.c.l.b16 %v2525
        %v2642 = vunpack.c.l.b16 %v2526
        %v2643 = vunpack.c.l.b16 %v2527
        %v2644 = vunpack.c.l.b16 %v2528
        %v2645 = vunpack.c.l.b16 %v2529
        %v2646 = vunpack.c.l.b16 %v2530
        %v2647 = vunpack.c.l.b16 %v2531
        %v2648 = vunpack.c.l.b16 %v2532
        %v2649 = vunpack.c.l.b16 %v2533
        %v2650 = vunpack.c.l.b16 %v2534
        %v2651 = vunpack.c.l.b16 %v2535
        %v2652 = vunpack.c.l.b16 %v2536
        %v2653 = vunpack.c.l.b16 %v2537
        %v2654 = vpack.c.b16 %v2619, %v2618
        %v2655 = vpack.c.b16 %v2621, %v2620
        %v2656 = vpack.c.b16 %v2623, %v2622
        %v2657 = vpack.c.b16 %v2625, %v2624
        %v2658 = vpack.c.b16 %v2627, %v2626
        %v2659 = vpack.c.b16 %v2629, %v2628
        %v2660 = vpack.c.b16 %v2631, %v2630
        %v2661 = vpack.c.b16 %v2633, %v2632
        %v2662 = vpack.c.b16 %v2635, %v2634
        %v2663 = vpack.c.b16 %v2637, %v2636
        %v2664 = vpack.c.b16 %v2639, %v2638
        %v2665 = vpack.c.b16 %v2641, %v2640
        %v2666 = vpack.c.b16 %v2643, %v2642
        %v2667 = vpack.c.b16 %v2645, %v2644
        %v2668 = vpack.c.b16 %v2647, %v2646
        %v2669 = vpack.c.b16 %v2649, %v2648
        %v2670 = vpack.c.b16 %v2651, %v2650
        %v2671 = vpack.c.b16 %v2653, %v2652
        %v2691 = vsel %vm1039, %v2564, 0
        %v2694 = vsel %vm1039, %v2567, 0
        %v2697 = vsel %vm1039, %v2570, 0
        %v2700 = vsel %vm1039, %v2573, 0
        %2702 = vmatprep.subr.bf16.mxu0 0
        %2703 = vmatpush1.bf16.msra.mxu0 %v2654
        %2704 = vmatprep.subr.bf16.mxu0 0
        %2705 = vmatpush1.bf16.msra.mxu0 %v2655
        %2706 = vmatprep.subr.bf16.mxu0 0
        %2707 = vmatpush1.bf16.msra.mxu0 %v2656
        %2708 = vmatprep.subr.bf16.mxu0 0
        %2709 = vmatpush1.bf16.msra.mxu0 %v2657
        %2710 = vmatprep.subr.bf16.mxu0 0
        %2711 = vmatpush1.bf16.msra.mxu0 %v2658
        %2712 = vmatprep.subr.bf16.mxu0 0
        %2713 = vmatpush1.bf16.msra.mxu0 %v2659
        %2714 = vmatprep.subr.bf16.mxu0 0
        %2715 = vmatpush1.bf16.msra.mxu0 %v2660
        %2716 = vmatprep.subr.bf16.mxu0 0
        %2717 = vmatpush1.bf16.msra.mxu0 %v2661
        %2718 = vmatprep.subr.bf16.mxu0 0
        %2719 = vmatpush1.bf16.msra.mxu0 %v2662
        %2720 = vmatprep.subr.bf16.mxu0 0
        %2721 = vmatpush1.bf16.msra.mxu0 %v2663
        %2722 = vmatprep.subr.bf16.mxu0 0
        %2723 = vmatpush1.bf16.msra.mxu0 %v2664
        %2724 = vmatprep.subr.bf16.mxu0 0
        %2725 = vmatpush1.bf16.msra.mxu0 %v2665
        %2726 = vmatprep.subr.bf16.mxu0 0
        %2727 = vmatpush1.bf16.msra.mxu0 %v2666
        %2728 = vmatprep.subr.bf16.mxu0 0
        %2729 = vmatpush1.bf16.msra.mxu0 %v2667
        %2730 = vmatprep.subr.bf16.mxu0 0
        %2731 = vmatpush1.bf16.msra.mxu0 %v2668
        %2732 = vmatprep.subr.bf16.mxu0 0
        %2733 = vmatpush1.bf16.msra.mxu0 %v2669
        %2734 = vmatprep.mubr.bf16.mxu0 %v2563
        %2735 = vmatmul.mubr.bf16.gmra.mrb[0].mxu0 %v2562
        %v2736 = vpop.f32.mrb[0].mxu0
        %v2737 = vadd.f32 0.0, %v2736
        %v2738 = vpop.f32.mrb[0].mxu0
        %v2739 = vpop.f32.mrb[0].mxu0
        %v2740 = vadd.f32 0.0, %v2739
        %v2741 = vpop.f32.mrb[0].mxu0
        %2742 = vmatprep.mubr.bf16.mxu0 %v2566
        %2743 = vmatmul.mubr.bf16.gmra.mrb[0].mxu0 %v2565
        %v2744 = vpop.f32.mrb[0].mxu0
        %v2745 = vadd.f32 0.0, %v2744
        %v2746 = vpop.f32.mrb[0].mxu0
        %v2747 = vpop.f32.mrb[0].mxu0
        %v2748 = vadd.f32 0.0, %v2747
        %v2749 = vpop.f32.mrb[0].mxu0
        %2750 = vmatprep.mubr.bf16.mxu0 %v2569
        %2751 = vmatmul.mubr.bf16.gmra.mrb[0].mxu0 %v2568
        %v2752 = vpop.f32.mrb[0].mxu0
        %v2753 = vadd.f32 0.0, %v2752
        %v2754 = vpop.f32.mrb[0].mxu0
        %v2755 = vpop.f32.mrb[0].mxu0
        %v2756 = vadd.f32 0.0, %v2755
        %v2757 = vpop.f32.mrb[0].mxu0
        %2758 = vmatprep.mubr.bf16.mxu0 %v2572
        %2759 = vmatmul.mubr.bf16.gmra.mrb[0].mxu0 %v2571
        %v2760 = vpop.f32.mrb[0].mxu0
        %v2761 = vadd.f32 0.0, %v2760
        %v2762 = vpop.f32.mrb[0].mxu0
        %v2763 = vpop.f32.mrb[0].mxu0
        %v2764 = vadd.f32 0.0, %v2763
        %v2765 = vpop.f32.mrb[0].mxu0
        %2766 = vdwg.mxu0
        %2767 = vmatprep.subr.bf16.mxu0 0
        %2768 = vmatpush1.bf16.msra.mxu0 %v2670
        %2769 = vmatprep.subr.bf16.mxu0 0
        %2770 = vmatpush1.bf16.msra.mxu0 %v2671
        %2771 = vmatprep.subr.bf16.mxu0 0
        %2772 = vmatpush1.bf16.msra.mxu0 0
        %2773 = vmatprep.subr.bf16.mxu0 0
        %2774 = vmatpush1.bf16.msra.mxu0 0
        %2775 = vmatprep.subr.bf16.mxu0 0
        %2776 = vmatpush1.bf16.msra.mxu0 0
        %2777 = vmatprep.subr.bf16.mxu0 0
        %2778 = vmatpush1.bf16.msra.mxu0 0
        %2779 = vmatprep.subr.bf16.mxu0 0
        %2780 = vmatpush1.bf16.msra.mxu0 0
        %2781 = vmatprep.subr.bf16.mxu0 0
        %2782 = vmatpush1.bf16.msra.mxu0 0
        %2783 = vmatprep.subr.bf16.mxu0 0
        %2784 = vmatpush1.bf16.msra.mxu0 0
        %2785 = vmatprep.subr.bf16.mxu0 0
        %2786 = vmatpush1.bf16.msra.mxu0 0
        %2787 = vmatprep.subr.bf16.mxu0 0
        %2788 = vmatpush1.bf16.msra.mxu0 0
        %2789 = vmatprep.subr.bf16.mxu0 0
        %2790 = vmatpush1.bf16.msra.mxu0 0
        %2791 = vmatprep.subr.bf16.mxu0 0
        %2792 = vmatpush1.bf16.msra.mxu0 0
        %2793 = vmatprep.subr.bf16.mxu0 0
        %2794 = vmatpush1.bf16.msra.mxu0 0
        %2795 = vmatprep.subr.bf16.mxu0 0
        %2796 = vmatpush1.bf16.msra.mxu0 0
        %2797 = vmatprep.subr.bf16.mxu0 0
        %2798 = vmatpush1.bf16.msra.mxu0 0
        %2799 = vmatprep.mubr.bf16.mxu0 0
        %2800 = vmatmul.mubr.bf16.gmra.mrb[0].mxu0 %v2691
        %v2801 = vpop.f32.mrb[0].mxu0
        %v2802 = vadd.f32 %v2737, %v2801
        %v2803 = vpop.f32.mrb[0].mxu0
        %v2804 = vpop.f32.mrb[0].mxu0
        %v2805 = vadd.f32 %v2740, %v2804
        %v2806 = vpop.f32.mrb[0].mxu0
        %2807 = vmatprep.mubr.bf16.mxu0 0
        %2808 = vmatmul.mubr.bf16.gmra.mrb[0].mxu0 %v2694
        %v2809 = vpop.f32.mrb[0].mxu0
        %v2810 = vadd.f32 %v2745, %v2809
        %v2811 = vpop.f32.mrb[0].mxu0
        %v2812 = vpop.f32.mrb[0].mxu0
        %v2813 = vadd.f32 %v2748, %v2812
        %v2814 = vpop.f32.mrb[0].mxu0
        %2815 = vmatprep.mubr.bf16.mxu0 0
        %2816 = vmatmul.mubr.bf16.gmra.mrb[0].mxu0 %v2697
        %v2817 = vpop.f32.mrb[0].mxu0
        %v2818 = vadd.f32 %v2753, %v2817
        %v2819 = vpop.f32.mrb[0].mxu0
        %v2820 = vpop.f32.mrb[0].mxu0
        %v2821 = vadd.f32 %v2756, %v2820
        %v2822 = vpop.f32.mrb[0].mxu0
        %2823 = vmatprep.mubr.bf16.mxu0 0
        %2824 = vmatmul.mubr.bf16.gmra.mrb[0].mxu0 %v2700
        %v2825 = vpop.f32.mrb[0].mxu0
        %v2826 = vadd.f32 %v2761, %v2825
        %v2827 = vpop.f32.mrb[0].mxu0
        %v2828 = vpop.f32.mrb[0].mxu0
        %v2829 = vadd.f32 %v2764, %v2828
        %v2830 = vpop.f32.mrb[0].mxu0
        %2831 = vdwg.mxu0
        %v2832 = vadd.f32 %v2277, %v2802
        %v2833 = vadd.f32 %v2278, %v2805
        %v2834 = vadd.f32 %v2279, %v2810
        %v2835 = vadd.f32 %v2280, %v2813
        %v2836 = vadd.f32 %v2281, %v2818
        %v2837 = vadd.f32 %v2282, %v2821
        %v2838 = vadd.f32 %v2283, %v2826
        %v2839 = vadd.f32 %v2284, %v2829
        %v2840 = vld [vmem:[%s517] sm:$0xee]
        %v2841 = vld [vmem:[%s517 + $0x8] sm:$0xe]
        %v2842 = vld [vmem:[%s517 + $0x24] sm:$0xee]
        %v2843 = vld [vmem:[%s517 + $0x2c] sm:$0xe]
        %v2844 = vld [vmem:[%s517 + $0x48] sm:$0xee]
        %v2845 = vld [vmem:[%s517 + $0x50] sm:$0xe]
        %v2846 = vld [vmem:[%s517 + $0x6c] sm:$0xee]
        %v2847 = vld [vmem:[%s517 + $0x74] sm:$0xe]
        %v2872 = vrot.slane %v2840, 5
        %v2873 = vrot.slane %v2872, 4
        %v2874 = vrot.slane %v2287, 5
        %v2875 = vsel %vm1518, %v2873, %v2874
        %v2876 = vrot.slane %v2841, 5
        %v2877 = vrot.slane %v2876, 4
        %v2878 = vrot.slane %v2288, 5
        %v2879 = vsel %vm1518, %v2877, %v2878
        %v2880 = vrot.slane %v2874, 4
        %v2881 = vrot.slane %v2289, 5
        %v2882 = vsel %vm1518, %v2880, %v2881
        %v2883 = vrot.slane %v2878, 4
        %v2884 = vrot.slane %v2290, 5
        %v2885 = vsel %vm1518, %v2883, %v2884
        %v2886 = vrot.slane %v2842, 5
        %v2887 = vrot.slane %v2886, 4
        %v2888 = vrot.slane %v2293, 5
        %v2889 = vsel %vm1518, %v2887, %v2888
        %v2890 = vrot.slane %v2843, 5
        %v2891 = vrot.slane %v2890, 4
        %v2892 = vrot.slane %v2294, 5
        %v2893 = vsel %vm1518, %v2891, %v2892
        %v2894 = vrot.slane %v2888, 4
        %v2895 = vrot.slane %v2295, 5
        %v2896 = vsel %vm1518, %v2894, %v2895
        %v2897 = vrot.slane %v2892, 4
        %v2898 = vrot.slane %v2296, 5
        %v2899 = vsel %vm1518, %v2897, %v2898
        %v2900 = vrot.slane %v2844, 5
        %v2901 = vrot.slane %v2900, 4
        %v2902 = vrot.slane %v2299, 5
        %v2903 = vsel %vm1518, %v2901, %v2902
        %v2904 = vrot.slane %v2845, 5
        %v2905 = vrot.slane %v2904, 4
        %v2906 = vrot.slane %v2300, 5
        %v2907 = vsel %vm1518, %v2905, %v2906
        %v2908 = vrot.slane %v2902, 4
        %v2909 = vrot.slane %v2301, 5
        %v2910 = vsel %vm1518, %v2908, %v2909
        %v2911 = vrot.slane %v2906, 4
        %v2912 = vrot.slane %v2302, 5
        %v2913 = vsel %vm1518, %v2911, %v2912
        %v2914 = vrot.slane %v2846, 5
        %v2915 = vrot.slane %v2914, 4
        %v2916 = vrot.slane %v2305, 5
        %v2917 = vsel %vm1518, %v2915, %v2916
        %v2918 = vrot.slane %v2847, 5
        %v2919 = vrot.slane %v2918, 4
        %v2920 = vrot.slane %v2306, 5
        %v2921 = vsel %vm1518, %v2919, %v2920
        %v2922 = vrot.slane %v2916, 4
        %v2923 = vrot.slane %v2307, 5
        %v2924 = vsel %vm1518, %v2922, %v2923
        %v2925 = vrot.slane %v2920, 4
        %v2926 = vrot.slane %v2308, 5
        %v2927 = vsel %vm1518, %v2925, %v2926
        %s2928 = scalar_lea.vmem [#allocation7], 720
        %v2929 = vld [vmem:[%s2928] sm:$0xf]
        %v2930 = vld [vmem:[%s2928 + $0x4] sm:$0xf]
        %v2931 = vld [vmem:[%s2928 + $0x8] sm:$0xf]
        %v2932 = vld [vmem:[%s2928 + $0xc] sm:$0xf]
        %v2933 = vld [vmem:[%s2928 + $0x10] sm:$0xf]
        %v2934 = vld [vmem:[%s2928 + $0x14] sm:$0xf]
        %v2935 = vld [vmem:[%s2928 + $0x18] sm:$0xf]
        %v2936 = vld [vmem:[%s2928 + $0x1c] sm:$0xf]
        %v2937 = vld [vmem:[%s2928 + $0x20] sm:$0xf]
        %v2938 = vld [vmem:[%s2928 + $0x24] sm:$0xf]
        %v2939 = vld [vmem:[%s2928 + $0x28] sm:$0xf]
        %v2940 = vld [vmem:[%s2928 + $0x2c] sm:$0xf]
        %v2941 = vld [vmem:[%s2928 + $0x30] sm:$0xf]
        %v2942 = vld [vmem:[%s2928 + $0x34] sm:$0xf]
        %v2943 = vld [vmem:[%s2928 + $0x38] sm:$0xf]
        %v2944 = vld [vmem:[%s2928 + $0x3c] sm:$0xf]
        %v2945 = vld [vmem:[%s2928 + $0x40] sm:$0xf]
        %v2946 = vld [vmem:[%s2928 + $0x44] sm:$0xf]
        %v2947 = vld [vmem:[%s2928 + $0x48] sm:$0xf]
        %v2948 = vld [vmem:[%s2928 + $0x4c] sm:$0xf]
        %v2949 = vld [vmem:[%s2928 + $0x50] sm:$0xf]
        %v2950 = vld [vmem:[%s2928 + $0x54] sm:$0xf]
        %v2951 = vld [vmem:[%s2928 + $0x58] sm:$0xf]
        %v2952 = vld [vmem:[%s2928 + $0x5c] sm:$0xf]
        %v2953 = vld [vmem:[%s2928 + $0x60] sm:$0xf]
        %v2954 = vld [vmem:[%s2928 + $0x64] sm:$0xf]
        %v2955 = vld [vmem:[%s2928 + $0x68] sm:$0xf]
        %v2956 = vld [vmem:[%s2928 + $0x6c] sm:$0xf]
        %v2957 = vld [vmem:[%s2928 + $0x70] sm:$0xf]
        %v2958 = vld [vmem:[%s2928 + $0x74] sm:$0xf]
        %v2959 = vld [vmem:[%s2928 + $0x78] sm:$0xf]
        %v2960 = vld [vmem:[%s2928 + $0x7c] sm:$0xf]
        %v2961 = vld [vmem:[%s2928 + $0x80] sm:$0xf]
        %v2962 = vld [vmem:[%s2928 + $0x84] sm:$0xf]
        %v2963 = vld [vmem:[%s2928 + $0x88] sm:$0xf]
        %v2964 = vld [vmem:[%s2928 + $0x8c] sm:$0xf]
        %v2965 = vunpack.c.l.b16 %v2875
        %v2966 = vunpack.c.h.b16 %v2875
        %v2967 = vunpack.c.l.b16 %v2879
        %v2968 = vunpack.c.l.b16 %v2882
        %v2969 = vunpack.c.h.b16 %v2882
        %v2970 = vunpack.c.l.b16 %v2885
        %v2971 = vunpack.c.l.b16 %v2889
        %v2972 = vunpack.c.h.b16 %v2889
        %v2973 = vunpack.c.l.b16 %v2893
        %v2974 = vunpack.c.l.b16 %v2896
        %v2975 = vunpack.c.h.b16 %v2896
        %v2976 = vunpack.c.l.b16 %v2899
        %v2977 = vunpack.c.l.b16 %v2903
        %v2978 = vunpack.c.h.b16 %v2903
        %v2979 = vunpack.c.l.b16 %v2907
        %v2980 = vunpack.c.l.b16 %v2910
        %v2981 = vunpack.c.h.b16 %v2910
        %v2982 = vunpack.c.l.b16 %v2913
        %v2983 = vunpack.c.l.b16 %v2917
        %v2984 = vunpack.c.h.b16 %v2917
        %v2985 = vunpack.c.l.b16 %v2921
        %v2986 = vunpack.c.l.b16 %v2924
        %v2987 = vunpack.c.h.b16 %v2924
        %v2988 = vunpack.c.l.b16 %v2927
        %v2989 = vpack.c.b16 %v2968, %v2965
        %v2990 = vpack.c.b16 %v2969, %v2966
        %v2991 = vpack.c.b16 %v2970, %v2967
        %v2992 = vpack.c.b16 %v2974, %v2971
        %v2993 = vpack.c.b16 %v2975, %v2972
        %v2994 = vpack.c.b16 %v2976, %v2973
        %v2995 = vpack.c.b16 %v2980, %v2977
        %v2996 = vpack.c.b16 %v2981, %v2978
        %v2997 = vpack.c.b16 %v2982, %v2979
        %v2998 = vpack.c.b16 %v2986, %v2983
        %v2999 = vpack.c.b16 %v2987, %v2984
        %v3000 = vpack.c.b16 %v2988, %v2985
        %v3045 = vunpack.c.l.b16 %v2929
        %v3046 = vunpack.c.l.b16 %v2930
        %v3047 = vunpack.c.l.b16 %v2931
        %v3048 = vunpack.c.l.b16 %v2932
        %v3049 = vunpack.c.l.b16 %v2933
        %v3050 = vunpack.c.l.b16 %v2934
        %v3051 = vunpack.c.l.b16 %v2935
        %v3052 = vunpack.c.l.b16 %v2936
        %v3053 = vunpack.c.l.b16 %v2937
        %v3054 = vunpack.c.l.b16 %v2938
        %v3055 = vunpack.c.l.b16 %v2939
        %v3056 = vunpack.c.l.b16 %v2940
        %v3057 = vunpack.c.l.b16 %v2941
        %v3058 = vunpack.c.l.b16 %v2942
        %v3059 = vunpack.c.l.b16 %v2943
        %v3060 = vunpack.c.l.b16 %v2944
        %v3061 = vunpack.c.l.b16 %v2945
        %v3062 = vunpack.c.l.b16 %v2946
        %v3063 = vunpack.c.l.b16 %v2947
        %v3064 = vunpack.c.l.b16 %v2948
        %v3065 = vunpack.c.l.b16 %v2949
        %v3066 = vunpack.c.l.b16 %v2950
        %v3067 = vunpack.c.l.b16 %v2951
        %v3068 = vunpack.c.l.b16 %v2952
        %v3069 = vunpack.c.l.b16 %v2953
        %v3070 = vunpack.c.l.b16 %v2954
        %v3071 = vunpack.c.l.b16 %v2955
        %v3072 = vunpack.c.l.b16 %v2956
        %v3073 = vunpack.c.l.b16 %v2957
        %v3074 = vunpack.c.l.b16 %v2958
        %v3075 = vunpack.c.l.b16 %v2959
        %v3076 = vunpack.c.l.b16 %v2960
        %v3077 = vunpack.c.l.b16 %v2961
        %v3078 = vunpack.c.l.b16 %v2962
        %v3079 = vunpack.c.l.b16 %v2963
        %v3080 = vunpack.c.l.b16 %v2964
        %v3081 = vpack.c.b16 %v3046, %v3045
        %v3082 = vpack.c.b16 %v3048, %v3047
        %v3083 = vpack.c.b16 %v3050, %v3049
        %v3084 = vpack.c.b16 %v3052, %v3051
        %v3085 = vpack.c.b16 %v3054, %v3053
        %v3086 = vpack.c.b16 %v3056, %v3055
        %v3087 = vpack.c.b16 %v3058, %v3057
        %v3088 = vpack.c.b16 %v3060, %v3059
        %v3089 = vpack.c.b16 %v3062, %v3061
        %v3090 = vpack.c.b16 %v3064, %v3063
        %v3091 = vpack.c.b16 %v3066, %v3065
        %v3092 = vpack.c.b16 %v3068, %v3067
        %v3093 = vpack.c.b16 %v3070, %v3069
        %v3094 = vpack.c.b16 %v3072, %v3071
        %v3095 = vpack.c.b16 %v3074, %v3073
        %v3096 = vpack.c.b16 %v3076, %v3075
        %v3097 = vpack.c.b16 %v3078, %v3077
        %v3098 = vpack.c.b16 %v3080, %v3079
        %v3118 = vsel %vm1039, %v2991, 0
        %v3121 = vsel %vm1039, %v2994, 0
        %v3124 = vsel %vm1039, %v2997, 0
        %v3127 = vsel %vm1039, %v3000, 0
        %3129 = vmatprep.subr.bf16.mxu0 0
        %3130 = vmatpush1.bf16.msra.mxu0 %v3081
        %3131 = vmatprep.subr.bf16.mxu0 0
        %3132 = vmatpush1.bf16.msra.mxu0 %v3082
        %3133 = vmatprep.subr.bf16.mxu0 0
        %3134 = vmatpush1.bf16.msra.mxu0 %v3083
        %3135 = vmatprep.subr.bf16.mxu0 0
        %3136 = vmatpush1.bf16.msra.mxu0 %v3084
        %3137 = vmatprep.subr.bf16.mxu0 0
        %3138 = vmatpush1.bf16.msra.mxu0 %v3085
        %3139 = vmatprep.subr.bf16.mxu0 0
        %3140 = vmatpush1.bf16.msra.mxu0 %v3086
        %3141 = vmatprep.subr.bf16.mxu0 0
        %3142 = vmatpush1.bf16.msra.mxu0 %v3087
        %3143 = vmatprep.subr.bf16.mxu0 0
        %3144 = vmatpush1.bf16.msra.mxu0 %v3088
        %3145 = vmatprep.subr.bf16.mxu0 0
        %3146 = vmatpush1.bf16.msra.mxu0 %v3089
        %3147 = vmatprep.subr.bf16.mxu0 0
        %3148 = vmatpush1.bf16.msra.mxu0 %v3090
        %3149 = vmatprep.subr.bf16.mxu0 0
        %3150 = vmatpush1.bf16.msra.mxu0 %v3091
        %3151 = vmatprep.subr.bf16.mxu0 0
        %3152 = vmatpush1.bf16.msra.mxu0 %v3092
        %3153 = vmatprep.subr.bf16.mxu0 0
        %3154 = vmatpush1.bf16.msra.mxu0 %v3093
        %3155 = vmatprep.subr.bf16.mxu0 0
        %3156 = vmatpush1.bf16.msra.mxu0 %v3094
        %3157 = vmatprep.subr.bf16.mxu0 0
        %3158 = vmatpush1.bf16.msra.mxu0 %v3095
        %3159 = vmatprep.subr.bf16.mxu0 0
        %3160 = vmatpush1.bf16.msra.mxu0 %v3096
        %3161 = vmatprep.mubr.bf16.mxu0 %v2990
        %3162 = vmatmul.mubr.bf16.gmra.mrb[0].mxu0 %v2989
        %v3163 = vpop.f32.mrb[0].mxu0
        %v3164 = vadd.f32 0.0, %v3163
        %v3165 = vpop.f32.mrb[0].mxu0
        %v3166 = vpop.f32.mrb[0].mxu0
        %v3167 = vadd.f32 0.0, %v3166
        %v3168 = vpop.f32.mrb[0].mxu0
        %3169 = vmatprep.mubr.bf16.mxu0 %v2993
        %3170 = vmatmul.mubr.bf16.gmra.mrb[0].mxu0 %v2992
        %v3171 = vpop.f32.mrb[0].mxu0
        %v3172 = vadd.f32 0.0, %v3171
        %v3173 = vpop.f32.mrb[0].mxu0
        %v3174 = vpop.f32.mrb[0].mxu0
        %v3175 = vadd.f32 0.0, %v3174
        %v3176 = vpop.f32.mrb[0].mxu0
        %3177 = vmatprep.mubr.bf16.mxu0 %v2996
        %3178 = vmatmul.mubr.bf16.gmra.mrb[0].mxu0 %v2995
        %v3179 = vpop.f32.mrb[0].mxu0
        %v3180 = vadd.f32 0.0, %v3179
        %v3181 = vpop.f32.mrb[0].mxu0
        %v3182 = vpop.f32.mrb[0].mxu0
        %v3183 = vadd.f32 0.0, %v3182
        %v3184 = vpop.f32.mrb[0].mxu0
        %3185 = vmatprep.mubr.bf16.mxu0 %v2999
        %3186 = vmatmul.mubr.bf16.gmra.mrb[0].mxu0 %v2998
        %v3187 = vpop.f32.mrb[0].mxu0
        %v3188 = vadd.f32 0.0, %v3187
        %v3189 = vpop.f32.mrb[0].mxu0
        %v3190 = vpop.f32.mrb[0].mxu0
        %v3191 = vadd.f32 0.0, %v3190
        %v3192 = vpop.f32.mrb[0].mxu0
        %3193 = vdwg.mxu0
        %3194 = vmatprep.subr.bf16.mxu0 0
        %3195 = vmatpush1.bf16.msra.mxu0 %v3097
        %3196 = vmatprep.subr.bf16.mxu0 0
        %3197 = vmatpush1.bf16.msra.mxu0 %v3098
        %3198 = vmatprep.subr.bf16.mxu0 0
        %3199 = vmatpush1.bf16.msra.mxu0 0
        %3200 = vmatprep.subr.bf16.mxu0 0
        %3201 = vmatpush1.bf16.msra.mxu0 0
        %3202 = vmatprep.subr.bf16.mxu0 0
        %3203 = vmatpush1.bf16.msra.mxu0 0
        %3204 = vmatprep.subr.bf16.mxu0 0
        %3205 = vmatpush1.bf16.msra.mxu0 0
        %3206 = vmatprep.subr.bf16.mxu0 0
        %3207 = vmatpush1.bf16.msra.mxu0 0
        %3208 = vmatprep.subr.bf16.mxu0 0
        %3209 = vmatpush1.bf16.msra.mxu0 0
        %3210 = vmatprep.subr.bf16.mxu0 0
        %3211 = vmatpush1.bf16.msra.mxu0 0
        %3212 = vmatprep.subr.bf16.mxu0 0
        %3213 = vmatpush1.bf16.msra.mxu0 0
        %3214 = vmatprep.subr.bf16.mxu0 0
        %3215 = vmatpush1.bf16.msra.mxu0 0
        %3216 = vmatprep.subr.bf16.mxu0 0
        %3217 = vmatpush1.bf16.msra.mxu0 0
        %3218 = vmatprep.subr.bf16.mxu0 0
        %3219 = vmatpush1.bf16.msra.mxu0 0
        %3220 = vmatprep.subr.bf16.mxu0 0
        %3221 = vmatpush1.bf16.msra.mxu0 0
        %3222 = vmatprep.subr.bf16.mxu0 0
        %3223 = vmatpush1.bf16.msra.mxu0 0
        %3224 = vmatprep.subr.bf16.mxu0 0
        %3225 = vmatpush1.bf16.msra.mxu0 0
        %3226 = vmatprep.mubr.bf16.mxu0 0
        %3227 = vmatmul.mubr.bf16.gmra.mrb[0].mxu0 %v3118
        %v3228 = vpop.f32.mrb[0].mxu0
        %v3229 = vadd.f32 %v3164, %v3228
        %v3230 = vpop.f32.mrb[0].mxu0
        %v3231 = vpop.f32.mrb[0].mxu0
        %v3232 = vadd.f32 %v3167, %v3231
        %v3233 = vpop.f32.mrb[0].mxu0
        %3234 = vmatprep.mubr.bf16.mxu0 0
        %3235 = vmatmul.mubr.bf16.gmra.mrb[0].mxu0 %v3121
        %v3236 = vpop.f32.mrb[0].mxu0
        %v3237 = vadd.f32 %v3172, %v3236
        %v3238 = vpop.f32.mrb[0].mxu0
        %v3239 = vpop.f32.mrb[0].mxu0
        %v3240 = vadd.f32 %v3175, %v3239
        %v3241 = vpop.f32.mrb[0].mxu0
        %3242 = vmatprep.mubr.bf16.mxu0 0
        %3243 = vmatmul.mubr.bf16.gmra.mrb[0].mxu0 %v3124
        %v3244 = vpop.f32.mrb[0].mxu0
        %v3245 = vadd.f32 %v3180, %v3244
        %v3246 = vpop.f32.mrb[0].mxu0
        %v3247 = vpop.f32.mrb[0].mxu0
        %v3248 = vadd.f32 %v3183, %v3247
        %v3249 = vpop.f32.mrb[0].mxu0
        %3250 = vmatprep.mubr.bf16.mxu0 0
        %3251 = vmatmul.mubr.bf16.gmra.mrb[0].mxu0 %v3127
        %v3252 = vpop.f32.mrb[0].mxu0
        %v3253 = vadd.f32 %v3188, %v3252
        %v3254 = vpop.f32.mrb[0].mxu0
        %v3255 = vpop.f32.mrb[0].mxu0
        %v3256 = vadd.f32 %v3191, %v3255
        %v3257 = vpop.f32.mrb[0].mxu0
        %3258 = vdwg.mxu0
        %v3259 = vadd.f32 %v2832, %v3229
        %v3260 = vadd.f32 %v2833, %v3232
        %v3261 = vadd.f32 %v2834, %v3237
        %v3262 = vadd.f32 %v2835, %v3240
        %v3263 = vadd.f32 %v2836, %v3245
        %v3264 = vadd.f32 %v2837, %v3248
        %v3265 = vadd.f32 %v2838, %v3253
        %v3266 = vadd.f32 %v2839, %v3256
        %s3267 = scalar_lea.vmem [#allocation2], 72
        %v3268 = vld [vmem:[%s3267] sm:$0xff]
        %v3269 = vld [vmem:[%s3267 + $0x8] sm:$0xf]
        %v3270 = vld [vmem:[%s3267 + $0xc] sm:$0xff]
        %v3271 = vld [vmem:[%s3267 + $0x14] sm:$0xf]
        %v3272 = vld [vmem:[%s3267 + $0x24] sm:$0xff]
        %v3273 = vld [vmem:[%s3267 + $0x2c] sm:$0xf]
        %v3274 = vld [vmem:[%s3267 + $0x30] sm:$0xff]
        %v3275 = vld [vmem:[%s3267 + $0x38] sm:$0xf]
        %v3276 = vld [vmem:[%s3267 + $0x48] sm:$0xff]
        %v3277 = vld [vmem:[%s3267 + $0x50] sm:$0xf]
        %v3278 = vld [vmem:[%s3267 + $0x54] sm:$0xff]
        %v3279 = vld [vmem:[%s3267 + $0x5c] sm:$0xf]
        %v3280 = vld [vmem:[%s3267 + $0x6c] sm:$0xff]
        %v3281 = vld [vmem:[%s3267 + $0x74] sm:$0xf]
        %v3282 = vld [vmem:[%s3267 + $0x78] sm:$0xff]
        %v3283 = vld [vmem:[%s3267 + $0x80] sm:$0xf]
        %s3284 = scalar_lea.vmem [#allocation7], 864
        %v3285 = vld [vmem:[%s3284] sm:$0xf]
        %v3286 = vld [vmem:[%s3284 + $0x4] sm:$0xf]
        %v3287 = vld [vmem:[%s3284 + $0x8] sm:$0xf]
        %v3288 = vld [vmem:[%s3284 + $0xc] sm:$0xf]
        %v3289 = vld [vmem:[%s3284 + $0x10] sm:$0xf]
        %v3290 = vld [vmem:[%s3284 + $0x14] sm:$0xf]
        %v3291 = vld [vmem:[%s3284 + $0x18] sm:$0xf]
        %v3292 = vld [vmem:[%s3284 + $0x1c] sm:$0xf]
        %v3293 = vld [vmem:[%s3284 + $0x20] sm:$0xf]
        %v3294 = vld [vmem:[%s3284 + $0x24] sm:$0xf]
        %v3295 = vld [vmem:[%s3284 + $0x28] sm:$0xf]
        %v3296 = vld [vmem:[%s3284 + $0x2c] sm:$0xf]
        %v3297 = vld [vmem:[%s3284 + $0x30] sm:$0xf]
        %v3298 = vld [vmem:[%s3284 + $0x34] sm:$0xf]
        %v3299 = vld [vmem:[%s3284 + $0x38] sm:$0xf]
        %v3300 = vld [vmem:[%s3284 + $0x3c] sm:$0xf]
        %v3301 = vld [vmem:[%s3284 + $0x40] sm:$0xf]
        %v3302 = vld [vmem:[%s3284 + $0x44] sm:$0xf]
        %v3303 = vld [vmem:[%s3284 + $0x48] sm:$0xf]
        %v3304 = vld [vmem:[%s3284 + $0x4c] sm:$0xf]
        %v3305 = vld [vmem:[%s3284 + $0x50] sm:$0xf]
        %v3306 = vld [vmem:[%s3284 + $0x54] sm:$0xf]
        %v3307 = vld [vmem:[%s3284 + $0x58] sm:$0xf]
        %v3308 = vld [vmem:[%s3284 + $0x5c] sm:$0xf]
        %v3309 = vld [vmem:[%s3284 + $0x60] sm:$0xf]
        %v3310 = vld [vmem:[%s3284 + $0x64] sm:$0xf]
        %v3311 = vld [vmem:[%s3284 + $0x68] sm:$0xf]
        %v3312 = vld [vmem:[%s3284 + $0x6c] sm:$0xf]
        %v3313 = vld [vmem:[%s3284 + $0x70] sm:$0xf]
        %v3314 = vld [vmem:[%s3284 + $0x74] sm:$0xf]
        %v3315 = vld [vmem:[%s3284 + $0x78] sm:$0xf]
        %v3316 = vld [vmem:[%s3284 + $0x7c] sm:$0xf]
        %v3317 = vld [vmem:[%s3284 + $0x80] sm:$0xf]
        %v3318 = vld [vmem:[%s3284 + $0x84] sm:$0xf]
        %v3319 = vld [vmem:[%s3284 + $0x88] sm:$0xf]
        %v3320 = vld [vmem:[%s3284 + $0x8c] sm:$0xf]
        %v3337 = vunpack.c.l.b16 %v3268
        %v3338 = vunpack.c.h.b16 %v3268
        %v3339 = vunpack.c.l.b16 %v3269
        %v3340 = vunpack.c.l.b16 %v3270
        %v3341 = vunpack.c.h.b16 %v3270
        %v3342 = vunpack.c.l.b16 %v3271
        %v3343 = vunpack.c.l.b16 %v3272
        %v3344 = vunpack.c.h.b16 %v3272
        %v3345 = vunpack.c.l.b16 %v3273
        %v3346 = vunpack.c.l.b16 %v3274
        %v3347 = vunpack.c.h.b16 %v3274
        %v3348 = vunpack.c.l.b16 %v3275
        %v3349 = vunpack.c.l.b16 %v3276
        %v3350 = vunpack.c.h.b16 %v3276
        %v3351 = vunpack.c.l.b16 %v3277
        %v3352 = vunpack.c.l.b16 %v3278
        %v3353 = vunpack.c.h.b16 %v3278
        %v3354 = vunpack.c.l.b16 %v3279
        %v3355 = vunpack.c.l.b16 %v3280
        %v3356 = vunpack.c.h.b16 %v3280
        %v3357 = vunpack.c.l.b16 %v3281
        %v3358 = vunpack.c.l.b16 %v3282
        %v3359 = vunpack.c.h.b16 %v3282
        %v3360 = vunpack.c.l.b16 %v3283
        %v3361 = vpack.c.b16 %v3340, %v3337
        %v3362 = vpack.c.b16 %v3341, %v3338
        %v3363 = vpack.c.b16 %v3342, %v3339
        %v3364 = vpack.c.b16 %v3346, %v3343
        %v3365 = vpack.c.b16 %v3347, %v3344
        %v3366 = vpack.c.b16 %v3348, %v3345
        %v3367 = vpack.c.b16 %v3352, %v3349
        %v3368 = vpack.c.b16 %v3353, %v3350
        %v3369 = vpack.c.b16 %v3354, %v3351
        %v3370 = vpack.c.b16 %v3358, %v3355
        %v3371 = vpack.c.b16 %v3359, %v3356
        %v3372 = vpack.c.b16 %v3360, %v3357
        %v3417 = vunpack.c.l.b16 %v3285
        %v3418 = vunpack.c.l.b16 %v3286
        %v3419 = vunpack.c.l.b16 %v3287
        %v3420 = vunpack.c.l.b16 %v3288
        %v3421 = vunpack.c.l.b16 %v3289
        %v3422 = vunpack.c.l.b16 %v3290
        %v3423 = vunpack.c.l.b16 %v3291
        %v3424 = vunpack.c.l.b16 %v3292
        %v3425 = vunpack.c.l.b16 %v3293
        %v3426 = vunpack.c.l.b16 %v3294
        %v3427 = vunpack.c.l.b16 %v3295
        %v3428 = vunpack.c.l.b16 %v3296
        %v3429 = vunpack.c.l.b16 %v3297
        %v3430 = vunpack.c.l.b16 %v3298
        %v3431 = vunpack.c.l.b16 %v3299
        %v3432 = vunpack.c.l.b16 %v3300
        %v3433 = vunpack.c.l.b16 %v3301
        %v3434 = vunpack.c.l.b16 %v3302
        %v3435 = vunpack.c.l.b16 %v3303
        %v3436 = vunpack.c.l.b16 %v3304
        %v3437 = vunpack.c.l.b16 %v3305
        %v3438 = vunpack.c.l.b16 %v3306
        %v3439 = vunpack.c.l.b16 %v3307
        %v3440 = vunpack.c.l.b16 %v3308
        %v3441 = vunpack.c.l.b16 %v3309
        %v3442 = vunpack.c.l.b16 %v3310
        %v3443 = vunpack.c.l.b16 %v3311
        %v3444 = vunpack.c.l.b16 %v3312
        %v3445 = vunpack.c.l.b16 %v3313
        %v3446 = vunpack.c.l.b16 %v3314
        %v3447 = vunpack.c.l.b16 %v3315
        %v3448 = vunpack.c.l.b16 %v3316
        %v3449 = vunpack.c.l.b16 %v3317
        %v3450 = vunpack.c.l.b16 %v3318
        %v3451 = vunpack.c.l.b16 %v3319
        %v3452 = vunpack.c.l.b16 %v3320
        %v3453 = vpack.c.b16 %v3418, %v3417
        %v3454 = vpack.c.b16 %v3420, %v3419
        %v3455 = vpack.c.b16 %v3422, %v3421
        %v3456 = vpack.c.b16 %v3424, %v3423
        %v3457 = vpack.c.b16 %v3426, %v3425
        %v3458 = vpack.c.b16 %v3428, %v3427
        %v3459 = vpack.c.b16 %v3430, %v3429
        %v3460 = vpack.c.b16 %v3432, %v3431
        %v3461 = vpack.c.b16 %v3434, %v3433
        %v3462 = vpack.c.b16 %v3436, %v3435
        %v3463 = vpack.c.b16 %v3438, %v3437
        %v3464 = vpack.c.b16 %v3440, %v3439
        %v3465 = vpack.c.b16 %v3442, %v3441
        %v3466 = vpack.c.b16 %v3444, %v3443
        %v3467 = vpack.c.b16 %v3446, %v3445
        %v3468 = vpack.c.b16 %v3448, %v3447
        %v3469 = vpack.c.b16 %v3450, %v3449
        %v3470 = vpack.c.b16 %v3452, %v3451
        %v3490 = vsel %vm1039, %v3363, 0
        %v3493 = vsel %vm1039, %v3366, 0
        %v3496 = vsel %vm1039, %v3369, 0
        %v3499 = vsel %vm1039, %v3372, 0
        %3501 = vmatprep.subr.bf16.mxu0 0
        %3502 = vmatpush1.bf16.msra.mxu0 %v3453
        %3503 = vmatprep.subr.bf16.mxu0 0
        %3504 = vmatpush1.bf16.msra.mxu0 %v3454
        %3505 = vmatprep.subr.bf16.mxu0 0
        %3506 = vmatpush1.bf16.msra.mxu0 %v3455
        %3507 = vmatprep.subr.bf16.mxu0 0
        %3508 = vmatpush1.bf16.msra.mxu0 %v3456
        %3509 = vmatprep.subr.bf16.mxu0 0
        %3510 = vmatpush1.bf16.msra.mxu0 %v3457
        %3511 = vmatprep.subr.bf16.mxu0 0
        %3512 = vmatpush1.bf16.msra.mxu0 %v3458
        %3513 = vmatprep.subr.bf16.mxu0 0
        %3514 = vmatpush1.bf16.msra.mxu0 %v3459
        %3515 = vmatprep.subr.bf16.mxu0 0
        %3516 = vmatpush1.bf16.msra.mxu0 %v3460
        %3517 = vmatprep.subr.bf16.mxu0 0
        %3518 = vmatpush1.bf16.msra.mxu0 %v3461
        %3519 = vmatprep.subr.bf16.mxu0 0
        %3520 = vmatpush1.bf16.msra.mxu0 %v3462
        %3521 = vmatprep.subr.bf16.mxu0 0
        %3522 = vmatpush1.bf16.msra.mxu0 %v3463
        %3523 = vmatprep.subr.bf16.mxu0 0
        %3524 = vmatpush1.bf16.msra.mxu0 %v3464
        %3525 = vmatprep.subr.bf16.mxu0 0
        %3526 = vmatpush1.bf16.msra.mxu0 %v3465
        %3527 = vmatprep.subr.bf16.mxu0 0
        %3528 = vmatpush1.bf16.msra.mxu0 %v3466
        %3529 = vmatprep.subr.bf16.mxu0 0
        %3530 = vmatpush1.bf16.msra.mxu0 %v3467
        %3531 = vmatprep.subr.bf16.mxu0 0
        %3532 = vmatpush1.bf16.msra.mxu0 %v3468
        %3533 = vmatprep.mubr.bf16.mxu0 %v3362
        %3534 = vmatmul.mubr.bf16.gmra.mrb[0].mxu0 %v3361
        %v3535 = vpop.f32.mrb[0].mxu0
        %v3536 = vadd.f32 0.0, %v3535
        %v3537 = vpop.f32.mrb[0].mxu0
        %v3538 = vpop.f32.mrb[0].mxu0
        %v3539 = vadd.f32 0.0, %v3538
        %v3540 = vpop.f32.mrb[0].mxu0
        %3541 = vmatprep.mubr.bf16.mxu0 %v3365
        %3542 = vmatmul.mubr.bf16.gmra.mrb[0].mxu0 %v3364
        %v3543 = vpop.f32.mrb[0].mxu0
        %v3544 = vadd.f32 0.0, %v3543
        %v3545 = vpop.f32.mrb[0].mxu0
        %v3546 = vpop.f32.mrb[0].mxu0
        %v3547 = vadd.f32 0.0, %v3546
        %v3548 = vpop.f32.mrb[0].mxu0
        %3549 = vmatprep.mubr.bf16.mxu0 %v3368
        %3550 = vmatmul.mubr.bf16.gmra.mrb[0].mxu0 %v3367
        %v3551 = vpop.f32.mrb[0].mxu0
        %v3552 = vadd.f32 0.0, %v3551
        %v3553 = vpop.f32.mrb[0].mxu0
        %v3554 = vpop.f32.mrb[0].mxu0
        %v3555 = vadd.f32 0.0, %v3554
        %v3556 = vpop.f32.mrb[0].mxu0
        %3557 = vmatprep.mubr.bf16.mxu0 %v3371
        %3558 = vmatmul.mubr.bf16.gmra.mrb[0].mxu0 %v3370
        %v3559 = vpop.f32.mrb[0].mxu0
        %v3560 = vadd.f32 0.0, %v3559
        %v3561 = vpop.f32.mrb[0].mxu0
        %v3562 = vpop.f32.mrb[0].mxu0
        %v3563 = vadd.f32 0.0, %v3562
        %v3564 = vpop.f32.mrb[0].mxu0
        %3565 = vdwg.mxu0
        %3566 = vmatprep.subr.bf16.mxu0 0
        %3567 = vmatpush1.bf16.msra.mxu0 %v3469
        %3568 = vmatprep.subr.bf16.mxu0 0
        %3569 = vmatpush1.bf16.msra.mxu0 %v3470
        %3570 = vmatprep.subr.bf16.mxu0 0
        %3571 = vmatpush1.bf16.msra.mxu0 0
        %3572 = vmatprep.subr.bf16.mxu0 0
        %3573 = vmatpush1.bf16.msra.mxu0 0
        %3574 = vmatprep.subr.bf16.mxu0 0
        %3575 = vmatpush1.bf16.msra.mxu0 0
        %3576 = vmatprep.subr.bf16.mxu0 0
        %3577 = vmatpush1.bf16.msra.mxu0 0
        %3578 = vmatprep.subr.bf16.mxu0 0
        %3579 = vmatpush1.bf16.msra.mxu0 0
        %3580 = vmatprep.subr.bf16.mxu0 0
        %3581 = vmatpush1.bf16.msra.mxu0 0
        %3582 = vmatprep.subr.bf16.mxu0 0
        %3583 = vmatpush1.bf16.msra.mxu0 0
        %3584 = vmatprep.subr.bf16.mxu0 0
        %3585 = vmatpush1.bf16.msra.mxu0 0
        %3586 = vmatprep.subr.bf16.mxu0 0
        %3587 = vmatpush1.bf16.msra.mxu0 0
        %3588 = vmatprep.subr.bf16.mxu0 0
        %3589 = vmatpush1.bf16.msra.mxu0 0
        %3590 = vmatprep.subr.bf16.mxu0 0
        %3591 = vmatpush1.bf16.msra.mxu0 0
        %3592 = vmatprep.subr.bf16.mxu0 0
        %3593 = vmatpush1.bf16.msra.mxu0 0
        %3594 = vmatprep.subr.bf16.mxu0 0
        %3595 = vmatpush1.bf16.msra.mxu0 0
        %3596 = vmatprep.subr.bf16.mxu0 0
        %3597 = vmatpush1.bf16.msra.mxu0 0
        %3598 = vmatprep.mubr.bf16.mxu0 0
        %3599 = vmatmul.mubr.bf16.gmra.mrb[0].mxu0 %v3490
        %v3600 = vpop.f32.mrb[0].mxu0
        %v3601 = vadd.f32 %v3536, %v3600
        %v3602 = vpop.f32.mrb[0].mxu0
        %v3603 = vpop.f32.mrb[0].mxu0
        %v3604 = vadd.f32 %v3539, %v3603
        %v3605 = vpop.f32.mrb[0].mxu0
        %3606 = vmatprep.mubr.bf16.mxu0 0
        %3607 = vmatmul.mubr.bf16.gmra.mrb[0].mxu0 %v3493
        %v3608 = vpop.f32.mrb[0].mxu0
        %v3609 = vadd.f32 %v3544, %v3608
        %v3610 = vpop.f32.mrb[0].mxu0
        %v3611 = vpop.f32.mrb[0].mxu0
        %v3612 = vadd.f32 %v3547, %v3611
        %v3613 = vpop.f32.mrb[0].mxu0
        %3614 = vmatprep.mubr.bf16.mxu0 0
        %3615 = vmatmul.mubr.bf16.gmra.mrb[0].mxu0 %v3496
        %v3616 = vpop.f32.mrb[0].mxu0
        %v3617 = vadd.f32 %v3552, %v3616
        %v3618 = vpop.f32.mrb[0].mxu0
        %v3619 = vpop.f32.mrb[0].mxu0
        %v3620 = vadd.f32 %v3555, %v3619
        %v3621 = vpop.f32.mrb[0].mxu0
        %3622 = vmatprep.mubr.bf16.mxu0 0
        %3623 = vmatmul.mubr.bf16.gmra.mrb[0].mxu0 %v3499
        %v3624 = vpop.f32.mrb[0].mxu0
        %v3625 = vadd.f32 %v3560, %v3624
        %v3626 = vpop.f32.mrb[0].mxu0
        %v3627 = vpop.f32.mrb[0].mxu0
        %v3628 = vadd.f32 %v3563, %v3627
        %v3629 = vpop.f32.mrb[0].mxu0
        %3630 = vdwg.mxu0
        %v3631 = vadd.f32 %v3259, %v3601
        %v3632 = vadd.f32 %v3260, %v3604
        %v3633 = vadd.f32 %v3261, %v3609
        %v3634 = vadd.f32 %v3262, %v3612
        %v3635 = vadd.f32 %v3263, %v3617
        %v3636 = vadd.f32 %v3264, %v3620
        %v3637 = vadd.f32 %v3265, %v3625
        %v3638 = vadd.f32 %v3266, %v3628
        %v3639 = vld [vmem:[%s3267] sm:$0xff]
        %v3640 = vld [vmem:[%s3267 + $0x8] sm:$0xf]
        %v3641 = vld [vmem:[%s3267 + $0xc] sm:$0xff]
        %v3642 = vld [vmem:[%s3267 + $0x14] sm:$0xf]
        %v3643 = vld [vmem:[%s3267 + $0x18] sm:$0x11]
        %v3644 = vld [vmem:[%s3267 + $0x20] sm:$0x1]
        %v3645 = vld [vmem:[%s3267 + $0x24] sm:$0xff]
        %v3646 = vld [vmem:[%s3267 + $0x2c] sm:$0xf]
        %v3647 = vld [vmem:[%s3267 + $0x30] sm:$0xff]
        %v3648 = vld [vmem:[%s3267 + $0x38] sm:$0xf]
        %v3649 = vld [vmem:[%s3267 + $0x3c] sm:$0x11]
        %v3650 = vld [vmem:[%s3267 + $0x44] sm:$0x1]
        %v3651 = vld [vmem:[%s3267 + $0x48] sm:$0xff]
        %v3652 = vld [vmem:[%s3267 + $0x50] sm:$0xf]
        %v3653 = vld [vmem:[%s3267 + $0x54] sm:$0xff]
        %v3654 = vld [vmem:[%s3267 + $0x5c] sm:$0xf]
        %v3655 = vld [vmem:[%s3267 + $0x60] sm:$0x11]
        %v3656 = vld [vmem:[%s3267 + $0x68] sm:$0x1]
        %v3657 = vld [vmem:[%s3267 + $0x6c] sm:$0xff]
        %v3658 = vld [vmem:[%s3267 + $0x74] sm:$0xf]
        %v3659 = vld [vmem:[%s3267 + $0x78] sm:$0xff]
        %v3660 = vld [vmem:[%s3267 + $0x80] sm:$0xf]
        %v3661 = vld [vmem:[%s3267 + $0x84] sm:$0x11]
        %v3662 = vld [vmem:[%s3267 + $0x8c] sm:$0x1]
        %v3664 = vshrl.u32 %v3639, 16
        %v3666 = vrot.slane %v3664, 4
        %v3667 = vshll.u32 %v3639, 16
        %v3669 = vrot.slane %v3667, 5
        %v3670 = vor.u32 %v3666, %v3669
        %v3671 = vrot.slane %v3670, 4
        %v3673 = vshll.u32 %v3641, 16
        %v3675 = vrot.slane %v3673, 5
        %v3676 = vsel %vm657, %v3671, %v3675
        %v3678 = vshrl.u32 %v3640, 16
        %v3680 = vrot.slane %v3678, 4
        %v3681 = vshll.u32 %v3640, 16
        %v3683 = vrot.slane %v3681, 5
        %v3684 = vor.u32 %v3680, %v3683
        %v3685 = vrot.slane %v3684, 4
        %v3687 = vshll.u32 %v3642, 16
        %v3689 = vrot.slane %v3687, 5
        %v3690 = vsel %vm657, %v3685, %v3689
        %v3691 = vshrl.u32 %v3641, 16
        %v3693 = vrot.slane %v3691, 4
        %v3694 = vor.u32 %v3693, %v3675
        %v3695 = vrot.slane %v3694, 4
        %v3697 = vshll.u32 %v3643, 16
        %v3699 = vrot.slane %v3697, 5
        %v3700 = vsel %vm657, %v3695, %v3699
        %v3701 = vshrl.u32 %v3642, 16
        %v3703 = vrot.slane %v3701, 4
        %v3704 = vor.u32 %v3703, %v3689
        %v3705 = vrot.slane %v3704, 4
        %v3707 = vshll.u32 %v3644, 16
        %v3709 = vrot.slane %v3707, 5
        %v3710 = vsel %vm657, %v3705, %v3709
        %v3712 = vshrl.u32 %v3645, 16
        %v3714 = vrot.slane %v3712, 4
        %v3715 = vshll.u32 %v3645, 16
        %v3717 = vrot.slane %v3715, 5
        %v3718 = vor.u32 %v3714, %v3717
        %v3719 = vrot.slane %v3718, 4
        %v3721 = vshll.u32 %v3647, 16
        %v3723 = vrot.slane %v3721, 5
        %v3724 = vsel %vm657, %v3719, %v3723
        %v3726 = vshrl.u32 %v3646, 16
        %v3728 = vrot.slane %v3726, 4
        %v3729 = vshll.u32 %v3646, 16
        %v3731 = vrot.slane %v3729, 5
        %v3732 = vor.u32 %v3728, %v3731
        %v3733 = vrot.slane %v3732, 4
        %v3735 = vshll.u32 %v3648, 16
        %v3737 = vrot.slane %v3735, 5
        %v3738 = vsel %vm657, %v3733, %v3737
        %v3739 = vshrl.u32 %v3647, 16
        %v3741 = vrot.slane %v3739, 4
        %v3742 = vor.u32 %v3741, %v3723
        %v3743 = vrot.slane %v3742, 4
        %v3745 = vshll.u32 %v3649, 16
        %v3747 = vrot.slane %v3745, 5
        %v3748 = vsel %vm657, %v3743, %v3747
        %v3749 = vshrl.u32 %v3648, 16
        %v3751 = vrot.slane %v3749, 4
        %v3752 = vor.u32 %v3751, %v3737
        %v3753 = vrot.slane %v3752, 4
        %v3755 = vshll.u32 %v3650, 16
        %v3757 = vrot.slane %v3755, 5
        %v3758 = vsel %vm657, %v3753, %v3757
        %v3760 = vshrl.u32 %v3651, 16
        %v3762 = vrot.slane %v3760, 4
        %v3763 = vshll.u32 %v3651, 16
        %v3765 = vrot.slane %v3763, 5
        %v3766 = vor.u32 %v3762, %v3765
        %v3767 = vrot.slane %v3766, 4
        %v3769 = vshll.u32 %v3653, 16
        %v3771 = vrot.slane %v3769, 5
        %v3772 = vsel %vm657, %v3767, %v3771
        %v3774 = vshrl.u32 %v3652, 16
        %v3776 = vrot.slane %v3774, 4
        %v3777 = vshll.u32 %v3652, 16
        %v3779 = vrot.slane %v3777, 5
        %v3780 = vor.u32 %v3776, %v3779
        %v3781 = vrot.slane %v3780, 4
        %v3783 = vshll.u32 %v3654, 16
        %v3785 = vrot.slane %v3783, 5
        %v3786 = vsel %vm657, %v3781, %v3785
        %v3787 = vshrl.u32 %v3653, 16
        %v3789 = vrot.slane %v3787, 4
        %v3790 = vor.u32 %v3789, %v3771
        %v3791 = vrot.slane %v3790, 4
        %v3793 = vshll.u32 %v3655, 16
        %v3795 = vrot.slane %v3793, 5
        %v3796 = vsel %vm657, %v3791, %v3795
        %v3797 = vshrl.u32 %v3654, 16
        %v3799 = vrot.slane %v3797, 4
        %v3800 = vor.u32 %v3799, %v3785
        %v3801 = vrot.slane %v3800, 4
        %v3803 = vshll.u32 %v3656, 16
        %v3805 = vrot.slane %v3803, 5
        %v3806 = vsel %vm657, %v3801, %v3805
        %v3808 = vshrl.u32 %v3657, 16
        %v3810 = vrot.slane %v3808, 4
        %v3811 = vshll.u32 %v3657, 16
        %v3813 = vrot.slane %v3811, 5
        %v3814 = vor.u32 %v3810, %v3813
        %v3815 = vrot.slane %v3814, 4
        %v3817 = vshll.u32 %v3659, 16
        %v3819 = vrot.slane %v3817, 5
        %v3820 = vsel %vm657, %v3815, %v3819
        %v3822 = vshrl.u32 %v3658, 16
        %v3824 = vrot.slane %v3822, 4
        %v3825 = vshll.u32 %v3658, 16
        %v3827 = vrot.slane %v3825, 5
        %v3828 = vor.u32 %v3824, %v3827
        %v3829 = vrot.slane %v3828, 4
        %v3831 = vshll.u32 %v3660, 16
        %v3833 = vrot.slane %v3831, 5
        %v3834 = vsel %vm657, %v3829, %v3833
        %v3835 = vshrl.u32 %v3659, 16
        %v3837 = vrot.slane %v3835, 4
        %v3838 = vor.u32 %v3837, %v3819
        %v3839 = vrot.slane %v3838, 4
        %v3841 = vshll.u32 %v3661, 16
        %v3843 = vrot.slane %v3841, 5
        %v3844 = vsel %vm657, %v3839, %v3843
        %v3845 = vshrl.u32 %v3660, 16
        %v3847 = vrot.slane %v3845, 4
        %v3848 = vor.u32 %v3847, %v3833
        %v3849 = vrot.slane %v3848, 4
        %v3851 = vshll.u32 %v3662, 16
        %v3853 = vrot.slane %v3851, 5
        %v3854 = vsel %vm657, %v3849, %v3853
        %s3855 = scalar_lea.vmem [#allocation7], 1008
        %v3856 = vld [vmem:[%s3855] sm:$0xf]
        %v3857 = vld [vmem:[%s3855 + $0x4] sm:$0xf]
        %v3858 = vld [vmem:[%s3855 + $0x8] sm:$0xf]
        %v3859 = vld [vmem:[%s3855 + $0xc] sm:$0xf]
        %v3860 = vld [vmem:[%s3855 + $0x10] sm:$0xf]
        %v3861 = vld [vmem:[%s3855 + $0x14] sm:$0xf]
        %v3862 = vld [vmem:[%s3855 + $0x18] sm:$0xf]
        %v3863 = vld [vmem:[%s3855 + $0x1c] sm:$0xf]
        %v3864 = vld [vmem:[%s3855 + $0x20] sm:$0xf]
        %v3865 = vld [vmem:[%s3855 + $0x24] sm:$0xf]
        %v3866 = vld [vmem:[%s3855 + $0x28] sm:$0xf]
        %v3867 = vld [vmem:[%s3855 + $0x2c] sm:$0xf]
        %v3868 = vld [vmem:[%s3855 + $0x30] sm:$0xf]
        %v3869 = vld [vmem:[%s3855 + $0x34] sm:$0xf]
        %v3870 = vld [vmem:[%s3855 + $0x38] sm:$0xf]
        %v3871 = vld [vmem:[%s3855 + $0x3c] sm:$0xf]
        %v3872 = vld [vmem:[%s3855 + $0x40] sm:$0xf]
        %v3873 = vld [vmem:[%s3855 + $0x44] sm:$0xf]
        %v3874 = vld [vmem:[%s3855 + $0x48] sm:$0xf]
        %v3875 = vld [vmem:[%s3855 + $0x4c] sm:$0xf]
        %v3876 = vld [vmem:[%s3855 + $0x50] sm:$0xf]
        %v3877 = vld [vmem:[%s3855 + $0x54] sm:$0xf]
        %v3878 = vld [vmem:[%s3855 + $0x58] sm:$0xf]
        %v3879 = vld [vmem:[%s3855 + $0x5c] sm:$0xf]
        %v3880 = vld [vmem:[%s3855 + $0x60] sm:$0xf]
        %v3881 = vld [vmem:[%s3855 + $0x64] sm:$0xf]
        %v3882 = vld [vmem:[%s3855 + $0x68] sm:$0xf]
        %v3883 = vld [vmem:[%s3855 + $0x6c] sm:$0xf]
        %v3884 = vld [vmem:[%s3855 + $0x70] sm:$0xf]
        %v3885 = vld [vmem:[%s3855 + $0x74] sm:$0xf]
        %v3886 = vld [vmem:[%s3855 + $0x78] sm:$0xf]
        %v3887 = vld [vmem:[%s3855 + $0x7c] sm:$0xf]
        %v3888 = vld [vmem:[%s3855 + $0x80] sm:$0xf]
        %v3889 = vld [vmem:[%s3855 + $0x84] sm:$0xf]
        %v3890 = vld [vmem:[%s3855 + $0x88] sm:$0xf]
        %v3891 = vld [vmem:[%s3855 + $0x8c] sm:$0xf]
        %v3892 = vunpack.c.l.b16 %v3676
        %v3893 = vunpack.c.h.b16 %v3676
        %v3894 = vunpack.c.l.b16 %v3690
        %v3895 = vunpack.c.l.b16 %v3700
        %v3896 = vunpack.c.h.b16 %v3700
        %v3897 = vunpack.c.l.b16 %v3710
        %v3898 = vunpack.c.l.b16 %v3724
        %v3899 = vunpack.c.h.b16 %v3724
        %v3900 = vunpack.c.l.b16 %v3738
        %v3901 = vunpack.c.l.b16 %v3748
        %v3902 = vunpack.c.h.b16 %v3748
        %v3903 = vunpack.c.l.b16 %v3758
        %v3904 = vunpack.c.l.b16 %v3772
        %v3905 = vunpack.c.h.b16 %v3772
        %v3906 = vunpack.c.l.b16 %v3786
        %v3907 = vunpack.c.l.b16 %v3796
        %v3908 = vunpack.c.h.b16 %v3796
        %v3909 = vunpack.c.l.b16 %v3806
        %v3910 = vunpack.c.l.b16 %v3820
        %v3911 = vunpack.c.h.b16 %v3820
        %v3912 = vunpack.c.l.b16 %v3834
        %v3913 = vunpack.c.l.b16 %v3844
        %v3914 = vunpack.c.h.b16 %v3844
        %v3915 = vunpack.c.l.b16 %v3854
        %v3916 = vpack.c.b16 %v3895, %v3892
        %v3917 = vpack.c.b16 %v3896, %v3893
        %v3918 = vpack.c.b16 %v3897, %v3894
        %v3919 = vpack.c.b16 %v3901, %v3898
        %v3920 = vpack.c.b16 %v3902, %v3899
        %v3921 = vpack.c.b16 %v3903, %v3900
        %v3922 = vpack.c.b16 %v3907, %v3904
        %v3923 = vpack.c.b16 %v3908, %v3905
        %v3924 = vpack.c.b16 %v3909, %v3906
        %v3925 = vpack.c.b16 %v3913, %v3910
        %v3926 = vpack.c.b16 %v3914, %v3911
        %v3927 = vpack.c.b16 %v3915, %v3912
        %v3972 = vunpack.c.l.b16 %v3856
        %v3973 = vunpack.c.l.b16 %v3857
        %v3974 = vunpack.c.l.b16 %v3858
        %v3975 = vunpack.c.l.b16 %v3859
        %v3976 = vunpack.c.l.b16 %v3860
        %v3977 = vunpack.c.l.b16 %v3861
        %v3978 = vunpack.c.l.b16 %v3862
        %v3979 = vunpack.c.l.b16 %v3863
        %v3980 = vunpack.c.l.b16 %v3864
        %v3981 = vunpack.c.l.b16 %v3865
        %v3982 = vunpack.c.l.b16 %v3866
        %v3983 = vunpack.c.l.b16 %v3867
        %v3984 = vunpack.c.l.b16 %v3868
        %v3985 = vunpack.c.l.b16 %v3869
        %v3986 = vunpack.c.l.b16 %v3870
        %v3987 = vunpack.c.l.b16 %v3871
        %v3988 = vunpack.c.l.b16 %v3872
        %v3989 = vunpack.c.l.b16 %v3873
        %v3990 = vunpack.c.l.b16 %v3874
        %v3991 = vunpack.c.l.b16 %v3875
        %v3992 = vunpack.c.l.b16 %v3876
        %v3993 = vunpack.c.l.b16 %v3877
        %v3994 = vunpack.c.l.b16 %v3878
        %v3995 = vunpack.c.l.b16 %v3879
        %v3996 = vunpack.c.l.b16 %v3880
        %v3997 = vunpack.c.l.b16 %v3881
        %v3998 = vunpack.c.l.b16 %v3882
        %v3999 = vunpack.c.l.b16 %v3883
        %v4000 = vunpack.c.l.b16 %v3884
        %v4001 = vunpack.c.l.b16 %v3885
        %v4002 = vunpack.c.l.b16 %v3886
        %v4003 = vunpack.c.l.b16 %v3887
        %v4004 = vunpack.c.l.b16 %v3888
        %v4005 = vunpack.c.l.b16 %v3889
        %v4006 = vunpack.c.l.b16 %v3890
        %v4007 = vunpack.c.l.b16 %v3891
        %v4008 = vpack.c.b16 %v3973, %v3972
        %v4009 = vpack.c.b16 %v3975, %v3974
        %v4010 = vpack.c.b16 %v3977, %v3976
        %v4011 = vpack.c.b16 %v3979, %v3978
        %v4012 = vpack.c.b16 %v3981, %v3980
        %v4013 = vpack.c.b16 %v3983, %v3982
        %v4014 = vpack.c.b16 %v3985, %v3984
        %v4015 = vpack.c.b16 %v3987, %v3986
        %v4016 = vpack.c.b16 %v3989, %v3988
        %v4017 = vpack.c.b16 %v3991, %v3990
        %v4018 = vpack.c.b16 %v3993, %v3992
        %v4019 = vpack.c.b16 %v3995, %v3994
        %v4020 = vpack.c.b16 %v3997, %v3996
        %v4021 = vpack.c.b16 %v3999, %v3998
        %v4022 = vpack.c.b16 %v4001, %v4000
        %v4023 = vpack.c.b16 %v4003, %v4002
        %v4024 = vpack.c.b16 %v4005, %v4004
        %v4025 = vpack.c.b16 %v4007, %v4006
        %v4045 = vsel %vm1039, %v3918, 0
        %v4048 = vsel %vm1039, %v3921, 0
        %v4051 = vsel %vm1039, %v3924, 0
        %v4054 = vsel %vm1039, %v3927, 0
        %4056 = vmatprep.subr.bf16.mxu0 0
        %4057 = vmatpush1.bf16.msra.mxu0 %v4008
        %4058 = vmatprep.subr.bf16.mxu0 0
        %4059 = vmatpush1.bf16.msra.mxu0 %v4009
        %4060 = vmatprep.subr.bf16.mxu0 0
        %4061 = vmatpush1.bf16.msra.mxu0 %v4010
        %4062 = vmatprep.subr.bf16.mxu0 0
        %4063 = vmatpush1.bf16.msra.mxu0 %v4011
        %4064 = vmatprep.subr.bf16.mxu0 0
        %4065 = vmatpush1.bf16.msra.mxu0 %v4012
        %4066 = vmatprep.subr.bf16.mxu0 0
        %4067 = vmatpush1.bf16.msra.mxu0 %v4013
        %4068 = vmatprep.subr.bf16.mxu0 0
        %4069 = vmatpush1.bf16.msra.mxu0 %v4014
        %4070 = vmatprep.subr.bf16.mxu0 0
        %4071 = vmatpush1.bf16.msra.mxu0 %v4015
        %4072 = vmatprep.subr.bf16.mxu0 0
        %4073 = vmatpush1.bf16.msra.mxu0 %v4016
        %4074 = vmatprep.subr.bf16.mxu0 0
        %4075 = vmatpush1.bf16.msra.mxu0 %v4017
        %4076 = vmatprep.subr.bf16.mxu0 0
        %4077 = vmatpush1.bf16.msra.mxu0 %v4018
        %4078 = vmatprep.subr.bf16.mxu0 0
        %4079 = vmatpush1.bf16.msra.mxu0 %v4019
        %4080 = vmatprep.subr.bf16.mxu0 0
        %4081 = vmatpush1.bf16.msra.mxu0 %v4020
        %4082 = vmatprep.subr.bf16.mxu0 0
        %4083 = vmatpush1.bf16.msra.mxu0 %v4021
        %4084 = vmatprep.subr.bf16.mxu0 0
        %4085 = vmatpush1.bf16.msra.mxu0 %v4022
        %4086 = vmatprep.subr.bf16.mxu0 0
        %4087 = vmatpush1.bf16.msra.mxu0 %v4023
        %4088 = vmatprep.mubr.bf16.mxu0 %v3917
        %4089 = vmatmul.mubr.bf16.gmra.mrb[0].mxu0 %v3916
        %v4090 = vpop.f32.mrb[0].mxu0
        %v4091 = vadd.f32 0.0, %v4090
        %v4092 = vpop.f32.mrb[0].mxu0
        %v4093 = vpop.f32.mrb[0].mxu0
        %v4094 = vadd.f32 0.0, %v4093
        %v4095 = vpop.f32.mrb[0].mxu0
        %4096 = vmatprep.mubr.bf16.mxu0 %v3920
        %4097 = vmatmul.mubr.bf16.gmra.mrb[0].mxu0 %v3919
        %v4098 = vpop.f32.mrb[0].mxu0
        %v4099 = vadd.f32 0.0, %v4098
        %v4100 = vpop.f32.mrb[0].mxu0
        %v4101 = vpop.f32.mrb[0].mxu0
        %v4102 = vadd.f32 0.0, %v4101
        %v4103 = vpop.f32.mrb[0].mxu0
        %4104 = vmatprep.mubr.bf16.mxu0 %v3923
        %4105 = vmatmul.mubr.bf16.gmra.mrb[0].mxu0 %v3922
        %v4106 = vpop.f32.mrb[0].mxu0
        %v4107 = vadd.f32 0.0, %v4106
        %v4108 = vpop.f32.mrb[0].mxu0
        %v4109 = vpop.f32.mrb[0].mxu0
        %v4110 = vadd.f32 0.0, %v4109
        %v4111 = vpop.f32.mrb[0].mxu0
        %4112 = vmatprep.mubr.bf16.mxu0 %v3926
        %4113 = vmatmul.mubr.bf16.gmra.mrb[0].mxu0 %v3925
        %v4114 = vpop.f32.mrb[0].mxu0
        %v4115 = vadd.f32 0.0, %v4114
        %v4116 = vpop.f32.mrb[0].mxu0
        %v4117 = vpop.f32.mrb[0].mxu0
        %v4118 = vadd.f32 0.0, %v4117
        %v4119 = vpop.f32.mrb[0].mxu0
        %4120 = vdwg.mxu0
        %4121 = vmatprep.subr.bf16.mxu0 0
        %4122 = vmatpush1.bf16.msra.mxu0 %v4024
        %4123 = vmatprep.subr.bf16.mxu0 0
        %4124 = vmatpush1.bf16.msra.mxu0 %v4025
        %4125 = vmatprep.subr.bf16.mxu0 0
        %4126 = vmatpush1.bf16.msra.mxu0 0
        %4127 = vmatprep.subr.bf16.mxu0 0
        %4128 = vmatpush1.bf16.msra.mxu0 0
        %4129 = vmatprep.subr.bf16.mxu0 0
        %4130 = vmatpush1.bf16.msra.mxu0 0
        %4131 = vmatprep.subr.bf16.mxu0 0
        %4132 = vmatpush1.bf16.msra.mxu0 0
        %4133 = vmatprep.subr.bf16.mxu0 0
        %4134 = vmatpush1.bf16.msra.mxu0 0
        %4135 = vmatprep.subr.bf16.mxu0 0
        %4136 = vmatpush1.bf16.msra.mxu0 0
        %4137 = vmatprep.subr.bf16.mxu0 0
        %4138 = vmatpush1.bf16.msra.mxu0 0
        %4139 = vmatprep.subr.bf16.mxu0 0
        %4140 = vmatpush1.bf16.msra.mxu0 0
        %4141 = vmatprep.subr.bf16.mxu0 0
        %4142 = vmatpush1.bf16.msra.mxu0 0
        %4143 = vmatprep.subr.bf16.mxu0 0
        %4144 = vmatpush1.bf16.msra.mxu0 0
        %4145 = vmatprep.subr.bf16.mxu0 0
        %4146 = vmatpush1.bf16.msra.mxu0 0
        %4147 = vmatprep.subr.bf16.mxu0 0
        %4148 = vmatpush1.bf16.msra.mxu0 0
        %4149 = vmatprep.subr.bf16.mxu0 0
        %4150 = vmatpush1.bf16.msra.mxu0 0
        %4151 = vmatprep.subr.bf16.mxu0 0
        %4152 = vmatpush1.bf16.msra.mxu0 0
        %4153 = vmatprep.mubr.bf16.mxu0 0
        %4154 = vmatmul.mubr.bf16.gmra.mrb[0].mxu0 %v4045
        %v4155 = vpop.f32.mrb[0].mxu0
        %v4156 = vadd.f32 %v4091, %v4155
        %v4157 = vpop.f32.mrb[0].mxu0
        %v4158 = vpop.f32.mrb[0].mxu0
        %v4159 = vadd.f32 %v4094, %v4158
        %v4160 = vpop.f32.mrb[0].mxu0
        %4161 = vmatprep.mubr.bf16.mxu0 0
        %4162 = vmatmul.mubr.bf16.gmra.mrb[0].mxu0 %v4048
        %v4163 = vpop.f32.mrb[0].mxu0
        %v4164 = vadd.f32 %v4099, %v4163
        %v4165 = vpop.f32.mrb[0].mxu0
        %v4166 = vpop.f32.mrb[0].mxu0
        %v4167 = vadd.f32 %v4102, %v4166
        %v4168 = vpop.f32.mrb[0].mxu0
        %4169 = vmatprep.mubr.bf16.mxu0 0
        %4170 = vmatmul.mubr.bf16.gmra.mrb[0].mxu0 %v4051
        %v4171 = vpop.f32.mrb[0].mxu0
        %v4172 = vadd.f32 %v4107, %v4171
        %v4173 = vpop.f32.mrb[0].mxu0
        %v4174 = vpop.f32.mrb[0].mxu0
        %v4175 = vadd.f32 %v4110, %v4174
        %v4176 = vpop.f32.mrb[0].mxu0
        %4177 = vmatprep.mubr.bf16.mxu0 0
        %4178 = vmatmul.mubr.bf16.gmra.mrb[0].mxu0 %v4054
        %v4179 = vpop.f32.mrb[0].mxu0
        %v4180 = vadd.f32 %v4115, %v4179
        %v4181 = vpop.f32.mrb[0].mxu0
        %v4182 = vpop.f32.mrb[0].mxu0
        %v4183 = vadd.f32 %v4118, %v4182
        %v4184 = vpop.f32.mrb[0].mxu0
        %4185 = vdwg.mxu0
        %v4186 = vadd.f32 %v3631, %v4156
        %v4187 = vadd.f32 %v3632, %v4159
        %v4188 = vadd.f32 %v3633, %v4164
        %v4189 = vadd.f32 %v3634, %v4167
        %v4190 = vadd.f32 %v3635, %v4172
        %v4191 = vadd.f32 %v3636, %v4175
        %v4192 = vadd.f32 %v3637, %v4180
        %v4193 = vadd.f32 %v3638, %v4183
        %v4194 = vld [vmem:[%s3267] sm:$0xee]
        %v4195 = vld [vmem:[%s3267 + $0x8] sm:$0xe]
        %v4196 = vld [vmem:[%s3267 + $0x24] sm:$0xee]
        %v4197 = vld [vmem:[%s3267 + $0x2c] sm:$0xe]
        %v4198 = vld [vmem:[%s3267 + $0x48] sm:$0xee]
        %v4199 = vld [vmem:[%s3267 + $0x50] sm:$0xe]
        %v4200 = vld [vmem:[%s3267 + $0x6c] sm:$0xee]
        %v4201 = vld [vmem:[%s3267 + $0x74] sm:$0xe]
        %v4226 = vrot.slane %v4194, 5
        %v4227 = vrot.slane %v4226, 4
        %v4228 = vrot.slane %v3641, 5
        %v4229 = vsel %vm1518, %v4227, %v4228
        %v4230 = vrot.slane %v4195, 5
        %v4231 = vrot.slane %v4230, 4
        %v4232 = vrot.slane %v3642, 5
        %v4233 = vsel %vm1518, %v4231, %v4232
        %v4234 = vrot.slane %v4228, 4
        %v4235 = vrot.slane %v3643, 5
        %v4236 = vsel %vm1518, %v4234, %v4235
        %v4237 = vrot.slane %v4232, 4
        %v4238 = vrot.slane %v3644, 5
        %v4239 = vsel %vm1518, %v4237, %v4238
        %v4240 = vrot.slane %v4196, 5
        %v4241 = vrot.slane %v4240, 4
        %v4242 = vrot.slane %v3647, 5
        %v4243 = vsel %vm1518, %v4241, %v4242
        %v4244 = vrot.slane %v4197, 5
        %v4245 = vrot.slane %v4244, 4
        %v4246 = vrot.slane %v3648, 5
        %v4247 = vsel %vm1518, %v4245, %v4246
        %v4248 = vrot.slane %v4242, 4
        %v4249 = vrot.slane %v3649, 5
        %v4250 = vsel %vm1518, %v4248, %v4249
        %v4251 = vrot.slane %v4246, 4
        %v4252 = vrot.slane %v3650, 5
        %v4253 = vsel %vm1518, %v4251, %v4252
        %v4254 = vrot.slane %v4198, 5
        %v4255 = vrot.slane %v4254, 4
        %v4256 = vrot.slane %v3653, 5
        %v4257 = vsel %vm1518, %v4255, %v4256
        %v4258 = vrot.slane %v4199, 5
        %v4259 = vrot.slane %v4258, 4
        %v4260 = vrot.slane %v3654, 5
        %v4261 = vsel %vm1518, %v4259, %v4260
        %v4262 = vrot.slane %v4256, 4
        %v4263 = vrot.slane %v3655, 5
        %v4264 = vsel %vm1518, %v4262, %v4263
        %v4265 = vrot.slane %v4260, 4
        %v4266 = vrot.slane %v3656, 5
        %v4267 = vsel %vm1518, %v4265, %v4266
        %v4268 = vrot.slane %v4200, 5
        %v4269 = vrot.slane %v4268, 4
        %v4270 = vrot.slane %v3659, 5
        %v4271 = vsel %vm1518, %v4269, %v4270
        %v4272 = vrot.slane %v4201, 5
        %v4273 = vrot.slane %v4272, 4
        %v4274 = vrot.slane %v3660, 5
        %v4275 = vsel %vm1518, %v4273, %v4274
        %v4276 = vrot.slane %v4270, 4
        %v4277 = vrot.slane %v3661, 5
        %v4278 = vsel %vm1518, %v4276, %v4277
        %v4279 = vrot.slane %v4274, 4
        %v4280 = vrot.slane %v3662, 5
        %v4281 = vsel %vm1518, %v4279, %v4280
        %s4282 = scalar_lea.vmem [#allocation7], 1152
        %v4283 = vld [vmem:[%s4282] sm:$0xf]
        %v4284 = vld [vmem:[%s4282 + $0x4] sm:$0xf]
        %v4285 = vld [vmem:[%s4282 + $0x8] sm:$0xf]
        %v4286 = vld [vmem:[%s4282 + $0xc] sm:$0xf]
        %v4287 = vld [vmem:[%s4282 + $0x10] sm:$0xf]
        %v4288 = vld [vmem:[%s4282 + $0x14] sm:$0xf]
        %v4289 = vld [vmem:[%s4282 + $0x18] sm:$0xf]
        %v4290 = vld [vmem:[%s4282 + $0x1c] sm:$0xf]
        %v4291 = vld [vmem:[%s4282 + $0x20] sm:$0xf]
        %v4292 = vld [vmem:[%s4282 + $0x24] sm:$0xf]
        %v4293 = vld [vmem:[%s4282 + $0x28] sm:$0xf]
        %v4294 = vld [vmem:[%s4282 + $0x2c] sm:$0xf]
        %v4295 = vld [vmem:[%s4282 + $0x30] sm:$0xf]
        %v4296 = vld [vmem:[%s4282 + $0x34] sm:$0xf]
        %v4297 = vld [vmem:[%s4282 + $0x38] sm:$0xf]
        %v4298 = vld [vmem:[%s4282 + $0x3c] sm:$0xf]
        %v4299 = vld [vmem:[%s4282 + $0x40] sm:$0xf]
        %v4300 = vld [vmem:[%s4282 + $0x44] sm:$0xf]
        %v4301 = vld [vmem:[%s4282 + $0x48] sm:$0xf]
        %v4302 = vld [vmem:[%s4282 + $0x4c] sm:$0xf]
        %v4303 = vld [vmem:[%s4282 + $0x50] sm:$0xf]
        %v4304 = vld [vmem:[%s4282 + $0x54] sm:$0xf]
        %v4305 = vld [vmem:[%s4282 + $0x58] sm:$0xf]
        %v4306 = vld [vmem:[%s4282 + $0x5c] sm:$0xf]
        %v4307 = vld [vmem:[%s4282 + $0x60] sm:$0xf]
        %v4308 = vld [vmem:[%s4282 + $0x64] sm:$0xf]
        %v4309 = vld [vmem:[%s4282 + $0x68] sm:$0xf]
        %v4310 = vld [vmem:[%s4282 + $0x6c] sm:$0xf]
        %v4311 = vld [vmem:[%s4282 + $0x70] sm:$0xf]
        %v4312 = vld [vmem:[%s4282 + $0x74] sm:$0xf]
        %v4313 = vld [vmem:[%s4282 + $0x78] sm:$0xf]
        %v4314 = vld [vmem:[%s4282 + $0x7c] sm:$0xf]
        %v4315 = vld [vmem:[%s4282 + $0x80] sm:$0xf]
        %v4316 = vld [vmem:[%s4282 + $0x84] sm:$0xf]
        %v4317 = vld [vmem:[%s4282 + $0x88] sm:$0xf]
        %v4318 = vld [vmem:[%s4282 + $0x8c] sm:$0xf]
        %v4319 = vunpack.c.l.b16 %v4229
        %v4320 = vunpack.c.h.b16 %v4229
        %v4321 = vunpack.c.l.b16 %v4233
        %v4322 = vunpack.c.l.b16 %v4236
        %v4323 = vunpack.c.h.b16 %v4236
        %v4324 = vunpack.c.l.b16 %v4239
        %v4325 = vunpack.c.l.b16 %v4243
        %v4326 = vunpack.c.h.b16 %v4243
        %v4327 = vunpack.c.l.b16 %v4247
        %v4328 = vunpack.c.l.b16 %v4250
        %v4329 = vunpack.c.h.b16 %v4250
        %v4330 = vunpack.c.l.b16 %v4253
        %v4331 = vunpack.c.l.b16 %v4257
        %v4332 = vunpack.c.h.b16 %v4257
        %v4333 = vunpack.c.l.b16 %v4261
        %v4334 = vunpack.c.l.b16 %v4264
        %v4335 = vunpack.c.h.b16 %v4264
        %v4336 = vunpack.c.l.b16 %v4267
        %v4337 = vunpack.c.l.b16 %v4271
        %v4338 = vunpack.c.h.b16 %v4271
        %v4339 = vunpack.c.l.b16 %v4275
        %v4340 = vunpack.c.l.b16 %v4278
        %v4341 = vunpack.c.h.b16 %v4278
        %v4342 = vunpack.c.l.b16 %v4281
        %v4343 = vpack.c.b16 %v4322, %v4319
        %v4344 = vpack.c.b16 %v4323, %v4320
        %v4345 = vpack.c.b16 %v4324, %v4321
        %v4346 = vpack.c.b16 %v4328, %v4325
        %v4347 = vpack.c.b16 %v4329, %v4326
        %v4348 = vpack.c.b16 %v4330, %v4327
        %v4349 = vpack.c.b16 %v4334, %v4331
        %v4350 = vpack.c.b16 %v4335, %v4332
        %v4351 = vpack.c.b16 %v4336, %v4333
        %v4352 = vpack.c.b16 %v4340, %v4337
        %v4353 = vpack.c.b16 %v4341, %v4338
        %v4354 = vpack.c.b16 %v4342, %v4339
        %v4399 = vunpack.c.l.b16 %v4283
        %v4400 = vunpack.c.l.b16 %v4284
        %v4401 = vunpack.c.l.b16 %v4285
        %v4402 = vunpack.c.l.b16 %v4286
        %v4403 = vunpack.c.l.b16 %v4287
        %v4404 = vunpack.c.l.b16 %v4288
        %v4405 = vunpack.c.l.b16 %v4289
        %v4406 = vunpack.c.l.b16 %v4290
        %v4407 = vunpack.c.l.b16 %v4291
        %v4408 = vunpack.c.l.b16 %v4292
        %v4409 = vunpack.c.l.b16 %v4293
        %v4410 = vunpack.c.l.b16 %v4294
        %v4411 = vunpack.c.l.b16 %v4295
        %v4412 = vunpack.c.l.b16 %v4296
        %v4413 = vunpack.c.l.b16 %v4297
        %v4414 = vunpack.c.l.b16 %v4298
        %v4415 = vunpack.c.l.b16 %v4299
        %v4416 = vunpack.c.l.b16 %v4300
        %v4417 = vunpack.c.l.b16 %v4301
        %v4418 = vunpack.c.l.b16 %v4302
        %v4419 = vunpack.c.l.b16 %v4303
        %v4420 = vunpack.c.l.b16 %v4304
        %v4421 = vunpack.c.l.b16 %v4305
        %v4422 = vunpack.c.l.b16 %v4306
        %v4423 = vunpack.c.l.b16 %v4307
        %v4424 = vunpack.c.l.b16 %v4308
        %v4425 = vunpack.c.l.b16 %v4309
        %v4426 = vunpack.c.l.b16 %v4310
        %v4427 = vunpack.c.l.b16 %v4311
        %v4428 = vunpack.c.l.b16 %v4312
        %v4429 = vunpack.c.l.b16 %v4313
        %v4430 = vunpack.c.l.b16 %v4314
        %v4431 = vunpack.c.l.b16 %v4315
        %v4432 = vunpack.c.l.b16 %v4316
        %v4433 = vunpack.c.l.b16 %v4317
        %v4434 = vunpack.c.l.b16 %v4318
        %v4435 = vpack.c.b16 %v4400, %v4399
        %v4436 = vpack.c.b16 %v4402, %v4401
        %v4437 = vpack.c.b16 %v4404, %v4403
        %v4438 = vpack.c.b16 %v4406, %v4405
        %v4439 = vpack.c.b16 %v4408, %v4407
        %v4440 = vpack.c.b16 %v4410, %v4409
        %v4441 = vpack.c.b16 %v4412, %v4411
        %v4442 = vpack.c.b16 %v4414, %v4413
        %v4443 = vpack.c.b16 %v4416, %v4415
        %v4444 = vpack.c.b16 %v4418, %v4417
        %v4445 = vpack.c.b16 %v4420, %v4419
        %v4446 = vpack.c.b16 %v4422, %v4421
        %v4447 = vpack.c.b16 %v4424, %v4423
        %v4448 = vpack.c.b16 %v4426, %v4425
        %v4449 = vpack.c.b16 %v4428, %v4427
        %v4450 = vpack.c.b16 %v4430, %v4429
        %v4451 = vpack.c.b16 %v4432, %v4431
        %v4452 = vpack.c.b16 %v4434, %v4433
        %v4472 = vsel %vm1039, %v4345, 0
        %v4475 = vsel %vm1039, %v4348, 0
        %v4478 = vsel %vm1039, %v4351, 0
        %v4481 = vsel %vm1039, %v4354, 0
        %4483 = vmatprep.subr.bf16.mxu0 0
        %4484 = vmatpush1.bf16.msra.mxu0 %v4435
        %4485 = vmatprep.subr.bf16.mxu0 0
        %4486 = vmatpush1.bf16.msra.mxu0 %v4436
        %4487 = vmatprep.subr.bf16.mxu0 0
        %4488 = vmatpush1.bf16.msra.mxu0 %v4437
        %4489 = vmatprep.subr.bf16.mxu0 0
        %4490 = vmatpush1.bf16.msra.mxu0 %v4438
        %4491 = vmatprep.subr.bf16.mxu0 0
        %4492 = vmatpush1.bf16.msra.mxu0 %v4439
        %4493 = vmatprep.subr.bf16.mxu0 0
        %4494 = vmatpush1.bf16.msra.mxu0 %v4440
        %4495 = vmatprep.subr.bf16.mxu0 0
        %4496 = vmatpush1.bf16.msra.mxu0 %v4441
        %4497 = vmatprep.subr.bf16.mxu0 0
        %4498 = vmatpush1.bf16.msra.mxu0 %v4442
        %4499 = vmatprep.subr.bf16.mxu0 0
        %4500 = vmatpush1.bf16.msra.mxu0 %v4443
        %4501 = vmatprep.subr.bf16.mxu0 0
        %4502 = vmatpush1.bf16.msra.mxu0 %v4444
        %4503 = vmatprep.subr.bf16.mxu0 0
        %4504 = vmatpush1.bf16.msra.mxu0 %v4445
        %4505 = vmatprep.subr.bf16.mxu0 0
        %4506 = vmatpush1.bf16.msra.mxu0 %v4446
        %4507 = vmatprep.subr.bf16.mxu0 0
        %4508 = vmatpush1.bf16.msra.mxu0 %v4447
        %4509 = vmatprep.subr.bf16.mxu0 0
        %4510 = vmatpush1.bf16.msra.mxu0 %v4448
        %4511 = vmatprep.subr.bf16.mxu0 0
        %4512 = vmatpush1.bf16.msra.mxu0 %v4449
        %4513 = vmatprep.subr.bf16.mxu0 0
        %4514 = vmatpush1.bf16.msra.mxu0 %v4450
        %4515 = vmatprep.mubr.bf16.mxu0 %v4344
        %4516 = vmatmul.mubr.bf16.gmra.mrb[0].mxu0 %v4343
        %v4517 = vpop.f32.mrb[0].mxu0
        %v4518 = vadd.f32 0.0, %v4517
        %v4519 = vpop.f32.mrb[0].mxu0
        %v4520 = vpop.f32.mrb[0].mxu0
        %v4521 = vadd.f32 0.0, %v4520
        %v4522 = vpop.f32.mrb[0].mxu0
        %4523 = vmatprep.mubr.bf16.mxu0 %v4347
        %4524 = vmatmul.mubr.bf16.gmra.mrb[0].mxu0 %v4346
        %v4525 = vpop.f32.mrb[0].mxu0
        %v4526 = vadd.f32 0.0, %v4525
        %v4527 = vpop.f32.mrb[0].mxu0
        %v4528 = vpop.f32.mrb[0].mxu0
        %v4529 = vadd.f32 0.0, %v4528
        %v4530 = vpop.f32.mrb[0].mxu0
        %4531 = vmatprep.mubr.bf16.mxu0 %v4350
        %4532 = vmatmul.mubr.bf16.gmra.mrb[0].mxu0 %v4349
        %v4533 = vpop.f32.mrb[0].mxu0
        %v4534 = vadd.f32 0.0, %v4533
        %v4535 = vpop.f32.mrb[0].mxu0
        %v4536 = vpop.f32.mrb[0].mxu0
        %v4537 = vadd.f32 0.0, %v4536
        %v4538 = vpop.f32.mrb[0].mxu0
        %4539 = vmatprep.mubr.bf16.mxu0 %v4353
        %4540 = vmatmul.mubr.bf16.gmra.mrb[0].mxu0 %v4352
        %v4541 = vpop.f32.mrb[0].mxu0
        %v4542 = vadd.f32 0.0, %v4541
        %v4543 = vpop.f32.mrb[0].mxu0
        %v4544 = vpop.f32.mrb[0].mxu0
        %v4545 = vadd.f32 0.0, %v4544
        %v4546 = vpop.f32.mrb[0].mxu0
        %4547 = vdwg.mxu0
        %4548 = vmatprep.subr.bf16.mxu0 0
        %4549 = vmatpush1.bf16.msra.mxu0 %v4451
        %4550 = vmatprep.subr.bf16.mxu0 0
        %4551 = vmatpush1.bf16.msra.mxu0 %v4452
        %4552 = vmatprep.subr.bf16.mxu0 0
        %4553 = vmatpush1.bf16.msra.mxu0 0
        %4554 = vmatprep.subr.bf16.mxu0 0
        %4555 = vmatpush1.bf16.msra.mxu0 0
        %4556 = vmatprep.subr.bf16.mxu0 0
        %4557 = vmatpush1.bf16.msra.mxu0 0
        %4558 = vmatprep.subr.bf16.mxu0 0
        %4559 = vmatpush1.bf16.msra.mxu0 0
        %4560 = vmatprep.subr.bf16.mxu0 0
        %4561 = vmatpush1.bf16.msra.mxu0 0
        %4562 = vmatprep.subr.bf16.mxu0 0
        %4563 = vmatpush1.bf16.msra.mxu0 0
        %4564 = vmatprep.subr.bf16.mxu0 0
        %4565 = vmatpush1.bf16.msra.mxu0 0
        %4566 = vmatprep.subr.bf16.mxu0 0
        %4567 = vmatpush1.bf16.msra.mxu0 0
        %4568 = vmatprep.subr.bf16.mxu0 0
        %4569 = vmatpush1.bf16.msra.mxu0 0
        %4570 = vmatprep.subr.bf16.mxu0 0
        %4571 = vmatpush1.bf16.msra.mxu0 0
        %4572 = vmatprep.subr.bf16.mxu0 0
        %4573 = vmatpush1.bf16.msra.mxu0 0
        %4574 = vmatprep.subr.bf16.mxu0 0
        %4575 = vmatpush1.bf16.msra.mxu0 0
        %4576 = vmatprep.subr.bf16.mxu0 0
        %4577 = vmatpush1.bf16.msra.mxu0 0
        %4578 = vmatprep.subr.bf16.mxu0 0
        %4579 = vmatpush1.bf16.msra.mxu0 0
        %4580 = vmatprep.mubr.bf16.mxu0 0
        %4581 = vmatmul.mubr.bf16.gmra.mrb[0].mxu0 %v4472
        %v4582 = vpop.f32.mrb[0].mxu0
        %v4583 = vadd.f32 %v4518, %v4582
        %v4584 = vpop.f32.mrb[0].mxu0
        %v4585 = vpop.f32.mrb[0].mxu0
        %v4586 = vadd.f32 %v4521, %v4585
        %v4587 = vpop.f32.mrb[0].mxu0
        %4588 = vmatprep.mubr.bf16.mxu0 0
        %4589 = vmatmul.mubr.bf16.gmra.mrb[0].mxu0 %v4475
        %v4590 = vpop.f32.mrb[0].mxu0
        %v4591 = vadd.f32 %v4526, %v4590
        %v4592 = vpop.f32.mrb[0].mxu0
        %v4593 = vpop.f32.mrb[0].mxu0
        %v4594 = vadd.f32 %v4529, %v4593
        %v4595 = vpop.f32.mrb[0].mxu0
        %4596 = vmatprep.mubr.bf16.mxu0 0
        %4597 = vmatmul.mubr.bf16.gmra.mrb[0].mxu0 %v4478
        %v4598 = vpop.f32.mrb[0].mxu0
        %v4599 = vadd.f32 %v4534, %v4598
        %v4600 = vpop.f32.mrb[0].mxu0
        %v4601 = vpop.f32.mrb[0].mxu0
        %v4602 = vadd.f32 %v4537, %v4601
        %v4603 = vpop.f32.mrb[0].mxu0
        %4604 = vmatprep.mubr.bf16.mxu0 0
        %4605 = vmatmul.mubr.bf16.gmra.mrb[0].mxu0 %v4481
        %v4606 = vpop.f32.mrb[0].mxu0
        %v4607 = vadd.f32 %v4542, %v4606
        %v4608 = vpop.f32.mrb[0].mxu0
        %v4609 = vpop.f32.mrb[0].mxu0
        %v4610 = vadd.f32 %v4545, %v4609
        %v4611 = vpop.f32.mrb[0].mxu0
        %4612 = vdwg.mxu0
        %v4613 = vadd.f32 %v4186, %v4583
        %v4614 = vadd.f32 %v4187, %v4586
        %v4615 = vadd.f32 %v4188, %v4591
        %v4616 = vadd.f32 %v4189, %v4594
        %v4617 = vadd.f32 %v4190, %v4599
        %v4618 = vadd.f32 %v4191, %v4602
        %v4619 = vadd.f32 %v4192, %v4607
        %v4620 = vadd.f32 %v4193, %v4610
        %v4621 = vld [vmem:[%s2] sm:$0x1]
        %v4623 = vlaneseq
        %v4624 = vshrl.u32 %v4623, 7
        %v4625 = vsub.s32 0, %v4624
        %v4626 = vrot.slane %v4621, %v4625
        %v4628 = vmul.f32 %v4613, %v4626
        %v4629 = vmul.f32 %v4614, %v4626
        %v4630 = vmul.f32 %v4615, %v4626
        %v4631 = vmul.f32 %v4616, %v4626
        %v4632 = vmul.f32 %v4617, %v4626
        %v4633 = vmul.f32 %v4618, %v4626
        %v4634 = vmul.f32 %v4619, %v4626
        %v4635 = vmul.f32 %v4620, %v4626
        %v4636 = vld [vmem:[%s3] sm:$0x1]
        %v4638 = vlaneseq
        %v4639 = vshrl.u32 %v4638, 7
        %v4640 = vsub.s32 0, %v4639
        %v4641 = vrot.slane %v4636, %v4640
        %v4643 = vadd.f32 %v4628, %v4641
        %v4644 = vadd.f32 %v4629, %v4641
        %v4645 = vadd.f32 %v4630, %v4641
        %v4646 = vadd.f32 %v4631, %v4641
        %v4647 = vadd.f32 %v4632, %v4641
        %v4648 = vadd.f32 %v4633, %v4641
        %v4649 = vadd.f32 %v4634, %v4641
        %v4650 = vadd.f32 %v4635, %v4641
        %v4651 = vmax.f32 %v4643, 0.0
        %v4652 = vmax.f32 %v4644, 0.0
        %v4653 = vmax.f32 %v4645, 0.0
        %v4654 = vmax.f32 %v4646, 0.0
        %v4655 = vmax.f32 %v4647, 0.0
        %v4656 = vmax.f32 %v4648, 0.0
        %v4657 = vmax.f32 %v4649, 0.0
        %v4658 = vmax.f32 %v4650, 0.0
        %vm4659 = vcmask 1043456
        %vm4660 = vcmask 130052
        %vm4661 = vmor %vm4660, %vm4659
        %4662 = vst.msk [vmem:[#allocation3] sm:$0xff] %vm4661, 0
        %4663 = vst.msk [vmem:[#allocation3 + $0x8] sm:$0xff] %vm4661, 0
        %vm4664 = vcmask 1040384
        %vm4665 = vcmask 126980
        %vm4666 = vmor %vm4665, %vm4664
        %4667 = vst.msk [vmem:[#allocation3 + $0x10] sm:$0x11] %vm4666, 0
        %4668 = vst.msk [vmem:[#allocation3 + $0x18] sm:$0xff] %vm4661, 0
        %4669 = vst.msk [vmem:[#allocation3 + $0x20] sm:$0xff] %vm4661, 0
        %4670 = vst.msk [vmem:[#allocation3 + $0x28] sm:$0x11] %vm4666, 0
        %4671 = vst.msk [vmem:[#allocation3 + $0x30] sm:$0xff] %vm4661, 0
        %4672 = vst.msk [vmem:[#allocation3 + $0x38] sm:$0xff] %vm4661, 0
        %4673 = vst.msk [vmem:[#allocation3 + $0x40] sm:$0x11] %vm4666, 0
        %4674 = vst.msk [vmem:[#allocation3 + $0x48] sm:$0xff] %vm4661, 0
        %4675 = vst.msk [vmem:[#allocation3 + $0x50] sm:$0xff] %vm4661, 0
        %4676 = vst.msk [vmem:[#allocation3 + $0x58] sm:$0x11] %vm4666, 0
        %4677 = vst.msk [vmem:[#allocation3 + $0x60] sm:$0xff] %vm4661, 0
        %4678 = vst.msk [vmem:[#allocation3 + $0x68] sm:$0xff] %vm4661, 0
        %4679 = vst.msk [vmem:[#allocation3 + $0x70] sm:$0x11] %vm4666, 0
        %4680 = vst.msk [vmem:[#allocation3 + $0x78] sm:$0xff] %vm4661, 0
        %4681 = vst.msk [vmem:[#allocation3 + $0x80] sm:$0xff] %vm4661, 0
        %4682 = vst.msk [vmem:[#allocation3 + $0x88] sm:$0x11] %vm4666, 0
        %v4683 = vpack.c.bf16 %v4652, %v4651
        %v4684 = vpack.c.bf16 %v4654, %v4653
        %v4685 = vpack.c.bf16 %v4656, %v4655
        %v4686 = vpack.c.bf16 %v4658, %v4657
        %v4691 = vunpack.c.l.b16 %v4683
        %v4692 = vunpack.c.h.b16 %v4683
        %v4693 = vunpack.c.l.b16 %v4684
        %v4694 = vunpack.c.h.b16 %v4684
        %v4695 = vunpack.c.l.b16 %v4685
        %v4696 = vunpack.c.h.b16 %v4685
        %v4697 = vunpack.c.l.b16 %v4686
        %v4698 = vunpack.c.h.b16 %v4686
        %v4699 = vpack.c.b16 %v4691, %v4691
        %v4700 = vpack.c.b16 %v4692, %v4692
        %v4701 = vpack.c.b16 %v4693, %v4693
        %v4702 = vpack.c.b16 %v4694, %v4694
        %v4703 = vpack.c.b16 %v4695, %v4695
        %v4704 = vpack.c.b16 %v4696, %v4696
        %v4705 = vpack.c.b16 %v4697, %v4697
        %v4706 = vpack.c.b16 %v4698, %v4698
        %v4708 = vshrl.u32 %v4699, 16
        %v4710 = vrot.slane %v4708, 7
        %v4711 = vshll.u32 %v4699, 16
        %v4713 = vor.u32 %v4710, %v4711
        %v4714 = vrot.slane %v4710, 4
        %v4716 = vshrl.u32 %v4700, 16
        %v4718 = vrot.slane %v4716, 7
        %v4719 = vshll.u32 %v4700, 16
        %v4721 = vor.u32 %v4718, %v4719
        %v4722 = vsel %vm375, %v4714, %v4721
        %v4723 = vrot.slane %v4718, 4
        %v4725 = vshrl.u32 %v4701, 16
        %v4727 = vrot.slane %v4725, 7
        %v4728 = vshll.u32 %v4701, 16
        %v4730 = vor.u32 %v4727, %v4728
        %v4731 = vrot.slane %v4727, 4
        %v4733 = vshrl.u32 %v4702, 16
        %v4735 = vrot.slane %v4733, 7
        %v4736 = vshll.u32 %v4702, 16
        %v4738 = vor.u32 %v4735, %v4736
        %v4739 = vsel %vm375, %v4731, %v4738
        %v4740 = vrot.slane %v4735, 4
        %v4742 = vshrl.u32 %v4703, 16
        %v4744 = vrot.slane %v4742, 7
        %v4745 = vshll.u32 %v4703, 16
        %v4747 = vor.u32 %v4744, %v4745
        %v4748 = vrot.slane %v4744, 4
        %v4750 = vshrl.u32 %v4704, 16
        %v4752 = vrot.slane %v4750, 7
        %v4753 = vshll.u32 %v4704, 16
        %v4755 = vor.u32 %v4752, %v4753
        %v4756 = vsel %vm375, %v4748, %v4755
        %v4757 = vrot.slane %v4752, 4
        %v4759 = vshrl.u32 %v4705, 16
        %v4761 = vrot.slane %v4759, 7
        %v4762 = vshll.u32 %v4705, 16
        %v4764 = vor.u32 %v4761, %v4762
        %v4765 = vrot.slane %v4761, 4
        %v4767 = vshrl.u32 %v4706, 16
        %v4769 = vrot.slane %v4767, 7
        %v4770 = vshll.u32 %v4706, 16
        %v4772 = vor.u32 %v4769, %v4770
        %v4773 = vsel %vm375, %v4765, %v4772
        %v4774 = vrot.slane %v4769, 4
        %4775 = vrot.lane.b32.xlu0 %v4713, 8
        %v4776 = vpop.permute.xlu0 %4775
        %4777 = vrot.lane.b32.xlu0 %v4722, 8
        %v4778 = vpop.permute.xlu0 %4777
        %4779 = vrot.lane.b32.xlu0 %v4723, 8
        %v4780 = vpop.permute.xlu0 %4779
        %4781 = vrot.lane.b32.xlu0 %v4730, 8
        %v4782 = vpop.permute.xlu0 %4781
        %4783 = vrot.lane.b32.xlu0 %v4739, 8
        %v4784 = vpop.permute.xlu0 %4783
        %4785 = vrot.lane.b32.xlu0 %v4740, 8
        %v4786 = vpop.permute.xlu0 %4785
        %4787 = vrot.lane.b32.xlu0 %v4747, 8
        %v4788 = vpop.permute.xlu0 %4787
        %4789 = vrot.lane.b32.xlu0 %v4756, 8
        %v4790 = vpop.permute.xlu0 %4789
        %4791 = vrot.lane.b32.xlu0 %v4757, 8
        %v4792 = vpop.permute.xlu0 %4791
        %4793 = vrot.lane.b32.xlu0 %v4764, 8
        %v4794 = vpop.permute.xlu0 %4793
        %4795 = vrot.lane.b32.xlu0 %v4773, 8
        %v4796 = vpop.permute.xlu0 %4795
        %4797 = vrot.lane.b32.xlu0 %v4774, 8
        %v4798 = vpop.permute.xlu0 %4797
        %v4799 = vrot.slane %v4776, 4
        %v4800 = vrot.slane %v4778, 4
        %v4801 = vrot.slane %v4780, 4
        %v4802 = vrot.slane %v4782, 4
        %v4803 = vrot.slane %v4784, 4
        %v4804 = vrot.slane %v4786, 4
        %v4805 = vrot.slane %v4788, 4
        %v4806 = vrot.slane %v4790, 4
        %v4807 = vrot.slane %v4792, 4
        %v4808 = vrot.slane %v4794, 4
        %v4809 = vrot.slane %v4796, 4
        %v4810 = vrot.slane %v4798, 4
        %vm4811 = vcmask 64512
        %v4812 = vsel %vm4811, %v4799, %v4776
        %v4813 = vsel %vm4811, %v4800, %v4778
        %v4814 = vsel %vm4811, %v4801, %v4780
        %v4815 = vsel %vm4811, %v4802, %v4782
        %v4816 = vsel %vm4811, %v4803, %v4784
        %v4817 = vsel %vm4811, %v4804, %v4786
        %v4818 = vsel %vm4811, %v4805, %v4788
        %v4819 = vsel %vm4811, %v4806, %v4790
        %v4820 = vsel %vm4811, %v4807, %v4792
        %v4821 = vsel %vm4811, %v4808, %v4794
        %v4822 = vsel %vm4811, %v4809, %v4796
        %v4823 = vsel %vm4811, %v4810, %v4798
        %s4836 = scalar_lea.vmem [#allocation3], 24
        %vm4837 = vcmask 1043520
        %vm4838 = vmand %vm4837, %vm519
        %vm4839 = vcmask 64516
        %vm4840 = vmand %vm4839, %vm522
        %vm4841 = vmor %vm4840, %vm4838
        %v4842 = vld [vmem:[%s4836] sm:$0xff]
        %v4843 = vsel %vm4841, %v4812, %v4842
        %4844 = vst [vmem:[%s4836] sm:$0xff] %v4843
        %vm4845 = vcmask 1043520
        %vm4846 = vcmask 64516
        %vm4847 = vmor %vm4846, %vm4845
        %4848 = vst.msk [vmem:[%s4836 + $0x8] sm:$0xff] %vm4847, %v4813
        %vm4849 = vcmask 1040448
        %vm4850 = vmand %vm4849, %vm373
        %vm4851 = vcmask 61444
        %vm4852 = vmand %vm4851, %vm542
        %vm4853 = vmor %vm4852, %vm4850
        %v4854 = vld [vmem:[%s4836 + $0x10] sm:$0x11]
        %v4855 = vsel %vm4853, %v4814, %v4854
        %4856 = vst [vmem:[%s4836 + $0x10] sm:$0x11] %v4855
        %v4857 = vld [vmem:[%s4836 + $0x18] sm:$0xff]
        %v4858 = vsel %vm4841, %v4815, %v4857
        %4859 = vst [vmem:[%s4836 + $0x18] sm:$0xff] %v4858
        %4860 = vst.msk [vmem:[%s4836 + $0x20] sm:$0xff] %vm4847, %v4816
        %v4861 = vld [vmem:[%s4836 + $0x28] sm:$0x11]
        %v4862 = vsel %vm4853, %v4817, %v4861
        %4863 = vst [vmem:[%s4836 + $0x28] sm:$0x11] %v4862
        %v4864 = vld [vmem:[%s4836 + $0x30] sm:$0xff]
        %v4865 = vsel %vm4841, %v4818, %v4864
        %4866 = vst [vmem:[%s4836 + $0x30] sm:$0xff] %v4865
        %4867 = vst.msk [vmem:[%s4836 + $0x38] sm:$0xff] %vm4847, %v4819
        %v4868 = vld [vmem:[%s4836 + $0x40] sm:$0x11]
        %v4869 = vsel %vm4853, %v4820, %v4868
        %4870 = vst [vmem:[%s4836 + $0x40] sm:$0x11] %v4869
        %v4871 = vld [vmem:[%s4836 + $0x48] sm:$0xff]
        %v4872 = vsel %vm4841, %v4821, %v4871
        %4873 = vst [vmem:[%s4836 + $0x48] sm:$0xff] %v4872
        %4874 = vst.msk [vmem:[%s4836 + $0x50] sm:$0xff] %vm4847, %v4822
        %v4875 = vld [vmem:[%s4836 + $0x58] sm:$0x11]
        %v4876 = vsel %vm4853, %v4823, %v4875
        %4877 = vst [vmem:[%s4836 + $0x58] sm:$0x11] %v4876
        %v4878 = vld [vmem:[#allocation3] sm:$0xff]
        %v4879 = vld [vmem:[#allocation3 + $0x8] sm:$0xff]
        %v4880 = vld [vmem:[#allocation3 + $0x18] sm:$0xff]
        %v4881 = vld [vmem:[#allocation3 + $0x20] sm:$0xff]
        %v4882 = vld [vmem:[#allocation3 + $0x30] sm:$0xff]
        %v4883 = vld [vmem:[#allocation3 + $0x38] sm:$0xff]
        %v4884 = vld [vmem:[#allocation3 + $0x48] sm:$0xff]
        %v4885 = vld [vmem:[#allocation3 + $0x50] sm:$0xff]
        %v4886 = vld [vmem:[#allocation9] sm:$0xf]
        %v4887 = vld [vmem:[#allocation9 + $0x4] sm:$0xf]
        %v4888 = vld [vmem:[#allocation9 + $0x8] sm:$0xf]
        %v4889 = vld [vmem:[#allocation9 + $0xc] sm:$0xf]
        %v4890 = vld [vmem:[#allocation9 + $0x10] sm:$0xf]
        %v4891 = vld [vmem:[#allocation9 + $0x14] sm:$0xf]
        %v4892 = vld [vmem:[#allocation9 + $0x18] sm:$0xf]
        %v4893 = vld [vmem:[#allocation9 + $0x1c] sm:$0xf]
        %v4894 = vld [vmem:[#allocation9 + $0x20] sm:$0xf]
        %v4895 = vld [vmem:[#allocation9 + $0x24] sm:$0xf]
        %v4896 = vld [vmem:[#allocation9 + $0x28] sm:$0xf]
        %v4897 = vld [vmem:[#allocation9 + $0x2c] sm:$0xf]
        %v4898 = vld [vmem:[#allocation9 + $0x30] sm:$0xf]
        %v4899 = vld [vmem:[#allocation9 + $0x34] sm:$0xf]
        %v4900 = vld [vmem:[#allocation9 + $0x38] sm:$0xf]
        %v4901 = vld [vmem:[#allocation9 + $0x3c] sm:$0xf]
        %v4902 = vld [vmem:[#allocation9 + $0x40] sm:$0xf]
        %v4903 = vld [vmem:[#allocation9 + $0x44] sm:$0xf]
        %v4904 = vld [vmem:[#allocation3 + $0x10] sm:$0x11]
        %v4905 = vld [vmem:[#allocation3 + $0x28] sm:$0x11]
        %v4906 = vld [vmem:[#allocation3 + $0x40] sm:$0x11]
        %v4907 = vld [vmem:[#allocation3 + $0x58] sm:$0x11]
        %v4909 = vshrl.u32 %v4878, 16
        %v4911 = vrot.slane %v4909, 4
        %v4912 = vshll.u32 %v4878, 16
        %v4914 = vrot.slane %v4912, 5
        %v4915 = vor.u32 %v4911, %v4914
        %v4916 = vrot.slane %v4915, 4
        %v4918 = vshll.u32 %v4879, 16
        %v4920 = vrot.slane %v4918, 5
        %v4921 = vsel %vm657, %v4916, %v4920
        %v4922 = vshrl.u32 %v4879, 16
        %v4924 = vrot.slane %v4922, 4
        %v4925 = vor.u32 %v4924, %v4920
        %v4926 = vrot.slane %v4925, 4
        %v4928 = vshll.u32 %v4904, 16
        %v4930 = vrot.slane %v4928, 5
        %v4931 = vsel %vm657, %v4926, %v4930
        %v4933 = vshrl.u32 %v4880, 16
        %v4935 = vrot.slane %v4933, 4
        %v4936 = vshll.u32 %v4880, 16
        %v4938 = vrot.slane %v4936, 5
        %v4939 = vor.u32 %v4935, %v4938
        %v4940 = vrot.slane %v4939, 4
        %v4942 = vshll.u32 %v4881, 16
        %v4944 = vrot.slane %v4942, 5
        %v4945 = vsel %vm657, %v4940, %v4944
        %v4946 = vshrl.u32 %v4881, 16
        %v4948 = vrot.slane %v4946, 4
        %v4949 = vor.u32 %v4948, %v4944
        %v4950 = vrot.slane %v4949, 4
        %v4952 = vshll.u32 %v4905, 16
        %v4954 = vrot.slane %v4952, 5
        %v4955 = vsel %vm657, %v4950, %v4954
        %v4957 = vshrl.u32 %v4882, 16
        %v4959 = vrot.slane %v4957, 4
        %v4960 = vshll.u32 %v4882, 16
        %v4962 = vrot.slane %v4960, 5
        %v4963 = vor.u32 %v4959, %v4962
        %v4964 = vrot.slane %v4963, 4
        %v4966 = vshll.u32 %v4883, 16
        %v4968 = vrot.slane %v4966, 5
        %v4969 = vsel %vm657, %v4964, %v4968
        %v4970 = vshrl.u32 %v4883, 16
        %v4972 = vrot.slane %v4970, 4
        %v4973 = vor.u32 %v4972, %v4968
        %v4974 = vrot.slane %v4973, 4
        %v4976 = vshll.u32 %v4906, 16
        %v4978 = vrot.slane %v4976, 5
        %v4979 = vsel %vm657, %v4974, %v4978
        %v4981 = vshrl.u32 %v4884, 16
        %v4983 = vrot.slane %v4981, 4
        %v4984 = vshll.u32 %v4884, 16
        %v4986 = vrot.slane %v4984, 5
        %v4987 = vor.u32 %v4983, %v4986
        %v4988 = vrot.slane %v4987, 4
        %v4990 = vshll.u32 %v4885, 16
        %v4992 = vrot.slane %v4990, 5
        %v4993 = vsel %vm657, %v4988, %v4992
        %v4994 = vshrl.u32 %v4885, 16
        %v4996 = vrot.slane %v4994, 4
        %v4997 = vor.u32 %v4996, %v4992
        %v4998 = vrot.slane %v4997, 4
        %v5000 = vshll.u32 %v4907, 16
        %v5002 = vrot.slane %v5000, 5
        %v5003 = vsel %vm657, %v4998, %v5002
        %s5004 = scalar_lea.vmem [#allocation9], 72
        %v5005 = vld [vmem:[%s5004] sm:$0xf]
        %v5006 = vld [vmem:[%s5004 + $0x4] sm:$0xf]
        %v5007 = vld [vmem:[%s5004 + $0x8] sm:$0xf]
        %v5008 = vld [vmem:[%s5004 + $0xc] sm:$0xf]
        %v5009 = vld [vmem:[%s5004 + $0x10] sm:$0xf]
        %v5010 = vld [vmem:[%s5004 + $0x14] sm:$0xf]
        %v5011 = vld [vmem:[%s5004 + $0x18] sm:$0xf]
        %v5012 = vld [vmem:[%s5004 + $0x1c] sm:$0xf]
        %v5013 = vld [vmem:[%s5004 + $0x20] sm:$0xf]
        %v5014 = vld [vmem:[%s5004 + $0x24] sm:$0xf]
        %v5015 = vld [vmem:[%s5004 + $0x28] sm:$0xf]
        %v5016 = vld [vmem:[%s5004 + $0x2c] sm:$0xf]
        %v5017 = vld [vmem:[%s5004 + $0x30] sm:$0xf]
        %v5018 = vld [vmem:[%s5004 + $0x34] sm:$0xf]
        %v5019 = vld [vmem:[%s5004 + $0x38] sm:$0xf]
        %v5020 = vld [vmem:[%s5004 + $0x3c] sm:$0xf]
        %v5021 = vld [vmem:[%s5004 + $0x40] sm:$0xf]
        %v5022 = vld [vmem:[%s5004 + $0x44] sm:$0xf]
        %v5023 = vunpack.c.l.b16 %v4921
        %v5024 = vunpack.c.h.b16 %v4921
        %v5025 = vunpack.c.l.b16 %v4931
        %v5026 = vunpack.c.h.b16 %v4931
        %v5027 = vunpack.c.l.b16 %v4945
        %v5028 = vunpack.c.h.b16 %v4945
        %v5029 = vunpack.c.l.b16 %v4955
        %v5030 = vunpack.c.h.b16 %v4955
        %v5031 = vunpack.c.l.b16 %v4969
        %v5032 = vunpack.c.h.b16 %v4969
        %v5033 = vunpack.c.l.b16 %v4979
        %v5034 = vunpack.c.h.b16 %v4979
        %v5035 = vunpack.c.l.b16 %v4993
        %v5036 = vunpack.c.h.b16 %v4993
        %v5037 = vunpack.c.l.b16 %v5003
        %v5038 = vunpack.c.h.b16 %v5003
        %v5039 = vpack.c.b16 %v5025, %v5023
        %v5040 = vpack.c.b16 %v5026, %v5024
        %v5041 = vpack.c.b16 %v5029, %v5027
        %v5042 = vpack.c.b16 %v5030, %v5028
        %v5043 = vpack.c.b16 %v5033, %v5031
        %v5044 = vpack.c.b16 %v5034, %v5032
        %v5045 = vpack.c.b16 %v5037, %v5035
        %v5046 = vpack.c.b16 %v5038, %v5036
        %v5069 = vunpack.c.l.b16 %v5005
        %v5070 = vunpack.c.l.b16 %v5006
        %v5071 = vunpack.c.l.b16 %v5007
        %v5072 = vunpack.c.l.b16 %v5008
        %v5073 = vunpack.c.l.b16 %v5009
        %v5074 = vunpack.c.l.b16 %v5010
        %v5075 = vunpack.c.l.b16 %v5011
        %v5076 = vunpack.c.l.b16 %v5012
        %v5077 = vunpack.c.l.b16 %v5013
        %v5078 = vunpack.c.l.b16 %v5014
        %v5079 = vunpack.c.l.b16 %v5015
        %v5080 = vunpack.c.l.b16 %v5016
        %v5081 = vunpack.c.l.b16 %v5017
        %v5082 = vunpack.c.l.b16 %v5018
        %v5083 = vunpack.c.l.b16 %v5019
        %v5084 = vunpack.c.l.b16 %v5020
        %v5085 = vunpack.c.l.b16 %v5021
        %v5086 = vunpack.c.l.b16 %v5022
        %v5087 = vpack.c.b16 %v5070, %v5069
        %v5088 = vpack.c.b16 %v5072, %v5071
        %v5089 = vpack.c.b16 %v5074, %v5073
        %v5090 = vpack.c.b16 %v5076, %v5075
        %v5091 = vpack.c.b16 %v5078, %v5077
        %v5092 = vpack.c.b16 %v5080, %v5079
        %v5093 = vpack.c.b16 %v5082, %v5081
        %v5094 = vpack.c.b16 %v5084, %v5083
        %v5095 = vpack.c.b16 %v5086, %v5085
        %vm5105 = vcmask 130048
        %v5107 = vsel %vm5105, %v5040, 0
        %v5110 = vsel %vm5105, %v5042, 0
        %v5113 = vsel %vm5105, %v5044, 0
        %v5116 = vsel %vm5105, %v5046, 0
        %5118 = vmatprep.subr.bf16.mxu0 0
        %5119 = vmatpush1.bf16.msra.mxu0 %v5087
        %5120 = vmatprep.subr.bf16.mxu0 0
        %5121 = vmatpush1.bf16.msra.mxu0 %v5088
        %5122 = vmatprep.subr.bf16.mxu0 0
        %5123 = vmatpush1.bf16.msra.mxu0 %v5089
        %5124 = vmatprep.subr.bf16.mxu0 0
        %5125 = vmatpush1.bf16.msra.mxu0 %v5090
        %5126 = vmatprep.subr.bf16.mxu0 0
        %5127 = vmatpush1.bf16.msra.mxu0 %v5091
        %5128 = vmatprep.subr.bf16.mxu0 0
        %5129 = vmatpush1.bf16.msra.mxu0 %v5092
        %5130 = vmatprep.subr.bf16.mxu0 0
        %5131 = vmatpush1.bf16.msra.mxu0 %v5093
        %5132 = vmatprep.subr.bf16.mxu0 0
        %5133 = vmatpush1.bf16.msra.mxu0 %v5094
        %5134 = vmatprep.subr.bf16.mxu0 0
        %5135 = vmatpush1.bf16.msra.mxu0 %v5095
        %5136 = vmatprep.subr.bf16.mxu0 0
        %5137 = vmatpush1.bf16.msra.mxu0 0
        %5138 = vmatprep.subr.bf16.mxu0 0
        %5139 = vmatpush1.bf16.msra.mxu0 0
        %5140 = vmatprep.subr.bf16.mxu0 0
        %5141 = vmatpush1.bf16.msra.mxu0 0
        %5142 = vmatprep.subr.bf16.mxu0 0
        %5143 = vmatpush1.bf16.msra.mxu0 0
        %5144 = vmatprep.subr.bf16.mxu0 0
        %5145 = vmatpush1.bf16.msra.mxu0 0
        %5146 = vmatprep.subr.bf16.mxu0 0
        %5147 = vmatpush1.bf16.msra.mxu0 0
        %5148 = vmatprep.subr.bf16.mxu0 0
        %5149 = vmatpush1.bf16.msra.mxu0 0
        %5150 = vmatprep.mubr.bf16.mxu0 %v5107
        %5151 = vmatmul.mubr.bf16.gmra.mrb[0].mxu0 %v5039
        %v5152 = vpop.f32.mrb[0].mxu0
        %v5153 = vadd.f32 0.0, %v5152
        %v5154 = vpop.f32.mrb[0].mxu0
        %v5155 = vpop.f32.mrb[0].mxu0
        %v5156 = vadd.f32 0.0, %v5155
        %v5157 = vpop.f32.mrb[0].mxu0
        %5158 = vmatprep.mubr.bf16.mxu0 %v5110
        %5159 = vmatmul.mubr.bf16.gmra.mrb[0].mxu0 %v5041
        %v5160 = vpop.f32.mrb[0].mxu0
        %v5161 = vadd.f32 0.0, %v5160
        %v5162 = vpop.f32.mrb[0].mxu0
        %v5163 = vpop.f32.mrb[0].mxu0
        %v5164 = vadd.f32 0.0, %v5163
        %v5165 = vpop.f32.mrb[0].mxu0
        %5166 = vmatprep.mubr.bf16.mxu0 %v5113
        %5167 = vmatmul.mubr.bf16.gmra.mrb[0].mxu0 %v5043
        %v5168 = vpop.f32.mrb[0].mxu0
        %v5169 = vadd.f32 0.0, %v5168
        %v5170 = vpop.f32.mrb[0].mxu0
        %v5171 = vpop.f32.mrb[0].mxu0
        %v5172 = vadd.f32 0.0, %v5171
        %v5173 = vpop.f32.mrb[0].mxu0
        %5174 = vmatprep.mubr.bf16.mxu0 %v5116
        %5175 = vmatmul.mubr.bf16.gmra.mrb[0].mxu0 %v5045
        %v5176 = vpop.f32.mrb[0].mxu0
        %v5177 = vadd.f32 0.0, %v5176
        %v5178 = vpop.f32.mrb[0].mxu0
        %v5179 = vpop.f32.mrb[0].mxu0
        %v5180 = vadd.f32 0.0, %v5179
        %v5181 = vpop.f32.mrb[0].mxu0
        %5182 = vdwg.mxu0
        %v5191 = vunpack.c.l.b16 %v4878
        %v5192 = vunpack.c.h.b16 %v4878
        %v5193 = vunpack.c.l.b16 %v4879
        %v5194 = vunpack.c.h.b16 %v4879
        %v5195 = vunpack.c.l.b16 %v4880
        %v5196 = vunpack.c.h.b16 %v4880
        %v5197 = vunpack.c.l.b16 %v4881
        %v5198 = vunpack.c.h.b16 %v4881
        %v5199 = vunpack.c.l.b16 %v4882
        %v5200 = vunpack.c.h.b16 %v4882
        %v5201 = vunpack.c.l.b16 %v4883
        %v5202 = vunpack.c.h.b16 %v4883
        %v5203 = vunpack.c.l.b16 %v4884
        %v5204 = vunpack.c.h.b16 %v4884
        %v5205 = vunpack.c.l.b16 %v4885
        %v5206 = vunpack.c.h.b16 %v4885
        %v5207 = vpack.c.b16 %v5193, %v5191
        %v5208 = vpack.c.b16 %v5194, %v5192
        %v5209 = vpack.c.b16 %v5197, %v5195
        %v5210 = vpack.c.b16 %v5198, %v5196
        %v5211 = vpack.c.b16 %v5201, %v5199
        %v5212 = vpack.c.b16 %v5202, %v5200
        %v5213 = vpack.c.b16 %v5205, %v5203
        %v5214 = vpack.c.b16 %v5206, %v5204
        %v5237 = vunpack.c.l.b16 %v4886
        %v5238 = vunpack.c.l.b16 %v4887
        %v5239 = vunpack.c.l.b16 %v4888
        %v5240 = vunpack.c.l.b16 %v4889
        %v5241 = vunpack.c.l.b16 %v4890
        %v5242 = vunpack.c.l.b16 %v4891
        %v5243 = vunpack.c.l.b16 %v4892
        %v5244 = vunpack.c.l.b16 %v4893
        %v5245 = vunpack.c.l.b16 %v4894
        %v5246 = vunpack.c.l.b16 %v4895
        %v5247 = vunpack.c.l.b16 %v4896
        %v5248 = vunpack.c.l.b16 %v4897
        %v5249 = vunpack.c.l.b16 %v4898
        %v5250 = vunpack.c.l.b16 %v4899
        %v5251 = vunpack.c.l.b16 %v4900
        %v5252 = vunpack.c.l.b16 %v4901
        %v5253 = vunpack.c.l.b16 %v4902
        %v5254 = vunpack.c.l.b16 %v4903
        %v5255 = vpack.c.b16 %v5238, %v5237
        %v5256 = vpack.c.b16 %v5240, %v5239
        %v5257 = vpack.c.b16 %v5242, %v5241
        %v5258 = vpack.c.b16 %v5244, %v5243
        %v5259 = vpack.c.b16 %v5246, %v5245
        %v5260 = vpack.c.b16 %v5248, %v5247
        %v5261 = vpack.c.b16 %v5250, %v5249
        %v5262 = vpack.c.b16 %v5252, %v5251
        %v5263 = vpack.c.b16 %v5254, %v5253
        %v5274 = vsel %vm5105, %v5208, 0
        %v5277 = vsel %vm5105, %v5210, 0
        %v5280 = vsel %vm5105, %v5212, 0
        %v5283 = vsel %vm5105, %v5214, 0
        %5285 = vmatprep.subr.bf16.mxu0 0
        %5286 = vmatpush1.bf16.msra.mxu0 %v5255
        %5287 = vmatprep.subr.bf16.mxu0 0
        %5288 = vmatpush1.bf16.msra.mxu0 %v5256
        %5289 = vmatprep.subr.bf16.mxu0 0
        %5290 = vmatpush1.bf16.msra.mxu0 %v5257
        %5291 = vmatprep.subr.bf16.mxu0 0
        %5292 = vmatpush1.bf16.msra.mxu0 %v5258
        %5293 = vmatprep.subr.bf16.mxu0 0
        %5294 = vmatpush1.bf16.msra.mxu0 %v5259
        %5295 = vmatprep.subr.bf16.mxu0 0
        %5296 = vmatpush1.bf16.msra.mxu0 %v5260
        %5297 = vmatprep.subr.bf16.mxu0 0
        %5298 = vmatpush1.bf16.msra.mxu0 %v5261
        %5299 = vmatprep.subr.bf16.mxu0 0
        %5300 = vmatpush1.bf16.msra.mxu0 %v5262
        %5301 = vmatprep.subr.bf16.mxu0 0
        %5302 = vmatpush1.bf16.msra.mxu0 %v5263
        %5303 = vmatprep.subr.bf16.mxu0 0
        %5304 = vmatpush1.bf16.msra.mxu0 0
        %5305 = vmatprep.subr.bf16.mxu0 0
        %5306 = vmatpush1.bf16.msra.mxu0 0
        %5307 = vmatprep.subr.bf16.mxu0 0
        %5308 = vmatpush1.bf16.msra.mxu0 0
        %5309 = vmatprep.subr.bf16.mxu0 0
        %5310 = vmatpush1.bf16.msra.mxu0 0
        %5311 = vmatprep.subr.bf16.mxu0 0
        %5312 = vmatpush1.bf16.msra.mxu0 0
        %5313 = vmatprep.subr.bf16.mxu0 0
        %5314 = vmatpush1.bf16.msra.mxu0 0
        %5315 = vmatprep.subr.bf16.mxu0 0
        %5316 = vmatpush1.bf16.msra.mxu0 0
        %5317 = vmatprep.mubr.bf16.mxu0 %v5274
        %5318 = vmatmul.mubr.bf16.gmra.mrb[0].mxu0 %v5207
        %v5319 = vpop.f32.mrb[0].mxu0
        %v5320 = vadd.f32 %v5153, %v5319
        %v5321 = vpop.f32.mrb[0].mxu0
        %v5322 = vpop.f32.mrb[0].mxu0
        %v5323 = vadd.f32 %v5156, %v5322
        %v5324 = vpop.f32.mrb[0].mxu0
        %5325 = vmatprep.mubr.bf16.mxu0 %v5277
        %5326 = vmatmul.mubr.bf16.gmra.mrb[0].mxu0 %v5209
        %v5327 = vpop.f32.mrb[0].mxu0
        %v5328 = vadd.f32 %v5161, %v5327
        %v5329 = vpop.f32.mrb[0].mxu0
        %v5330 = vpop.f32.mrb[0].mxu0
        %v5331 = vadd.f32 %v5164, %v5330
        %v5332 = vpop.f32.mrb[0].mxu0
        %5333 = vmatprep.mubr.bf16.mxu0 %v5280
        %5334 = vmatmul.mubr.bf16.gmra.mrb[0].mxu0 %v5211
        %v5335 = vpop.f32.mrb[0].mxu0
        %v5336 = vadd.f32 %v5169, %v5335
        %v5337 = vpop.f32.mrb[0].mxu0
        %v5338 = vpop.f32.mrb[0].mxu0
        %v5339 = vadd.f32 %v5172, %v5338
        %v5340 = vpop.f32.mrb[0].mxu0
        %5341 = vmatprep.mubr.bf16.mxu0 %v5283
        %5342 = vmatmul.mubr.bf16.gmra.mrb[0].mxu0 %v5213
        %v5343 = vpop.f32.mrb[0].mxu0
        %v5344 = vadd.f32 %v5177, %v5343
        %v5345 = vpop.f32.mrb[0].mxu0
        %v5346 = vpop.f32.mrb[0].mxu0
        %v5347 = vadd.f32 %v5180, %v5346
        %v5348 = vpop.f32.mrb[0].mxu0
        %5349 = vdwg.mxu0
        %v5350 = vld [vmem:[#allocation3] sm:$0xee]
        %v5351 = vld [vmem:[#allocation3 + $0x18] sm:$0xee]
        %v5352 = vld [vmem:[#allocation3 + $0x30] sm:$0xee]
        %v5353 = vld [vmem:[#allocation3 + $0x48] sm:$0xee]
        %v5362 = vrot.slane %v5350, 5
        %v5363 = vrot.slane %v5362, 4
        %v5364 = vrot.slane %v4879, 5
        %v5365 = vsel %vm1518, %v5363, %v5364
        %v5366 = vrot.slane %v5364, 4
        %v5367 = vrot.slane %v4904, 5
        %v5368 = vsel %vm1518, %v5366, %v5367
        %v5369 = vrot.slane %v5351, 5
        %v5370 = vrot.slane %v5369, 4
        %v5371 = vrot.slane %v4881, 5
        %v5372 = vsel %vm1518, %v5370, %v5371
        %v5373 = vrot.slane %v5371, 4
        %v5374 = vrot.slane %v4905, 5
        %v5375 = vsel %vm1518, %v5373, %v5374
        %v5376 = vrot.slane %v5352, 5
        %v5377 = vrot.slane %v5376, 4
        %v5378 = vrot.slane %v4883, 5
        %v5379 = vsel %vm1518, %v5377, %v5378
        %v5380 = vrot.slane %v5378, 4
        %v5381 = vrot.slane %v4906, 5
        %v5382 = vsel %vm1518, %v5380, %v5381
        %v5383 = vrot.slane %v5353, 5
        %v5384 = vrot.slane %v5383, 4
        %v5385 = vrot.slane %v4885, 5
        %v5386 = vsel %vm1518, %v5384, %v5385
        %v5387 = vrot.slane %v5385, 4
        %v5388 = vrot.slane %v4907, 5
        %v5389 = vsel %vm1518, %v5387, %v5388
        %s5390 = scalar_lea.vmem [#allocation9], 144
        %v5391 = vld [vmem:[%s5390] sm:$0xf]
        %v5392 = vld [vmem:[%s5390 + $0x4] sm:$0xf]
        %v5393 = vld [vmem:[%s5390 + $0x8] sm:$0xf]
        %v5394 = vld [vmem:[%s5390 + $0xc] sm:$0xf]
        %v5395 = vld [vmem:[%s5390 + $0x10] sm:$0xf]
        %v5396 = vld [vmem:[%s5390 + $0x14] sm:$0xf]
        %v5397 = vld [vmem:[%s5390 + $0x18] sm:$0xf]
        %v5398 = vld [vmem:[%s5390 + $0x1c] sm:$0xf]
        %v5399 = vld [vmem:[%s5390 + $0x20] sm:$0xf]
        %v5400 = vld [vmem:[%s5390 + $0x24] sm:$0xf]
        %v5401 = vld [vmem:[%s5390 + $0x28] sm:$0xf]
        %v5402 = vld [vmem:[%s5390 + $0x2c] sm:$0xf]
        %v5403 = vld [vmem:[%s5390 + $0x30] sm:$0xf]
        %v5404 = vld [vmem:[%s5390 + $0x34] sm:$0xf]
        %v5405 = vld [vmem:[%s5390 + $0x38] sm:$0xf]
        %v5406 = vld [vmem:[%s5390 + $0x3c] sm:$0xf]
        %v5407 = vld [vmem:[%s5390 + $0x40] sm:$0xf]
        %v5408 = vld [vmem:[%s5390 + $0x44] sm:$0xf]
        %v5409 = vunpack.c.l.b16 %v5365
        %v5410 = vunpack.c.h.b16 %v5365
        %v5411 = vunpack.c.l.b16 %v5368
        %v5412 = vunpack.c.h.b16 %v5368
        %v5413 = vunpack.c.l.b16 %v5372
        %v5414 = vunpack.c.h.b16 %v5372
        %v5415 = vunpack.c.l.b16 %v5375
        %v5416 = vunpack.c.h.b16 %v5375
        %v5417 = vunpack.c.l.b16 %v5379
        %v5418 = vunpack.c.h.b16 %v5379
        %v5419 = vunpack.c.l.b16 %v5382
        %v5420 = vunpack.c.h.b16 %v5382
        %v5421 = vunpack.c.l.b16 %v5386
        %v5422 = vunpack.c.h.b16 %v5386
        %v5423 = vunpack.c.l.b16 %v5389
        %v5424 = vunpack.c.h.b16 %v5389
        %v5425 = vpack.c.b16 %v5411, %v5409
        %v5426 = vpack.c.b16 %v5412, %v5410
        %v5427 = vpack.c.b16 %v5415, %v5413
        %v5428 = vpack.c.b16 %v5416, %v5414
        %v5429 = vpack.c.b16 %v5419, %v5417
        %v5430 = vpack.c.b16 %v5420, %v5418
        %v5431 = vpack.c.b16 %v5423, %v5421
        %v5432 = vpack.c.b16 %v5424, %v5422
        %v5455 = vunpack.c.l.b16 %v5391
        %v5456 = vunpack.c.l.b16 %v5392
        %v5457 = vunpack.c.l.b16 %v5393
        %v5458 = vunpack.c.l.b16 %v5394
        %v5459 = vunpack.c.l.b16 %v5395
        %v5460 = vunpack.c.l.b16 %v5396
        %v5461 = vunpack.c.l.b16 %v5397
        %v5462 = vunpack.c.l.b16 %v5398
        %v5463 = vunpack.c.l.b16 %v5399
        %v5464 = vunpack.c.l.b16 %v5400
        %v5465 = vunpack.c.l.b16 %v5401
        %v5466 = vunpack.c.l.b16 %v5402
        %v5467 = vunpack.c.l.b16 %v5403
        %v5468 = vunpack.c.l.b16 %v5404
        %v5469 = vunpack.c.l.b16 %v5405
        %v5470 = vunpack.c.l.b16 %v5406
        %v5471 = vunpack.c.l.b16 %v5407
        %v5472 = vunpack.c.l.b16 %v5408
        %v5473 = vpack.c.b16 %v5456, %v5455
        %v5474 = vpack.c.b16 %v5458, %v5457
        %v5475 = vpack.c.b16 %v5460, %v5459
        %v5476 = vpack.c.b16 %v5462, %v5461
        %v5477 = vpack.c.b16 %v5464, %v5463
        %v5478 = vpack.c.b16 %v5466, %v5465
        %v5479 = vpack.c.b16 %v5468, %v5467
        %v5480 = vpack.c.b16 %v5470, %v5469
        %v5481 = vpack.c.b16 %v5472, %v5471
        %v5492 = vsel %vm5105, %v5426, 0
        %v5495 = vsel %vm5105, %v5428, 0
        %v5498 = vsel %vm5105, %v5430, 0
        %v5501 = vsel %vm5105, %v5432, 0
        %5503 = vmatprep.subr.bf16.mxu0 0
        %5504 = vmatpush1.bf16.msra.mxu0 %v5473
        %5505 = vmatprep.subr.bf16.mxu0 0
        %5506 = vmatpush1.bf16.msra.mxu0 %v5474
        %5507 = vmatprep.subr.bf16.mxu0 0
        %5508 = vmatpush1.bf16.msra.mxu0 %v5475
        %5509 = vmatprep.subr.bf16.mxu0 0
        %5510 = vmatpush1.bf16.msra.mxu0 %v5476
        %5511 = vmatprep.subr.bf16.mxu0 0
        %5512 = vmatpush1.bf16.msra.mxu0 %v5477
        %5513 = vmatprep.subr.bf16.mxu0 0
        %5514 = vmatpush1.bf16.msra.mxu0 %v5478
        %5515 = vmatprep.subr.bf16.mxu0 0
        %5516 = vmatpush1.bf16.msra.mxu0 %v5479
        %5517 = vmatprep.subr.bf16.mxu0 0
        %5518 = vmatpush1.bf16.msra.mxu0 %v5480
        %5519 = vmatprep.subr.bf16.mxu0 0
        %5520 = vmatpush1.bf16.msra.mxu0 %v5481
        %5521 = vmatprep.subr.bf16.mxu0 0
        %5522 = vmatpush1.bf16.msra.mxu0 0
        %5523 = vmatprep.subr.bf16.mxu0 0
        %5524 = vmatpush1.bf16.msra.mxu0 0
        %5525 = vmatprep.subr.bf16.mxu0 0
        %5526 = vmatpush1.bf16.msra.mxu0 0
        %5527 = vmatprep.subr.bf16.mxu0 0
        %5528 = vmatpush1.bf16.msra.mxu0 0
        %5529 = vmatprep.subr.bf16.mxu0 0
        %5530 = vmatpush1.bf16.msra.mxu0 0
        %5531 = vmatprep.subr.bf16.mxu0 0
        %5532 = vmatpush1.bf16.msra.mxu0 0
        %5533 = vmatprep.subr.bf16.mxu0 0
        %5534 = vmatpush1.bf16.msra.mxu0 0
        %5535 = vmatprep.mubr.bf16.mxu0 %v5492
        %5536 = vmatmul.mubr.bf16.gmra.mrb[0].mxu0 %v5425
        %v5537 = vpop.f32.mrb[0].mxu0
        %v5538 = vadd.f32 0.0, %v5537
        %v5539 = vpop.f32.mrb[0].mxu0
        %v5540 = vpop.f32.mrb[0].mxu0
        %v5541 = vadd.f32 0.0, %v5540
        %v5542 = vpop.f32.mrb[0].mxu0
        %5543 = vmatprep.mubr.bf16.mxu0 %v5495
        %5544 = vmatmul.mubr.bf16.gmra.mrb[0].mxu0 %v5427
        %v5545 = vpop.f32.mrb[0].mxu0
        %v5546 = vadd.f32 0.0, %v5545
        %v5547 = vpop.f32.mrb[0].mxu0
        %v5548 = vpop.f32.mrb[0].mxu0
        %v5549 = vadd.f32 0.0, %v5548
        %v5550 = vpop.f32.mrb[0].mxu0
        %5551 = vmatprep.mubr.bf16.mxu0 %v5498
        %5552 = vmatmul.mubr.bf16.gmra.mrb[0].mxu0 %v5429
        %v5553 = vpop.f32.mrb[0].mxu0
        %v5554 = vadd.f32 0.0, %v5553
        %v5555 = vpop.f32.mrb[0].mxu0
        %v5556 = vpop.f32.mrb[0].mxu0
        %v5557 = vadd.f32 0.0, %v5556
        %v5558 = vpop.f32.mrb[0].mxu0
        %5559 = vmatprep.mubr.bf16.mxu0 %v5501
        %5560 = vmatmul.mubr.bf16.gmra.mrb[0].mxu0 %v5431
        %v5561 = vpop.f32.mrb[0].mxu0
        %v5562 = vadd.f32 0.0, %v5561
        %v5563 = vpop.f32.mrb[0].mxu0
        %v5564 = vpop.f32.mrb[0].mxu0
        %v5565 = vadd.f32 0.0, %v5564
        %v5566 = vpop.f32.mrb[0].mxu0
        %5567 = vdwg.mxu0
        %v5568 = vadd.f32 %v5320, %v5538
        %v5569 = vadd.f32 %v5323, %v5541
        %v5570 = vadd.f32 %v5328, %v5546
        %v5571 = vadd.f32 %v5331, %v5549
        %v5572 = vadd.f32 %v5336, %v5554
        %v5573 = vadd.f32 %v5339, %v5557
        %v5574 = vadd.f32 %v5344, %v5562
        %v5575 = vadd.f32 %v5347, %v5565
        %v5576 = vld [vmem:[%s4836] sm:$0xff]
        %v5577 = vld [vmem:[%s4836 + $0x8] sm:$0xff]
        %v5578 = vld [vmem:[%s4836 + $0x18] sm:$0xff]
        %v5579 = vld [vmem:[%s4836 + $0x20] sm:$0xff]
        %v5580 = vld [vmem:[%s4836 + $0x30] sm:$0xff]
        %v5581 = vld [vmem:[%s4836 + $0x38] sm:$0xff]
        %v5582 = vld [vmem:[%s4836 + $0x48] sm:$0xff]
        %v5583 = vld [vmem:[%s4836 + $0x50] sm:$0xff]
        %s5584 = scalar_lea.vmem [#allocation9], 216
        %v5585 = vld [vmem:[%s5584] sm:$0xf]
        %v5586 = vld [vmem:[%s5584 + $0x4] sm:$0xf]
        %v5587 = vld [vmem:[%s5584 + $0x8] sm:$0xf]
        %v5588 = vld [vmem:[%s5584 + $0xc] sm:$0xf]
        %v5589 = vld [vmem:[%s5584 + $0x10] sm:$0xf]
        %v5590 = vld [vmem:[%s5584 + $0x14] sm:$0xf]
        %v5591 = vld [vmem:[%s5584 + $0x18] sm:$0xf]
        %v5592 = vld [vmem:[%s5584 + $0x1c] sm:$0xf]
        %v5593 = vld [vmem:[%s5584 + $0x20] sm:$0xf]
        %v5594 = vld [vmem:[%s5584 + $0x24] sm:$0xf]
        %v5595 = vld [vmem:[%s5584 + $0x28] sm:$0xf]
        %v5596 = vld [vmem:[%s5584 + $0x2c] sm:$0xf]
        %v5597 = vld [vmem:[%s5584 + $0x30] sm:$0xf]
        %v5598 = vld [vmem:[%s5584 + $0x34] sm:$0xf]
        %v5599 = vld [vmem:[%s5584 + $0x38] sm:$0xf]
        %v5600 = vld [vmem:[%s5584 + $0x3c] sm:$0xf]
        %v5601 = vld [vmem:[%s5584 + $0x40] sm:$0xf]
        %v5602 = vld [vmem:[%s5584 + $0x44] sm:$0xf]
        %v5611 = vunpack.c.l.b16 %v5576
        %v5612 = vunpack.c.h.b16 %v5576
        %v5613 = vunpack.c.l.b16 %v5577
        %v5614 = vunpack.c.h.b16 %v5577
        %v5615 = vunpack.c.l.b16 %v5578
        %v5616 = vunpack.c.h.b16 %v5578
        %v5617 = vunpack.c.l.b16 %v5579
        %v5618 = vunpack.c.h.b16 %v5579
        %v5619 = vunpack.c.l.b16 %v5580
        %v5620 = vunpack.c.h.b16 %v5580
        %v5621 = vunpack.c.l.b16 %v5581
        %v5622 = vunpack.c.h.b16 %v5581
        %v5623 = vunpack.c.l.b16 %v5582
        %v5624 = vunpack.c.h.b16 %v5582
        %v5625 = vunpack.c.l.b16 %v5583
        %v5626 = vunpack.c.h.b16 %v5583
        %v5627 = vpack.c.b16 %v5613, %v5611
        %v5628 = vpack.c.b16 %v5614, %v5612
        %v5629 = vpack.c.b16 %v5617, %v5615
        %v5630 = vpack.c.b16 %v5618, %v5616
        %v5631 = vpack.c.b16 %v5621, %v5619
        %v5632 = vpack.c.b16 %v5622, %v5620
        %v5633 = vpack.c.b16 %v5625, %v5623
        %v5634 = vpack.c.b16 %v5626, %v5624
        %v5657 = vunpack.c.l.b16 %v5585
        %v5658 = vunpack.c.l.b16 %v5586
        %v5659 = vunpack.c.l.b16 %v5587
        %v5660 = vunpack.c.l.b16 %v5588
        %v5661 = vunpack.c.l.b16 %v5589
        %v5662 = vunpack.c.l.b16 %v5590
        %v5663 = vunpack.c.l.b16 %v5591
        %v5664 = vunpack.c.l.b16 %v5592
        %v5665 = vunpack.c.l.b16 %v5593
        %v5666 = vunpack.c.l.b16 %v5594
        %v5667 = vunpack.c.l.b16 %v5595
        %v5668 = vunpack.c.l.b16 %v5596
        %v5669 = vunpack.c.l.b16 %v5597
        %v5670 = vunpack.c.l.b16 %v5598
        %v5671 = vunpack.c.l.b16 %v5599
        %v5672 = vunpack.c.l.b16 %v5600
        %v5673 = vunpack.c.l.b16 %v5601
        %v5674 = vunpack.c.l.b16 %v5602
        %v5675 = vpack.c.b16 %v5658, %v5657
        %v5676 = vpack.c.b16 %v5660, %v5659
        %v5677 = vpack.c.b16 %v5662, %v5661
        %v5678 = vpack.c.b16 %v5664, %v5663
        %v5679 = vpack.c.b16 %v5666, %v5665
        %v5680 = vpack.c.b16 %v5668, %v5667
        %v5681 = vpack.c.b16 %v5670, %v5669
        %v5682 = vpack.c.b16 %v5672, %v5671
        %v5683 = vpack.c.b16 %v5674, %v5673
        %v5694 = vsel %vm5105, %v5628, 0
        %v5697 = vsel %vm5105, %v5630, 0
        %v5700 = vsel %vm5105, %v5632, 0
        %v5703 = vsel %vm5105, %v5634, 0
        %5705 = vmatprep.subr.bf16.mxu0 0
        %5706 = vmatpush1.bf16.msra.mxu0 %v5675
        %5707 = vmatprep.subr.bf16.mxu0 0
        %5708 = vmatpush1.bf16.msra.mxu0 %v5676
        %5709 = vmatprep.subr.bf16.mxu0 0
        %5710 = vmatpush1.bf16.msra.mxu0 %v5677
        %5711 = vmatprep.subr.bf16.mxu0 0
        %5712 = vmatpush1.bf16.msra.mxu0 %v5678
        %5713 = vmatprep.subr.bf16.mxu0 0
        %5714 = vmatpush1.bf16.msra.mxu0 %v5679
        %5715 = vmatprep.subr.bf16.mxu0 0
        %5716 = vmatpush1.bf16.msra.mxu0 %v5680
        %5717 = vmatprep.subr.bf16.mxu0 0
        %5718 = vmatpush1.bf16.msra.mxu0 %v5681
        %5719 = vmatprep.subr.bf16.mxu0 0
        %5720 = vmatpush1.bf16.msra.mxu0 %v5682
        %5721 = vmatprep.subr.bf16.mxu0 0
        %5722 = vmatpush1.bf16.msra.mxu0 %v5683
        %5723 = vmatprep.subr.bf16.mxu0 0
        %5724 = vmatpush1.bf16.msra.mxu0 0
        %5725 = vmatprep.subr.bf16.mxu0 0
        %5726 = vmatpush1.bf16.msra.mxu0 0
        %5727 = vmatprep.subr.bf16.mxu0 0
        %5728 = vmatpush1.bf16.msra.mxu0 0
        %5729 = vmatprep.subr.bf16.mxu0 0
        %5730 = vmatpush1.bf16.msra.mxu0 0
        %5731 = vmatprep.subr.bf16.mxu0 0
        %5732 = vmatpush1.bf16.msra.mxu0 0
        %5733 = vmatprep.subr.bf16.mxu0 0
        %5734 = vmatpush1.bf16.msra.mxu0 0
        %5735 = vmatprep.subr.bf16.mxu0 0
        %5736 = vmatpush1.bf16.msra.mxu0 0
        %5737 = vmatprep.mubr.bf16.mxu0 %v5694
        %5738 = vmatmul.mubr.bf16.gmra.mrb[0].mxu0 %v5627
        %v5739 = vpop.f32.mrb[0].mxu0
        %v5740 = vadd.f32 0.0, %v5739
        %v5741 = vpop.f32.mrb[0].mxu0
        %v5742 = vpop.f32.mrb[0].mxu0
        %v5743 = vadd.f32 0.0, %v5742
        %v5744 = vpop.f32.mrb[0].mxu0
        %5745 = vmatprep.mubr.bf16.mxu0 %v5697
        %5746 = vmatmul.mubr.bf16.gmra.mrb[0].mxu0 %v5629
        %v5747 = vpop.f32.mrb[0].mxu0
        %v5748 = vadd.f32 0.0, %v5747
        %v5749 = vpop.f32.mrb[0].mxu0
        %v5750 = vpop.f32.mrb[0].mxu0
        %v5751 = vadd.f32 0.0, %v5750
        %v5752 = vpop.f32.mrb[0].mxu0
        %5753 = vmatprep.mubr.bf16.mxu0 %v5700
        %5754 = vmatmul.mubr.bf16.gmra.mrb[0].mxu0 %v5631
        %v5755 = vpop.f32.mrb[0].mxu0
        %v5756 = vadd.f32 0.0, %v5755
        %v5757 = vpop.f32.mrb[0].mxu0
        %v5758 = vpop.f32.mrb[0].mxu0
        %v5759 = vadd.f32 0.0, %v5758
        %v5760 = vpop.f32.mrb[0].mxu0
        %5761 = vmatprep.mubr.bf16.mxu0 %v5703
        %5762 = vmatmul.mubr.bf16.gmra.mrb[0].mxu0 %v5633
        %v5763 = vpop.f32.mrb[0].mxu0
        %v5764 = vadd.f32 0.0, %v5763
        %v5765 = vpop.f32.mrb[0].mxu0
        %v5766 = vpop.f32.mrb[0].mxu0
        %v5767 = vadd.f32 0.0, %v5766
        %v5768 = vpop.f32.mrb[0].mxu0
        %5769 = vdwg.mxu0
        %v5770 = vadd.f32 %v5568, %v5740
        %v5771 = vadd.f32 %v5569, %v5743
        %v5772 = vadd.f32 %v5570, %v5748
        %v5773 = vadd.f32 %v5571, %v5751
        %v5774 = vadd.f32 %v5572, %v5756
        %v5775 = vadd.f32 %v5573, %v5759
        %v5776 = vadd.f32 %v5574, %v5764
        %v5777 = vadd.f32 %v5575, %v5767
        %v5778 = vld [vmem:[%s4836] sm:$0xff]
        %v5779 = vld [vmem:[%s4836 + $0x8] sm:$0xff]
        %v5780 = vld [vmem:[%s4836 + $0x10] sm:$0x11]
        %v5781 = vld [vmem:[%s4836 + $0x18] sm:$0xff]
        %v5782 = vld [vmem:[%s4836 + $0x20] sm:$0xff]
        %v5783 = vld [vmem:[%s4836 + $0x28] sm:$0x11]
        %v5784 = vld [vmem:[%s4836 + $0x30] sm:$0xff]
        %v5785 = vld [vmem:[%s4836 + $0x38] sm:$0xff]
        %v5786 = vld [vmem:[%s4836 + $0x40] sm:$0x11]
        %v5787 = vld [vmem:[%s4836 + $0x48] sm:$0xff]
        %v5788 = vld [vmem:[%s4836 + $0x50] sm:$0xff]
        %v5789 = vld [vmem:[%s4836 + $0x58] sm:$0x11]
        %v5791 = vshrl.u32 %v5778, 16
        %v5793 = vrot.slane %v5791, 4
        %v5794 = vshll.u32 %v5778, 16
        %v5796 = vrot.slane %v5794, 5
        %v5797 = vor.u32 %v5793, %v5796
        %v5798 = vrot.slane %v5797, 4
        %v5800 = vshll.u32 %v5779, 16
        %v5802 = vrot.slane %v5800, 5
        %v5803 = vsel %vm657, %v5798, %v5802
        %v5804 = vshrl.u32 %v5779, 16
        %v5806 = vrot.slane %v5804, 4
        %v5807 = vor.u32 %v5806, %v5802
        %v5808 = vrot.slane %v5807, 4
        %v5810 = vshll.u32 %v5780, 16
        %v5812 = vrot.slane %v5810, 5
        %v5813 = vsel %vm657, %v5808, %v5812
        %v5815 = vshrl.u32 %v5781, 16
        %v5817 = vrot.slane %v5815, 4
        %v5818 = vshll.u32 %v5781, 16
        %v5820 = vrot.slane %v5818, 5
        %v5821 = vor.u32 %v5817, %v5820
        %v5822 = vrot.slane %v5821, 4
        %v5824 = vshll.u32 %v5782, 16
        %v5826 = vrot.slane %v5824, 5
        %v5827 = vsel %vm657, %v5822, %v5826
        %v5828 = vshrl.u32 %v5782, 16
        %v5830 = vrot.slane %v5828, 4
        %v5831 = vor.u32 %v5830, %v5826
        %v5832 = vrot.slane %v5831, 4
        %v5834 = vshll.u32 %v5783, 16
        %v5836 = vrot.slane %v5834, 5
        %v5837 = vsel %vm657, %v5832, %v5836
        %v5839 = vshrl.u32 %v5784, 16
        %v5841 = vrot.slane %v5839, 4
        %v5842 = vshll.u32 %v5784, 16
        %v5844 = vrot.slane %v5842, 5
        %v5845 = vor.u32 %v5841, %v5844
        %v5846 = vrot.slane %v5845, 4
        %v5848 = vshll.u32 %v5785, 16
        %v5850 = vrot.slane %v5848, 5
        %v5851 = vsel %vm657, %v5846, %v5850
        %v5852 = vshrl.u32 %v5785, 16
        %v5854 = vrot.slane %v5852, 4
        %v5855 = vor.u32 %v5854, %v5850
        %v5856 = vrot.slane %v5855, 4
        %v5858 = vshll.u32 %v5786, 16
        %v5860 = vrot.slane %v5858, 5
        %v5861 = vsel %vm657, %v5856, %v5860
        %v5863 = vshrl.u32 %v5787, 16
        %v5865 = vrot.slane %v5863, 4
        %v5866 = vshll.u32 %v5787, 16
        %v5868 = vrot.slane %v5866, 5
        %v5869 = vor.u32 %v5865, %v5868
        %v5870 = vrot.slane %v5869, 4
        %v5872 = vshll.u32 %v5788, 16
        %v5874 = vrot.slane %v5872, 5
        %v5875 = vsel %vm657, %v5870, %v5874
        %v5876 = vshrl.u32 %v5788, 16
        %v5878 = vrot.slane %v5876, 4
        %v5879 = vor.u32 %v5878, %v5874
        %v5880 = vrot.slane %v5879, 4
        %v5882 = vshll.u32 %v5789, 16
        %v5884 = vrot.slane %v5882, 5
        %v5885 = vsel %vm657, %v5880, %v5884
        %s5886 = scalar_lea.vmem [#allocation9], 288
        %v5887 = vld [vmem:[%s5886] sm:$0xf]
        %v5888 = vld [vmem:[%s5886 + $0x4] sm:$0xf]
        %v5889 = vld [vmem:[%s5886 + $0x8] sm:$0xf]
        %v5890 = vld [vmem:[%s5886 + $0xc] sm:$0xf]
        %v5891 = vld [vmem:[%s5886 + $0x10] sm:$0xf]
        %v5892 = vld [vmem:[%s5886 + $0x14] sm:$0xf]
        %v5893 = vld [vmem:[%s5886 + $0x18] sm:$0xf]
        %v5894 = vld [vmem:[%s5886 + $0x1c] sm:$0xf]
        %v5895 = vld [vmem:[%s5886 + $0x20] sm:$0xf]
        %v5896 = vld [vmem:[%s5886 + $0x24] sm:$0xf]
        %v5897 = vld [vmem:[%s5886 + $0x28] sm:$0xf]
        %v5898 = vld [vmem:[%s5886 + $0x2c] sm:$0xf]
        %v5899 = vld [vmem:[%s5886 + $0x30] sm:$0xf]
        %v5900 = vld [vmem:[%s5886 + $0x34] sm:$0xf]
        %v5901 = vld [vmem:[%s5886 + $0x38] sm:$0xf]
        %v5902 = vld [vmem:[%s5886 + $0x3c] sm:$0xf]
        %v5903 = vld [vmem:[%s5886 + $0x40] sm:$0xf]
        %v5904 = vld [vmem:[%s5886 + $0x44] sm:$0xf]
        %v5905 = vunpack.c.l.b16 %v5803
        %v5906 = vunpack.c.h.b16 %v5803
        %v5907 = vunpack.c.l.b16 %v5813
        %v5908 = vunpack.c.h.b16 %v5813
        %v5909 = vunpack.c.l.b16 %v5827
        %v5910 = vunpack.c.h.b16 %v5827
        %v5911 = vunpack.c.l.b16 %v5837
        %v5912 = vunpack.c.h.b16 %v5837
        %v5913 = vunpack.c.l.b16 %v5851
        %v5914 = vunpack.c.h.b16 %v5851
        %v5915 = vunpack.c.l.b16 %v5861
        %v5916 = vunpack.c.h.b16 %v5861
        %v5917 = vunpack.c.l.b16 %v5875
        %v5918 = vunpack.c.h.b16 %v5875
        %v5919 = vunpack.c.l.b16 %v5885
        %v5920 = vunpack.c.h.b16 %v5885
        %v5921 = vpack.c.b16 %v5907, %v5905
        %v5922 = vpack.c.b16 %v5908, %v5906
        %v5923 = vpack.c.b16 %v5911, %v5909
        %v5924 = vpack.c.b16 %v5912, %v5910
        %v5925 = vpack.c.b16 %v5915, %v5913
        %v5926 = vpack.c.b16 %v5916, %v5914
        %v5927 = vpack.c.b16 %v5919, %v5917
        %v5928 = vpack.c.b16 %v5920, %v5918
        %v5951 = vunpack.c.l.b16 %v5887
        %v5952 = vunpack.c.l.b16 %v5888
        %v5953 = vunpack.c.l.b16 %v5889
        %v5954 = vunpack.c.l.b16 %v5890
        %v5955 = vunpack.c.l.b16 %v5891
        %v5956 = vunpack.c.l.b16 %v5892
        %v5957 = vunpack.c.l.b16 %v5893
        %v5958 = vunpack.c.l.b16 %v5894
        %v5959 = vunpack.c.l.b16 %v5895
        %v5960 = vunpack.c.l.b16 %v5896
        %v5961 = vunpack.c.l.b16 %v5897
        %v5962 = vunpack.c.l.b16 %v5898
        %v5963 = vunpack.c.l.b16 %v5899
        %v5964 = vunpack.c.l.b16 %v5900
        %v5965 = vunpack.c.l.b16 %v5901
        %v5966 = vunpack.c.l.b16 %v5902
        %v5967 = vunpack.c.l.b16 %v5903
        %v5968 = vunpack.c.l.b16 %v5904
        %v5969 = vpack.c.b16 %v5952, %v5951
        %v5970 = vpack.c.b16 %v5954, %v5953
        %v5971 = vpack.c.b16 %v5956, %v5955
        %v5972 = vpack.c.b16 %v5958, %v5957
        %v5973 = vpack.c.b16 %v5960, %v5959
        %v5974 = vpack.c.b16 %v5962, %v5961
        %v5975 = vpack.c.b16 %v5964, %v5963
        %v5976 = vpack.c.b16 %v5966, %v5965
        %v5977 = vpack.c.b16 %v5968, %v5967
        %v5988 = vsel %vm5105, %v5922, 0
        %v5991 = vsel %vm5105, %v5924, 0
        %v5994 = vsel %vm5105, %v5926, 0
        %v5997 = vsel %vm5105, %v5928, 0
        %5999 = vmatprep.subr.bf16.mxu0 0
        %6000 = vmatpush1.bf16.msra.mxu0 %v5969
        %6001 = vmatprep.subr.bf16.mxu0 0
        %6002 = vmatpush1.bf16.msra.mxu0 %v5970
        %6003 = vmatprep.subr.bf16.mxu0 0
        %6004 = vmatpush1.bf16.msra.mxu0 %v5971
        %6005 = vmatprep.subr.bf16.mxu0 0
        %6006 = vmatpush1.bf16.msra.mxu0 %v5972
        %6007 = vmatprep.subr.bf16.mxu0 0
        %6008 = vmatpush1.bf16.msra.mxu0 %v5973
        %6009 = vmatprep.subr.bf16.mxu0 0
        %6010 = vmatpush1.bf16.msra.mxu0 %v5974
        %6011 = vmatprep.subr.bf16.mxu0 0
        %6012 = vmatpush1.bf16.msra.mxu0 %v5975
        %6013 = vmatprep.subr.bf16.mxu0 0
        %6014 = vmatpush1.bf16.msra.mxu0 %v5976
        %6015 = vmatprep.subr.bf16.mxu0 0
        %6016 = vmatpush1.bf16.msra.mxu0 %v5977
        %6017 = vmatprep.subr.bf16.mxu0 0
        %6018 = vmatpush1.bf16.msra.mxu0 0
        %6019 = vmatprep.subr.bf16.mxu0 0
        %6020 = vmatpush1.bf16.msra.mxu0 0
        %6021 = vmatprep.subr.bf16.mxu0 0
        %6022 = vmatpush1.bf16.msra.mxu0 0
        %6023 = vmatprep.subr.bf16.mxu0 0
        %6024 = vmatpush1.bf16.msra.mxu0 0
        %6025 = vmatprep.subr.bf16.mxu0 0
        %6026 = vmatpush1.bf16.msra.mxu0 0
        %6027 = vmatprep.subr.bf16.mxu0 0
        %6028 = vmatpush1.bf16.msra.mxu0 0
        %6029 = vmatprep.subr.bf16.mxu0 0
        %6030 = vmatpush1.bf16.msra.mxu0 0
        %6031 = vmatprep.mubr.bf16.mxu0 %v5988
        %6032 = vmatmul.mubr.bf16.gmra.mrb[0].mxu0 %v5921
        %v6033 = vpop.f32.mrb[0].mxu0
        %v6034 = vadd.f32 0.0, %v6033
        %v6035 = vpop.f32.mrb[0].mxu0
        %v6036 = vpop.f32.mrb[0].mxu0
        %v6037 = vadd.f32 0.0, %v6036
        %v6038 = vpop.f32.mrb[0].mxu0
        %6039 = vmatprep.mubr.bf16.mxu0 %v5991
        %6040 = vmatmul.mubr.bf16.gmra.mrb[0].mxu0 %v5923
        %v6041 = vpop.f32.mrb[0].mxu0
        %v6042 = vadd.f32 0.0, %v6041
        %v6043 = vpop.f32.mrb[0].mxu0
        %v6044 = vpop.f32.mrb[0].mxu0
        %v6045 = vadd.f32 0.0, %v6044
        %v6046 = vpop.f32.mrb[0].mxu0
        %6047 = vmatprep.mubr.bf16.mxu0 %v5994
        %6048 = vmatmul.mubr.bf16.gmra.mrb[0].mxu0 %v5925
        %v6049 = vpop.f32.mrb[0].mxu0
        %v6050 = vadd.f32 0.0, %v6049
        %v6051 = vpop.f32.mrb[0].mxu0
        %v6052 = vpop.f32.mrb[0].mxu0
        %v6053 = vadd.f32 0.0, %v6052
        %v6054 = vpop.f32.mrb[0].mxu0
        %6055 = vmatprep.mubr.bf16.mxu0 %v5997
        %6056 = vmatmul.mubr.bf16.gmra.mrb[0].mxu0 %v5927
        %v6057 = vpop.f32.mrb[0].mxu0
        %v6058 = vadd.f32 0.0, %v6057
        %v6059 = vpop.f32.mrb[0].mxu0
        %v6060 = vpop.f32.mrb[0].mxu0
        %v6061 = vadd.f32 0.0, %v6060
        %v6062 = vpop.f32.mrb[0].mxu0
        %6063 = vdwg.mxu0
        %v6064 = vadd.f32 %v5770, %v6034
        %v6065 = vadd.f32 %v5771, %v6037
        %v6066 = vadd.f32 %v5772, %v6042
        %v6067 = vadd.f32 %v5773, %v6045
        %v6068 = vadd.f32 %v5774, %v6050
        %v6069 = vadd.f32 %v5775, %v6053
        %v6070 = vadd.f32 %v5776, %v6058
        %v6071 = vadd.f32 %v5777, %v6061
        %v6072 = vld [vmem:[%s4836] sm:$0xee]
        %v6073 = vld [vmem:[%s4836 + $0x18] sm:$0xee]
        %v6074 = vld [vmem:[%s4836 + $0x30] sm:$0xee]
        %v6075 = vld [vmem:[%s4836 + $0x48] sm:$0xee]
        %v6088 = vrot.slane %v6072, 5
        %v6089 = vrot.slane %v6088, 4
        %v6090 = vrot.slane %v5779, 5
        %v6091 = vsel %vm1518, %v6089, %v6090
        %v6092 = vrot.slane %v6090, 4
        %v6093 = vrot.slane %v5780, 5
        %v6094 = vsel %vm1518, %v6092, %v6093
        %v6095 = vrot.slane %v6073, 5
        %v6096 = vrot.slane %v6095, 4
        %v6097 = vrot.slane %v5782, 5
        %v6098 = vsel %vm1518, %v6096, %v6097
        %v6099 = vrot.slane %v6097, 4
        %v6100 = vrot.slane %v5783, 5
        %v6101 = vsel %vm1518, %v6099, %v6100
        %v6102 = vrot.slane %v6074, 5
        %v6103 = vrot.slane %v6102, 4
        %v6104 = vrot.slane %v5785, 5
        %v6105 = vsel %vm1518, %v6103, %v6104
        %v6106 = vrot.slane %v6104, 4
        %v6107 = vrot.slane %v5786, 5
        %v6108 = vsel %vm1518, %v6106, %v6107
        %v6109 = vrot.slane %v6075, 5
        %v6110 = vrot.slane %v6109, 4
        %v6111 = vrot.slane %v5788, 5
        %v6112 = vsel %vm1518, %v6110, %v6111
        %v6113 = vrot.slane %v6111, 4
        %v6114 = vrot.slane %v5789, 5
        %v6115 = vsel %vm1518, %v6113, %v6114
        %s6116 = scalar_lea.vmem [#allocation9], 360
        %v6117 = vld [vmem:[%s6116] sm:$0xf]
        %v6118 = vld [vmem:[%s6116 + $0x4] sm:$0xf]
        %v6119 = vld [vmem:[%s6116 + $0x8] sm:$0xf]
        %v6120 = vld [vmem:[%s6116 + $0xc] sm:$0xf]
        %v6121 = vld [vmem:[%s6116 + $0x10] sm:$0xf]
        %v6122 = vld [vmem:[%s6116 + $0x14] sm:$0xf]
        %v6123 = vld [vmem:[%s6116 + $0x18] sm:$0xf]
        %v6124 = vld [vmem:[%s6116 + $0x1c] sm:$0xf]
        %v6125 = vld [vmem:[%s6116 + $0x20] sm:$0xf]
        %v6126 = vld [vmem:[%s6116 + $0x24] sm:$0xf]
        %v6127 = vld [vmem:[%s6116 + $0x28] sm:$0xf]
        %v6128 = vld [vmem:[%s6116 + $0x2c] sm:$0xf]
        %v6129 = vld [vmem:[%s6116 + $0x30] sm:$0xf]
        %v6130 = vld [vmem:[%s6116 + $0x34] sm:$0xf]
        %v6131 = vld [vmem:[%s6116 + $0x38] sm:$0xf]
        %v6132 = vld [vmem:[%s6116 + $0x3c] sm:$0xf]
        %v6133 = vld [vmem:[%s6116 + $0x40] sm:$0xf]
        %v6134 = vld [vmem:[%s6116 + $0x44] sm:$0xf]
        %v6135 = vunpack.c.l.b16 %v6091
        %v6136 = vunpack.c.h.b16 %v6091
        %v6137 = vunpack.c.l.b16 %v6094
        %v6138 = vunpack.c.h.b16 %v6094
        %v6139 = vunpack.c.l.b16 %v6098
        %v6140 = vunpack.c.h.b16 %v6098
        %v6141 = vunpack.c.l.b16 %v6101
        %v6142 = vunpack.c.h.b16 %v6101
        %v6143 = vunpack.c.l.b16 %v6105
        %v6144 = vunpack.c.h.b16 %v6105
        %v6145 = vunpack.c.l.b16 %v6108
        %v6146 = vunpack.c.h.b16 %v6108
        %v6147 = vunpack.c.l.b16 %v6112
        %v6148 = vunpack.c.h.b16 %v6112
        %v6149 = vunpack.c.l.b16 %v6115
        %v6150 = vunpack.c.h.b16 %v6115
        %v6151 = vpack.c.b16 %v6137, %v6135
        %v6152 = vpack.c.b16 %v6138, %v6136
        %v6153 = vpack.c.b16 %v6141, %v6139
        %v6154 = vpack.c.b16 %v6142, %v6140
        %v6155 = vpack.c.b16 %v6145, %v6143
        %v6156 = vpack.c.b16 %v6146, %v6144
        %v6157 = vpack.c.b16 %v6149, %v6147
        %v6158 = vpack.c.b16 %v6150, %v6148
        %v6181 = vunpack.c.l.b16 %v6117
        %v6182 = vunpack.c.l.b16 %v6118
        %v6183 = vunpack.c.l.b16 %v6119
        %v6184 = vunpack.c.l.b16 %v6120
        %v6185 = vunpack.c.l.b16 %v6121
        %v6186 = vunpack.c.l.b16 %v6122
        %v6187 = vunpack.c.l.b16 %v6123
        %v6188 = vunpack.c.l.b16 %v6124
        %v6189 = vunpack.c.l.b16 %v6125
        %v6190 = vunpack.c.l.b16 %v6126
        %v6191 = vunpack.c.l.b16 %v6127
        %v6192 = vunpack.c.l.b16 %v6128
        %v6193 = vunpack.c.l.b16 %v6129
        %v6194 = vunpack.c.l.b16 %v6130
        %v6195 = vunpack.c.l.b16 %v6131
        %v6196 = vunpack.c.l.b16 %v6132
        %v6197 = vunpack.c.l.b16 %v6133
        %v6198 = vunpack.c.l.b16 %v6134
        %v6199 = vpack.c.b16 %v6182, %v6181
        %v6200 = vpack.c.b16 %v6184, %v6183
        %v6201 = vpack.c.b16 %v6186, %v6185
        %v6202 = vpack.c.b16 %v6188, %v6187
        %v6203 = vpack.c.b16 %v6190, %v6189
        %v6204 = vpack.c.b16 %v6192, %v6191
        %v6205 = vpack.c.b16 %v6194, %v6193
        %v6206 = vpack.c.b16 %v6196, %v6195
        %v6207 = vpack.c.b16 %v6198, %v6197
        %v6218 = vsel %vm5105, %v6152, 0
        %v6221 = vsel %vm5105, %v6154, 0
        %v6224 = vsel %vm5105, %v6156, 0
        %v6227 = vsel %vm5105, %v6158, 0
        %6229 = vmatprep.subr.bf16.mxu0 0
        %6230 = vmatpush1.bf16.msra.mxu0 %v6199
        %6231 = vmatprep.subr.bf16.mxu0 0
        %6232 = vmatpush1.bf16.msra.mxu0 %v6200
        %6233 = vmatprep.subr.bf16.mxu0 0
        %6234 = vmatpush1.bf16.msra.mxu0 %v6201
        %6235 = vmatprep.subr.bf16.mxu0 0
        %6236 = vmatpush1.bf16.msra.mxu0 %v6202
        %6237 = vmatprep.subr.bf16.mxu0 0
        %6238 = vmatpush1.bf16.msra.mxu0 %v6203
        %6239 = vmatprep.subr.bf16.mxu0 0
        %6240 = vmatpush1.bf16.msra.mxu0 %v6204
        %6241 = vmatprep.subr.bf16.mxu0 0
        %6242 = vmatpush1.bf16.msra.mxu0 %v6205
        %6243 = vmatprep.subr.bf16.mxu0 0
        %6244 = vmatpush1.bf16.msra.mxu0 %v6206
        %6245 = vmatprep.subr.bf16.mxu0 0
        %6246 = vmatpush1.bf16.msra.mxu0 %v6207
        %6247 = vmatprep.subr.bf16.mxu0 0
        %6248 = vmatpush1.bf16.msra.mxu0 0
        %6249 = vmatprep.subr.bf16.mxu0 0
        %6250 = vmatpush1.bf16.msra.mxu0 0
        %6251 = vmatprep.subr.bf16.mxu0 0
        %6252 = vmatpush1.bf16.msra.mxu0 0
        %6253 = vmatprep.subr.bf16.mxu0 0
        %6254 = vmatpush1.bf16.msra.mxu0 0
        %6255 = vmatprep.subr.bf16.mxu0 0
        %6256 = vmatpush1.bf16.msra.mxu0 0
        %6257 = vmatprep.subr.bf16.mxu0 0
        %6258 = vmatpush1.bf16.msra.mxu0 0
        %6259 = vmatprep.subr.bf16.mxu0 0
        %6260 = vmatpush1.bf16.msra.mxu0 0
        %6261 = vmatprep.mubr.bf16.mxu0 %v6218
        %6262 = vmatmul.mubr.bf16.gmra.mrb[0].mxu0 %v6151
        %v6263 = vpop.f32.mrb[0].mxu0
        %v6264 = vadd.f32 0.0, %v6263
        %v6265 = vpop.f32.mrb[0].mxu0
        %v6266 = vpop.f32.mrb[0].mxu0
        %v6267 = vadd.f32 0.0, %v6266
        %v6268 = vpop.f32.mrb[0].mxu0
        %6269 = vmatprep.mubr.bf16.mxu0 %v6221
        %6270 = vmatmul.mubr.bf16.gmra.mrb[0].mxu0 %v6153
        %v6271 = vpop.f32.mrb[0].mxu0
        %v6272 = vadd.f32 0.0, %v6271
        %v6273 = vpop.f32.mrb[0].mxu0
        %v6274 = vpop.f32.mrb[0].mxu0
        %v6275 = vadd.f32 0.0, %v6274
        %v6276 = vpop.f32.mrb[0].mxu0
        %6277 = vmatprep.mubr.bf16.mxu0 %v6224
        %6278 = vmatmul.mubr.bf16.gmra.mrb[0].mxu0 %v6155
        %v6279 = vpop.f32.mrb[0].mxu0
        %v6280 = vadd.f32 0.0, %v6279
        %v6281 = vpop.f32.mrb[0].mxu0
        %v6282 = vpop.f32.mrb[0].mxu0
        %v6283 = vadd.f32 0.0, %v6282
        %v6284 = vpop.f32.mrb[0].mxu0
        %6285 = vmatprep.mubr.bf16.mxu0 %v6227
        %6286 = vmatmul.mubr.bf16.gmra.mrb[0].mxu0 %v6157
        %v6287 = vpop.f32.mrb[0].mxu0
        %v6288 = vadd.f32 0.0, %v6287
        %v6289 = vpop.f32.mrb[0].mxu0
        %v6290 = vpop.f32.mrb[0].mxu0
        %v6291 = vadd.f32 0.0, %v6290
        %v6292 = vpop.f32.mrb[0].mxu0
        %6293 = vdwg.mxu0
        %v6294 = vadd.f32 %v6064, %v6264
        %v6295 = vadd.f32 %v6065, %v6267
        %v6296 = vadd.f32 %v6066, %v6272
        %v6297 = vadd.f32 %v6067, %v6275
        %v6298 = vadd.f32 %v6068, %v6280
        %v6299 = vadd.f32 %v6069, %v6283
        %v6300 = vadd.f32 %v6070, %v6288
        %v6301 = vadd.f32 %v6071, %v6291
        %s6302 = scalar_lea.vmem [#allocation3], 48
        %v6303 = vld [vmem:[%s6302] sm:$0xff]
        %v6304 = vld [vmem:[%s6302 + $0x8] sm:$0xff]
        %v6305 = vld [vmem:[%s6302 + $0x18] sm:$0xff]
        %v6306 = vld [vmem:[%s6302 + $0x20] sm:$0xff]
        %v6307 = vld [vmem:[%s6302 + $0x30] sm:$0xff]
        %v6308 = vld [vmem:[%s6302 + $0x38] sm:$0xff]
        %v6309 = vld [vmem:[%s6302 + $0x48] sm:$0xff]
        %v6310 = vld [vmem:[%s6302 + $0x50] sm:$0xff]
        %s6311 = scalar_lea.vmem [#allocation9], 432
        %v6312 = vld [vmem:[%s6311] sm:$0xf]
        %v6313 = vld [vmem:[%s6311 + $0x4] sm:$0xf]
        %v6314 = vld [vmem:[%s6311 + $0x8] sm:$0xf]
        %v6315 = vld [vmem:[%s6311 + $0xc] sm:$0xf]
        %v6316 = vld [vmem:[%s6311 + $0x10] sm:$0xf]
        %v6317 = vld [vmem:[%s6311 + $0x14] sm:$0xf]
        %v6318 = vld [vmem:[%s6311 + $0x18] sm:$0xf]
        %v6319 = vld [vmem:[%s6311 + $0x1c] sm:$0xf]
        %v6320 = vld [vmem:[%s6311 + $0x20] sm:$0xf]
        %v6321 = vld [vmem:[%s6311 + $0x24] sm:$0xf]
        %v6322 = vld [vmem:[%s6311 + $0x28] sm:$0xf]
        %v6323 = vld [vmem:[%s6311 + $0x2c] sm:$0xf]
        %v6324 = vld [vmem:[%s6311 + $0x30] sm:$0xf]
        %v6325 = vld [vmem:[%s6311 + $0x34] sm:$0xf]
        %v6326 = vld [vmem:[%s6311 + $0x38] sm:$0xf]
        %v6327 = vld [vmem:[%s6311 + $0x3c] sm:$0xf]
        %v6328 = vld [vmem:[%s6311 + $0x40] sm:$0xf]
        %v6329 = vld [vmem:[%s6311 + $0x44] sm:$0xf]
        %v6338 = vunpack.c.l.b16 %v6303
        %v6339 = vunpack.c.h.b16 %v6303
        %v6340 = vunpack.c.l.b16 %v6304
        %v6341 = vunpack.c.h.b16 %v6304
        %v6342 = vunpack.c.l.b16 %v6305
        %v6343 = vunpack.c.h.b16 %v6305
        %v6344 = vunpack.c.l.b16 %v6306
        %v6345 = vunpack.c.h.b16 %v6306
        %v6346 = vunpack.c.l.b16 %v6307
        %v6347 = vunpack.c.h.b16 %v6307
        %v6348 = vunpack.c.l.b16 %v6308
        %v6349 = vunpack.c.h.b16 %v6308
        %v6350 = vunpack.c.l.b16 %v6309
        %v6351 = vunpack.c.h.b16 %v6309
        %v6352 = vunpack.c.l.b16 %v6310
        %v6353 = vunpack.c.h.b16 %v6310
        %v6354 = vpack.c.b16 %v6340, %v6338
        %v6355 = vpack.c.b16 %v6341, %v6339
        %v6356 = vpack.c.b16 %v6344, %v6342
        %v6357 = vpack.c.b16 %v6345, %v6343
        %v6358 = vpack.c.b16 %v6348, %v6346
        %v6359 = vpack.c.b16 %v6349, %v6347
        %v6360 = vpack.c.b16 %v6352, %v6350
        %v6361 = vpack.c.b16 %v6353, %v6351
        %v6384 = vunpack.c.l.b16 %v6312
        %v6385 = vunpack.c.l.b16 %v6313
        %v6386 = vunpack.c.l.b16 %v6314
        %v6387 = vunpack.c.l.b16 %v6315
        %v6388 = vunpack.c.l.b16 %v6316
        %v6389 = vunpack.c.l.b16 %v6317
        %v6390 = vunpack.c.l.b16 %v6318
        %v6391 = vunpack.c.l.b16 %v6319
        %v6392 = vunpack.c.l.b16 %v6320
        %v6393 = vunpack.c.l.b16 %v6321
        %v6394 = vunpack.c.l.b16 %v6322
        %v6395 = vunpack.c.l.b16 %v6323
        %v6396 = vunpack.c.l.b16 %v6324
        %v6397 = vunpack.c.l.b16 %v6325
        %v6398 = vunpack.c.l.b16 %v6326
        %v6399 = vunpack.c.l.b16 %v6327
        %v6400 = vunpack.c.l.b16 %v6328
        %v6401 = vunpack.c.l.b16 %v6329
        %v6402 = vpack.c.b16 %v6385, %v6384
        %v6403 = vpack.c.b16 %v6387, %v6386
        %v6404 = vpack.c.b16 %v6389, %v6388
        %v6405 = vpack.c.b16 %v6391, %v6390
        %v6406 = vpack.c.b16 %v6393, %v6392
        %v6407 = vpack.c.b16 %v6395, %v6394
        %v6408 = vpack.c.b16 %v6397, %v6396
        %v6409 = vpack.c.b16 %v6399, %v6398
        %v6410 = vpack.c.b16 %v6401, %v6400
        %v6421 = vsel %vm5105, %v6355, 0
        %v6424 = vsel %vm5105, %v6357, 0
        %v6427 = vsel %vm5105, %v6359, 0
        %v6430 = vsel %vm5105, %v6361, 0
        %6432 = vmatprep.subr.bf16.mxu0 0
        %6433 = vmatpush1.bf16.msra.mxu0 %v6402
        %6434 = vmatprep.subr.bf16.mxu0 0
        %6435 = vmatpush1.bf16.msra.mxu0 %v6403
        %6436 = vmatprep.subr.bf16.mxu0 0
        %6437 = vmatpush1.bf16.msra.mxu0 %v6404
        %6438 = vmatprep.subr.bf16.mxu0 0
        %6439 = vmatpush1.bf16.msra.mxu0 %v6405
        %6440 = vmatprep.subr.bf16.mxu0 0
        %6441 = vmatpush1.bf16.msra.mxu0 %v6406
        %6442 = vmatprep.subr.bf16.mxu0 0
        %6443 = vmatpush1.bf16.msra.mxu0 %v6407
        %6444 = vmatprep.subr.bf16.mxu0 0
        %6445 = vmatpush1.bf16.msra.mxu0 %v6408
        %6446 = vmatprep.subr.bf16.mxu0 0
        %6447 = vmatpush1.bf16.msra.mxu0 %v6409
        %6448 = vmatprep.subr.bf16.mxu0 0
        %6449 = vmatpush1.bf16.msra.mxu0 %v6410
        %6450 = vmatprep.subr.bf16.mxu0 0
        %6451 = vmatpush1.bf16.msra.mxu0 0
        %6452 = vmatprep.subr.bf16.mxu0 0
        %6453 = vmatpush1.bf16.msra.mxu0 0
        %6454 = vmatprep.subr.bf16.mxu0 0
        %6455 = vmatpush1.bf16.msra.mxu0 0
        %6456 = vmatprep.subr.bf16.mxu0 0
        %6457 = vmatpush1.bf16.msra.mxu0 0
        %6458 = vmatprep.subr.bf16.mxu0 0
        %6459 = vmatpush1.bf16.msra.mxu0 0
        %6460 = vmatprep.subr.bf16.mxu0 0
        %6461 = vmatpush1.bf16.msra.mxu0 0
        %6462 = vmatprep.subr.bf16.mxu0 0
        %6463 = vmatpush1.bf16.msra.mxu0 0
        %6464 = vmatprep.mubr.bf16.mxu0 %v6421
        %6465 = vmatmul.mubr.bf16.gmra.mrb[0].mxu0 %v6354
        %v6466 = vpop.f32.mrb[0].mxu0
        %v6467 = vadd.f32 0.0, %v6466
        %v6468 = vpop.f32.mrb[0].mxu0
        %v6469 = vpop.f32.mrb[0].mxu0
        %v6470 = vadd.f32 0.0, %v6469
        %v6471 = vpop.f32.mrb[0].mxu0
        %6472 = vmatprep.mubr.bf16.mxu0 %v6424
        %6473 = vmatmul.mubr.bf16.gmra.mrb[0].mxu0 %v6356
        %v6474 = vpop.f32.mrb[0].mxu0
        %v6475 = vadd.f32 0.0, %v6474
        %v6476 = vpop.f32.mrb[0].mxu0
        %v6477 = vpop.f32.mrb[0].mxu0
        %v6478 = vadd.f32 0.0, %v6477
        %v6479 = vpop.f32.mrb[0].mxu0
        %6480 = vmatprep.mubr.bf16.mxu0 %v6427
        %6481 = vmatmul.mubr.bf16.gmra.mrb[0].mxu0 %v6358
        %v6482 = vpop.f32.mrb[0].mxu0
        %v6483 = vadd.f32 0.0, %v6482
        %v6484 = vpop.f32.mrb[0].mxu0
        %v6485 = vpop.f32.mrb[0].mxu0
        %v6486 = vadd.f32 0.0, %v6485
        %v6487 = vpop.f32.mrb[0].mxu0
        %6488 = vmatprep.mubr.bf16.mxu0 %v6430
        %6489 = vmatmul.mubr.bf16.gmra.mrb[0].mxu0 %v6360
        %v6490 = vpop.f32.mrb[0].mxu0
        %v6491 = vadd.f32 0.0, %v6490
        %v6492 = vpop.f32.mrb[0].mxu0
        %v6493 = vpop.f32.mrb[0].mxu0
        %v6494 = vadd.f32 0.0, %v6493
        %v6495 = vpop.f32.mrb[0].mxu0
        %6496 = vdwg.mxu0
        %v6497 = vadd.f32 %v6294, %v6467
        %v6498 = vadd.f32 %v6295, %v6470
        %v6499 = vadd.f32 %v6296, %v6475
        %v6500 = vadd.f32 %v6297, %v6478
        %v6501 = vadd.f32 %v6298, %v6483
        %v6502 = vadd.f32 %v6299, %v6486
        %v6503 = vadd.f32 %v6300, %v6491
        %v6504 = vadd.f32 %v6301, %v6494
        %v6505 = vld [vmem:[%s6302] sm:$0xff]
        %v6506 = vld [vmem:[%s6302 + $0x8] sm:$0xff]
        %v6507 = vld [vmem:[%s6302 + $0x10] sm:$0x11]
        %v6508 = vld [vmem:[%s6302 + $0x18] sm:$0xff]
        %v6509 = vld [vmem:[%s6302 + $0x20] sm:$0xff]
        %v6510 = vld [vmem:[%s6302 + $0x28] sm:$0x11]
        %v6511 = vld [vmem:[%s6302 + $0x30] sm:$0xff]
        %v6512 = vld [vmem:[%s6302 + $0x38] sm:$0xff]
        %v6513 = vld [vmem:[%s6302 + $0x40] sm:$0x11]
        %v6514 = vld [vmem:[%s6302 + $0x48] sm:$0xff]
        %v6515 = vld [vmem:[%s6302 + $0x50] sm:$0xff]
        %v6516 = vld [vmem:[%s6302 + $0x58] sm:$0x11]
        %v6518 = vshrl.u32 %v6505, 16
        %v6520 = vrot.slane %v6518, 4
        %v6521 = vshll.u32 %v6505, 16
        %v6523 = vrot.slane %v6521, 5
        %v6524 = vor.u32 %v6520, %v6523
        %v6525 = vrot.slane %v6524, 4
        %v6527 = vshll.u32 %v6506, 16
        %v6529 = vrot.slane %v6527, 5
        %v6530 = vsel %vm657, %v6525, %v6529
        %v6531 = vshrl.u32 %v6506, 16
        %v6533 = vrot.slane %v6531, 4
        %v6534 = vor.u32 %v6533, %v6529
        %v6535 = vrot.slane %v6534, 4
        %v6537 = vshll.u32 %v6507, 16
        %v6539 = vrot.slane %v6537, 5
        %v6540 = vsel %vm657, %v6535, %v6539
        %v6542 = vshrl.u32 %v6508, 16
        %v6544 = vrot.slane %v6542, 4
        %v6545 = vshll.u32 %v6508, 16
        %v6547 = vrot.slane %v6545, 5
        %v6548 = vor.u32 %v6544, %v6547
        %v6549 = vrot.slane %v6548, 4
        %v6551 = vshll.u32 %v6509, 16
        %v6553 = vrot.slane %v6551, 5
        %v6554 = vsel %vm657, %v6549, %v6553
        %v6555 = vshrl.u32 %v6509, 16
        %v6557 = vrot.slane %v6555, 4
        %v6558 = vor.u32 %v6557, %v6553
        %v6559 = vrot.slane %v6558, 4
        %v6561 = vshll.u32 %v6510, 16
        %v6563 = vrot.slane %v6561, 5
        %v6564 = vsel %vm657, %v6559, %v6563
        %v6566 = vshrl.u32 %v6511, 16
        %v6568 = vrot.slane %v6566, 4
        %v6569 = vshll.u32 %v6511, 16
        %v6571 = vrot.slane %v6569, 5
        %v6572 = vor.u32 %v6568, %v6571
        %v6573 = vrot.slane %v6572, 4
        %v6575 = vshll.u32 %v6512, 16
        %v6577 = vrot.slane %v6575, 5
        %v6578 = vsel %vm657, %v6573, %v6577
        %v6579 = vshrl.u32 %v6512, 16
        %v6581 = vrot.slane %v6579, 4
        %v6582 = vor.u32 %v6581, %v6577
        %v6583 = vrot.slane %v6582, 4
        %v6585 = vshll.u32 %v6513, 16
        %v6587 = vrot.slane %v6585, 5
        %v6588 = vsel %vm657, %v6583, %v6587
        %v6590 = vshrl.u32 %v6514, 16
        %v6592 = vrot.slane %v6590, 4
        %v6593 = vshll.u32 %v6514, 16
        %v6595 = vrot.slane %v6593, 5
        %v6596 = vor.u32 %v6592, %v6595
        %v6597 = vrot.slane %v6596, 4
        %v6599 = vshll.u32 %v6515, 16
        %v6601 = vrot.slane %v6599, 5
        %v6602 = vsel %vm657, %v6597, %v6601
        %v6603 = vshrl.u32 %v6515, 16
        %v6605 = vrot.slane %v6603, 4
        %v6606 = vor.u32 %v6605, %v6601
        %v6607 = vrot.slane %v6606, 4
        %v6609 = vshll.u32 %v6516, 16
        %v6611 = vrot.slane %v6609, 5
        %v6612 = vsel %vm657, %v6607, %v6611
        %s6613 = scalar_lea.vmem [#allocation9], 504
        %v6614 = vld [vmem:[%s6613] sm:$0xf]
        %v6615 = vld [vmem:[%s6613 + $0x4] sm:$0xf]
        %v6616 = vld [vmem:[%s6613 + $0x8] sm:$0xf]
        %v6617 = vld [vmem:[%s6613 + $0xc] sm:$0xf]
        %v6618 = vld [vmem:[%s6613 + $0x10] sm:$0xf]
        %v6619 = vld [vmem:[%s6613 + $0x14] sm:$0xf]
        %v6620 = vld [vmem:[%s6613 + $0x18] sm:$0xf]
        %v6621 = vld [vmem:[%s6613 + $0x1c] sm:$0xf]
        %v6622 = vld [vmem:[%s6613 + $0x20] sm:$0xf]
        %v6623 = vld [vmem:[%s6613 + $0x24] sm:$0xf]
        %v6624 = vld [vmem:[%s6613 + $0x28] sm:$0xf]
        %v6625 = vld [vmem:[%s6613 + $0x2c] sm:$0xf]
        %v6626 = vld [vmem:[%s6613 + $0x30] sm:$0xf]
        %v6627 = vld [vmem:[%s6613 + $0x34] sm:$0xf]
        %v6628 = vld [vmem:[%s6613 + $0x38] sm:$0xf]
        %v6629 = vld [vmem:[%s6613 + $0x3c] sm:$0xf]
        %v6630 = vld [vmem:[%s6613 + $0x40] sm:$0xf]
        %v6631 = vld [vmem:[%s6613 + $0x44] sm:$0xf]
        %v6632 = vunpack.c.l.b16 %v6530
        %v6633 = vunpack.c.h.b16 %v6530
        %v6634 = vunpack.c.l.b16 %v6540
        %v6635 = vunpack.c.h.b16 %v6540
        %v6636 = vunpack.c.l.b16 %v6554
        %v6637 = vunpack.c.h.b16 %v6554
        %v6638 = vunpack.c.l.b16 %v6564
        %v6639 = vunpack.c.h.b16 %v6564
        %v6640 = vunpack.c.l.b16 %v6578
        %v6641 = vunpack.c.h.b16 %v6578
        %v6642 = vunpack.c.l.b16 %v6588
        %v6643 = vunpack.c.h.b16 %v6588
        %v6644 = vunpack.c.l.b16 %v6602
        %v6645 = vunpack.c.h.b16 %v6602
        %v6646 = vunpack.c.l.b16 %v6612
        %v6647 = vunpack.c.h.b16 %v6612
        %v6648 = vpack.c.b16 %v6634, %v6632
        %v6649 = vpack.c.b16 %v6635, %v6633
        %v6650 = vpack.c.b16 %v6638, %v6636
        %v6651 = vpack.c.b16 %v6639, %v6637
        %v6652 = vpack.c.b16 %v6642, %v6640
        %v6653 = vpack.c.b16 %v6643, %v6641
        %v6654 = vpack.c.b16 %v6646, %v6644
        %v6655 = vpack.c.b16 %v6647, %v6645
        %v6678 = vunpack.c.l.b16 %v6614
        %v6679 = vunpack.c.l.b16 %v6615
        %v6680 = vunpack.c.l.b16 %v6616
        %v6681 = vunpack.c.l.b16 %v6617
        %v6682 = vunpack.c.l.b16 %v6618
        %v6683 = vunpack.c.l.b16 %v6619
        %v6684 = vunpack.c.l.b16 %v6620
        %v6685 = vunpack.c.l.b16 %v6621
        %v6686 = vunpack.c.l.b16 %v6622
        %v6687 = vunpack.c.l.b16 %v6623
        %v6688 = vunpack.c.l.b16 %v6624
        %v6689 = vunpack.c.l.b16 %v6625
        %v6690 = vunpack.c.l.b16 %v6626
        %v6691 = vunpack.c.l.b16 %v6627
        %v6692 = vunpack.c.l.b16 %v6628
        %v6693 = vunpack.c.l.b16 %v6629
        %v6694 = vunpack.c.l.b16 %v6630
        %v6695 = vunpack.c.l.b16 %v6631
        %v6696 = vpack.c.b16 %v6679, %v6678
        %v6697 = vpack.c.b16 %v6681, %v6680
        %v6698 = vpack.c.b16 %v6683, %v6682
        %v6699 = vpack.c.b16 %v6685, %v6684
        %v6700 = vpack.c.b16 %v6687, %v6686
        %v6701 = vpack.c.b16 %v6689, %v6688
        %v6702 = vpack.c.b16 %v6691, %v6690
        %v6703 = vpack.c.b16 %v6693, %v6692
        %v6704 = vpack.c.b16 %v6695, %v6694
        %v6715 = vsel %vm5105, %v6649, 0
        %v6718 = vsel %vm5105, %v6651, 0
        %v6721 = vsel %vm5105, %v6653, 0
        %v6724 = vsel %vm5105, %v6655, 0
        %6726 = vmatprep.subr.bf16.mxu0 0
        %6727 = vmatpush1.bf16.msra.mxu0 %v6696
        %6728 = vmatprep.subr.bf16.mxu0 0
        %6729 = vmatpush1.bf16.msra.mxu0 %v6697
        %6730 = vmatprep.subr.bf16.mxu0 0
        %6731 = vmatpush1.bf16.msra.mxu0 %v6698
        %6732 = vmatprep.subr.bf16.mxu0 0
        %6733 = vmatpush1.bf16.msra.mxu0 %v6699
        %6734 = vmatprep.subr.bf16.mxu0 0
        %6735 = vmatpush1.bf16.msra.mxu0 %v6700
        %6736 = vmatprep.subr.bf16.mxu0 0
        %6737 = vmatpush1.bf16.msra.mxu0 %v6701
        %6738 = vmatprep.subr.bf16.mxu0 0
        %6739 = vmatpush1.bf16.msra.mxu0 %v6702
        %6740 = vmatprep.subr.bf16.mxu0 0
        %6741 = vmatpush1.bf16.msra.mxu0 %v6703
        %6742 = vmatprep.subr.bf16.mxu0 0
        %6743 = vmatpush1.bf16.msra.mxu0 %v6704
        %6744 = vmatprep.subr.bf16.mxu0 0
        %6745 = vmatpush1.bf16.msra.mxu0 0
        %6746 = vmatprep.subr.bf16.mxu0 0
        %6747 = vmatpush1.bf16.msra.mxu0 0
        %6748 = vmatprep.subr.bf16.mxu0 0
        %6749 = vmatpush1.bf16.msra.mxu0 0
        %6750 = vmatprep.subr.bf16.mxu0 0
        %6751 = vmatpush1.bf16.msra.mxu0 0
        %6752 = vmatprep.subr.bf16.mxu0 0
        %6753 = vmatpush1.bf16.msra.mxu0 0
        %6754 = vmatprep.subr.bf16.mxu0 0
        %6755 = vmatpush1.bf16.msra.mxu0 0
        %6756 = vmatprep.subr.bf16.mxu0 0
        %6757 = vmatpush1.bf16.msra.mxu0 0
        %6758 = vmatprep.mubr.bf16.mxu0 %v6715
        %6759 = vmatmul.mubr.bf16.gmra.mrb[0].mxu0 %v6648
        %v6760 = vpop.f32.mrb[0].mxu0
        %v6761 = vadd.f32 0.0, %v6760
        %v6762 = vpop.f32.mrb[0].mxu0
        %v6763 = vpop.f32.mrb[0].mxu0
        %v6764 = vadd.f32 0.0, %v6763
        %v6765 = vpop.f32.mrb[0].mxu0
        %6766 = vmatprep.mubr.bf16.mxu0 %v6718
        %6767 = vmatmul.mubr.bf16.gmra.mrb[0].mxu0 %v6650
        %v6768 = vpop.f32.mrb[0].mxu0
        %v6769 = vadd.f32 0.0, %v6768
        %v6770 = vpop.f32.mrb[0].mxu0
        %v6771 = vpop.f32.mrb[0].mxu0
        %v6772 = vadd.f32 0.0, %v6771
        %v6773 = vpop.f32.mrb[0].mxu0
        %6774 = vmatprep.mubr.bf16.mxu0 %v6721
        %6775 = vmatmul.mubr.bf16.gmra.mrb[0].mxu0 %v6652
        %v6776 = vpop.f32.mrb[0].mxu0
        %v6777 = vadd.f32 0.0, %v6776
        %v6778 = vpop.f32.mrb[0].mxu0
        %v6779 = vpop.f32.mrb[0].mxu0
        %v6780 = vadd.f32 0.0, %v6779
        %v6781 = vpop.f32.mrb[0].mxu0
        %6782 = vmatprep.mubr.bf16.mxu0 %v6724
        %6783 = vmatmul.mubr.bf16.gmra.mrb[0].mxu0 %v6654
        %v6784 = vpop.f32.mrb[0].mxu0
        %v6785 = vadd.f32 0.0, %v6784
        %v6786 = vpop.f32.mrb[0].mxu0
        %v6787 = vpop.f32.mrb[0].mxu0
        %v6788 = vadd.f32 0.0, %v6787
        %v6789 = vpop.f32.mrb[0].mxu0
        %6790 = vdwg.mxu0
        %v6791 = vadd.f32 %v6497, %v6761
        %v6792 = vadd.f32 %v6498, %v6764
        %v6793 = vadd.f32 %v6499, %v6769
        %v6794 = vadd.f32 %v6500, %v6772
        %v6795 = vadd.f32 %v6501, %v6777
        %v6796 = vadd.f32 %v6502, %v6780
        %v6797 = vadd.f32 %v6503, %v6785
        %v6798 = vadd.f32 %v6504, %v6788
        %v6799 = vld [vmem:[%s6302] sm:$0xee]
        %v6800 = vld [vmem:[%s6302 + $0x18] sm:$0xee]
        %v6801 = vld [vmem:[%s6302 + $0x30] sm:$0xee]
        %v6802 = vld [vmem:[%s6302 + $0x48] sm:$0xee]
        %v6815 = vrot.slane %v6799, 5
        %v6816 = vrot.slane %v6815, 4
        %v6817 = vrot.slane %v6506, 5
        %v6818 = vsel %vm1518, %v6816, %v6817
        %v6819 = vrot.slane %v6817, 4
        %v6820 = vrot.slane %v6507, 5
        %v6821 = vsel %vm1518, %v6819, %v6820
        %v6822 = vrot.slane %v6800, 5
        %v6823 = vrot.slane %v6822, 4
        %v6824 = vrot.slane %v6509, 5
        %v6825 = vsel %vm1518, %v6823, %v6824
        %v6826 = vrot.slane %v6824, 4
        %v6827 = vrot.slane %v6510, 5
        %v6828 = vsel %vm1518, %v6826, %v6827
        %v6829 = vrot.slane %v6801, 5
        %v6830 = vrot.slane %v6829, 4
        %v6831 = vrot.slane %v6512, 5
        %v6832 = vsel %vm1518, %v6830, %v6831
        %v6833 = vrot.slane %v6831, 4
        %v6834 = vrot.slane %v6513, 5
        %v6835 = vsel %vm1518, %v6833, %v6834
        %v6836 = vrot.slane %v6802, 5
        %v6837 = vrot.slane %v6836, 4
        %v6838 = vrot.slane %v6515, 5
        %v6839 = vsel %vm1518, %v6837, %v6838
        %v6840 = vrot.slane %v6838, 4
        %v6841 = vrot.slane %v6516, 5
        %v6842 = vsel %vm1518, %v6840, %v6841
        %s6843 = scalar_lea.vmem [#allocation9], 576
        %v6844 = vld [vmem:[%s6843] sm:$0xf]
        %v6845 = vld [vmem:[%s6843 + $0x4] sm:$0xf]
        %v6846 = vld [vmem:[%s6843 + $0x8] sm:$0xf]
        %v6847 = vld [vmem:[%s6843 + $0xc] sm:$0xf]
        %v6848 = vld [vmem:[%s6843 + $0x10] sm:$0xf]
        %v6849 = vld [vmem:[%s6843 + $0x14] sm:$0xf]
        %v6850 = vld [vmem:[%s6843 + $0x18] sm:$0xf]
        %v6851 = vld [vmem:[%s6843 + $0x1c] sm:$0xf]
        %v6852 = vld [vmem:[%s6843 + $0x20] sm:$0xf]
        %v6853 = vld [vmem:[%s6843 + $0x24] sm:$0xf]
        %v6854 = vld [vmem:[%s6843 + $0x28] sm:$0xf]
        %v6855 = vld [vmem:[%s6843 + $0x2c] sm:$0xf]
        %v6856 = vld [vmem:[%s6843 + $0x30] sm:$0xf]
        %v6857 = vld [vmem:[%s6843 + $0x34] sm:$0xf]
        %v6858 = vld [vmem:[%s6843 + $0x38] sm:$0xf]
        %v6859 = vld [vmem:[%s6843 + $0x3c] sm:$0xf]
        %v6860 = vld [vmem:[%s6843 + $0x40] sm:$0xf]
        %v6861 = vld [vmem:[%s6843 + $0x44] sm:$0xf]
        %v6862 = vunpack.c.l.b16 %v6818
        %v6863 = vunpack.c.h.b16 %v6818
        %v6864 = vunpack.c.l.b16 %v6821
        %v6865 = vunpack.c.h.b16 %v6821
        %v6866 = vunpack.c.l.b16 %v6825
        %v6867 = vunpack.c.h.b16 %v6825
        %v6868 = vunpack.c.l.b16 %v6828
        %v6869 = vunpack.c.h.b16 %v6828
        %v6870 = vunpack.c.l.b16 %v6832
        %v6871 = vunpack.c.h.b16 %v6832
        %v6872 = vunpack.c.l.b16 %v6835
        %v6873 = vunpack.c.h.b16 %v6835
        %v6874 = vunpack.c.l.b16 %v6839
        %v6875 = vunpack.c.h.b16 %v6839
        %v6876 = vunpack.c.l.b16 %v6842
        %v6877 = vunpack.c.h.b16 %v6842
        %v6878 = vpack.c.b16 %v6864, %v6862
        %v6879 = vpack.c.b16 %v6865, %v6863
        %v6880 = vpack.c.b16 %v6868, %v6866
        %v6881 = vpack.c.b16 %v6869, %v6867
        %v6882 = vpack.c.b16 %v6872, %v6870
        %v6883 = vpack.c.b16 %v6873, %v6871
        %v6884 = vpack.c.b16 %v6876, %v6874
        %v6885 = vpack.c.b16 %v6877, %v6875
        %v6908 = vunpack.c.l.b16 %v6844
        %v6909 = vunpack.c.l.b16 %v6845
        %v6910 = vunpack.c.l.b16 %v6846
        %v6911 = vunpack.c.l.b16 %v6847
        %v6912 = vunpack.c.l.b16 %v6848
        %v6913 = vunpack.c.l.b16 %v6849
        %v6914 = vunpack.c.l.b16 %v6850
        %v6915 = vunpack.c.l.b16 %v6851
        %v6916 = vunpack.c.l.b16 %v6852
        %v6917 = vunpack.c.l.b16 %v6853
        %v6918 = vunpack.c.l.b16 %v6854
        %v6919 = vunpack.c.l.b16 %v6855
        %v6920 = vunpack.c.l.b16 %v6856
        %v6921 = vunpack.c.l.b16 %v6857
        %v6922 = vunpack.c.l.b16 %v6858
        %v6923 = vunpack.c.l.b16 %v6859
        %v6924 = vunpack.c.l.b16 %v6860
        %v6925 = vunpack.c.l.b16 %v6861
        %v6926 = vpack.c.b16 %v6909, %v6908
        %v6927 = vpack.c.b16 %v6911, %v6910
        %v6928 = vpack.c.b16 %v6913, %v6912
        %v6929 = vpack.c.b16 %v6915, %v6914
        %v6930 = vpack.c.b16 %v6917, %v6916
        %v6931 = vpack.c.b16 %v6919, %v6918
        %v6932 = vpack.c.b16 %v6921, %v6920
        %v6933 = vpack.c.b16 %v6923, %v6922
        %v6934 = vpack.c.b16 %v6925, %v6924
        %v6945 = vsel %vm5105, %v6879, 0
        %v6948 = vsel %vm5105, %v6881, 0
        %v6951 = vsel %vm5105, %v6883, 0
        %v6954 = vsel %vm5105, %v6885, 0
        %6956 = vmatprep.subr.bf16.mxu0 0
        %6957 = vmatpush1.bf16.msra.mxu0 %v6926
        %6958 = vmatprep.subr.bf16.mxu0 0
        %6959 = vmatpush1.bf16.msra.mxu0 %v6927
        %6960 = vmatprep.subr.bf16.mxu0 0
        %6961 = vmatpush1.bf16.msra.mxu0 %v6928
        %6962 = vmatprep.subr.bf16.mxu0 0
        %6963 = vmatpush1.bf16.msra.mxu0 %v6929
        %6964 = vmatprep.subr.bf16.mxu0 0
        %6965 = vmatpush1.bf16.msra.mxu0 %v6930
        %6966 = vmatprep.subr.bf16.mxu0 0
        %6967 = vmatpush1.bf16.msra.mxu0 %v6931
        %6968 = vmatprep.subr.bf16.mxu0 0
        %6969 = vmatpush1.bf16.msra.mxu0 %v6932
        %6970 = vmatprep.subr.bf16.mxu0 0
        %6971 = vmatpush1.bf16.msra.mxu0 %v6933
        %6972 = vmatprep.subr.bf16.mxu0 0
        %6973 = vmatpush1.bf16.msra.mxu0 %v6934
        %6974 = vmatprep.subr.bf16.mxu0 0
        %6975 = vmatpush1.bf16.msra.mxu0 0
        %6976 = vmatprep.subr.bf16.mxu0 0
        %6977 = vmatpush1.bf16.msra.mxu0 0
        %6978 = vmatprep.subr.bf16.mxu0 0
        %6979 = vmatpush1.bf16.msra.mxu0 0
        %6980 = vmatprep.subr.bf16.mxu0 0
        %6981 = vmatpush1.bf16.msra.mxu0 0
        %6982 = vmatprep.subr.bf16.mxu0 0
        %6983 = vmatpush1.bf16.msra.mxu0 0
        %6984 = vmatprep.subr.bf16.mxu0 0
        %6985 = vmatpush1.bf16.msra.mxu0 0
        %6986 = vmatprep.subr.bf16.mxu0 0
        %6987 = vmatpush1.bf16.msra.mxu0 0
        %6988 = vmatprep.mubr.bf16.mxu0 %v6945
        %6989 = vmatmul.mubr.bf16.gmra.mrb[0].mxu0 %v6878
        %v6990 = vpop.f32.mrb[0].mxu0
        %v6991 = vadd.f32 0.0, %v6990
        %v6992 = vpop.f32.mrb[0].mxu0
        %v6993 = vpop.f32.mrb[0].mxu0
        %v6994 = vadd.f32 0.0, %v6993
        %v6995 = vpop.f32.mrb[0].mxu0
        %6996 = vmatprep.mubr.bf16.mxu0 %v6948
        %6997 = vmatmul.mubr.bf16.gmra.mrb[0].mxu0 %v6880
        %v6998 = vpop.f32.mrb[0].mxu0
        %v6999 = vadd.f32 0.0, %v6998
        %v7000 = vpop.f32.mrb[0].mxu0
        %v7001 = vpop.f32.mrb[0].mxu0
        %v7002 = vadd.f32 0.0, %v7001
        %v7003 = vpop.f32.mrb[0].mxu0
        %7004 = vmatprep.mubr.bf16.mxu0 %v6951
        %7005 = vmatmul.mubr.bf16.gmra.mrb[0].mxu0 %v6882
        %v7006 = vpop.f32.mrb[0].mxu0
        %v7007 = vadd.f32 0.0, %v7006
        %v7008 = vpop.f32.mrb[0].mxu0
        %v7009 = vpop.f32.mrb[0].mxu0
        %v7010 = vadd.f32 0.0, %v7009
        %v7011 = vpop.f32.mrb[0].mxu0
        %7012 = vmatprep.mubr.bf16.mxu0 %v6954
        %7013 = vmatmul.mubr.bf16.gmra.mrb[0].mxu0 %v6884
        %v7014 = vpop.f32.mrb[0].mxu0
        %v7015 = vadd.f32 0.0, %v7014
        %v7016 = vpop.f32.mrb[0].mxu0
        %v7017 = vpop.f32.mrb[0].mxu0
        %v7018 = vadd.f32 0.0, %v7017
        %v7019 = vpop.f32.mrb[0].mxu0
        %7020 = vdwg.mxu0
        %v7021 = vadd.f32 %v6791, %v6991
        %v7022 = vadd.f32 %v6792, %v6994
        %v7023 = vadd.f32 %v6793, %v6999
        %v7024 = vadd.f32 %v6794, %v7002
        %v7025 = vadd.f32 %v6795, %v7007
        %v7026 = vadd.f32 %v6796, %v7010
        %v7027 = vadd.f32 %v6797, %v7015
        %v7028 = vadd.f32 %v6798, %v7018
        %v7029 = vld [vmem:[%s5] sm:$0x1]
        %v7031 = vlaneseq
        %v7032 = vshrl.u32 %v7031, 7
        %v7033 = vsub.s32 0, %v7032
        %v7034 = vrot.slane %v7029, %v7033
        %v7036 = vmul.f32 %v7021, %v7034
        %v7037 = vmul.f32 %v7022, %v7034
        %v7038 = vmul.f32 %v7023, %v7034
        %v7039 = vmul.f32 %v7024, %v7034
        %v7040 = vmul.f32 %v7025, %v7034
        %v7041 = vmul.f32 %v7026, %v7034
        %v7042 = vmul.f32 %v7027, %v7034
        %v7043 = vmul.f32 %v7028, %v7034
        %v7044 = vld [vmem:[%s6] sm:$0x1]
        %v7046 = vlaneseq
        %v7047 = vshrl.u32 %v7046, 7
        %v7048 = vsub.s32 0, %v7047
        %v7049 = vrot.slane %v7044, %v7048
        %v7051 = vadd.f32 %v7036, %v7049
        %v7052 = vadd.f32 %v7037, %v7049
        %v7053 = vadd.f32 %v7038, %v7049
        %v7054 = vadd.f32 %v7039, %v7049
        %v7055 = vadd.f32 %v7040, %v7049
        %v7056 = vadd.f32 %v7041, %v7049
        %v7057 = vadd.f32 %v7042, %v7049
        %v7058 = vadd.f32 %v7043, %v7049
        %v7059 = vmax.f32 %v7051, 0.0
        %v7060 = vmax.f32 %v7052, 0.0
        %v7061 = vmax.f32 %v7053, 0.0
        %v7062 = vmax.f32 %v7054, 0.0
        %v7063 = vmax.f32 %v7055, 0.0
        %v7064 = vmax.f32 %v7056, 0.0
        %v7065 = vmax.f32 %v7057, 0.0
        %v7066 = vmax.f32 %v7058, 0.0
        %7067 = vst [vmem:[%s325] sm:$0xff] %v7059
        %7068 = vst [vmem:[%s325 + $0x8] sm:$0xff] %v7060
        %7069 = vst [vmem:[%s325 + $0x10] sm:$0xff] %v7061
        %7070 = vst [vmem:[%s325 + $0x18] sm:$0xff] %v7062
        %7071 = vst [vmem:[%s325 + $0x20] sm:$0xff] %v7063
        %7072 = vst [vmem:[%s325 + $0x28] sm:$0xff] %v7064
        %7073 = vst [vmem:[%s325 + $0x30] sm:$0xff] %v7065
        %7074 = vst [vmem:[%s325 + $0x38] sm:$0xff] %v7066
        %s7075 = sand.u32 %s185, 1
        %s7076 = scalar_lea.sflag [#allocation6], %s7075
        %s7077 = sand.u32 %s185, 1
        %s7078 = smul.addr %s7077, 64
        %s7079 = scalar_lea.vmem [#allocation10], %s7078
        // Predicated region
        $region61: #{tpu_custom_call.1} parent=47 // pred_check
          %p7080 = pneg %p195
        $region62: #{tpu_custom_call.1} parent=47 // pred_check_branch
          %7082 = sbr.rel (%p7080) target = $region64
        $region63: #{tpu_custom_call.1} parent=47 // pred_region
          %s7084 = ssub.s32 1024, 1024
          %7085 = vsyncadd %s7076, %s7084
          %s7086 = smul.addr %s25, 8
          %s7087 = smul.addr %s7086, 128
          %s7088 = scalar_lea.hbm %s7, %s7087
          %s7089 = sshll.u32 %s7079, 4
          %s7090 = int_to_ptr.vmem [resolvable:$true] %s7089
          %7095 = dma.vmem_to_hbm [thread:$0]  %s7090, 1024, %s7088, %s7076, 128, 128, 8
        $region64: #{tpu_custom_call.1} parent=47 // pred_fallthru
          _
      $region48: #{tpu_custom_call.1} parent=5 // pred_fallthru
        _
      %p7096 = scmp.le.s32.totalorder 2, %s20
      // Predicated region
      $region65: #{tpu_custom_call.1} parent=5 // pred_check
        %p7097 = pneg %p7096
      $region66: #{tpu_custom_call.1} parent=5 // pred_check_branch
        %7099 = sbr.rel (%p7097) target = $region68
      $region67: #{tpu_custom_call.1} parent=5 // pred_region
        %s7100 = ssub.s32 %s20, 2
        // Predicated region
        $region69: #{tpu_custom_call.1} parent=67 // pred_check
          %p7101 = pneg %p201
        $region70: #{tpu_custom_call.1} parent=67 // pred_check_branch
          %7103 = sbr.rel (%p7101) target = $region72
        $region71: #{tpu_custom_call.1} parent=67 // pred_region
          %s7104 = sand.u32 %s186, 1
          %s7105 = scalar_lea.sflag [#allocation6], %s7104
          %s7106 = sand.u32 %s186, 1
          %s7107 = smul.addr %s7106, 64
          %s7108 = scalar_lea.vmem [#allocation10], %s7107
          %7109 = dma.done %s7105, 1024
        $region72: #{tpu_custom_call.1} parent=67 // pred_fallthru
          _
      $region68: #{tpu_custom_call.1} parent=5 // pred_fallthru
        _
    $region6: #{tpu_custom_call.1} parent=1 // loop_footer
      %s24 = sadd.s32 1, %s20
    $region7: #{tpu_custom_call.1} parent=1 // loop_footer_branch
      %19 = sbr.rel target = $region3
    $region8: #{tpu_custom_call.1} parent=1 // loop_exit
      _
    %7110 = vsyncpa [#allocation5], 1
    %s7111 = scalar_lea.sflag [#allocation5], 1
    %7112 = vsyncpa %s7111, 1
    %7113 = vsyncpa [#allocation8], 1
    %7114 = vsyncpa [#allocation6], 1
    %s7115 = scalar_lea.sflag [#allocation6], 1
    %7116 = vsyncpa %s7115, 1

</llo_original>
